<compile_context>
chip_gen: v7x
topology: tpu7x:2x2x1
jax: 0.10.0
libtpu: 0.0.40
codegen_flags: <defaults>
</compile_context>

<pallas_src>
import functools

import jax
import jax.numpy as jnp
from jax import lax
from jax.experimental import pallas as pl
from jax.experimental.pallas import tpu as pltpu

EPS = 1e-5              # nn.InstanceNorm3d default eps
NEG_SLOPE = 0.01        # nn.LeakyReLU default negative_slope
MATMUL_DTYPE = jnp.bfloat16   # matmul operands + activation storage (f32 accum)
# TODO(synk): on v7x evaluate fp8 operands for the conv2 matmul (native fp8 MXU)
# once profiling at production channel counts shows the stage is MXU-bound.


def _round_up(v, m):
    return (v + m - 1) // m * m


def _lrelu(x):
    return jnp.where(x >= 0, x, NEG_SLOPE * x)


# ---------------------------------------------------------------------------
# Stage 1: conv1_1 [3,3,1] || conv1_2 [1,3,3]  ->  raw conv output (guarded,
# lane-dense plane layout) + per-plane partial InstanceNorm stats for bn1 and
# for the 1x1x1 downsample residual.  One grid step = one (sample, depth plane).
# x0/x1/x2 view the same padded input at depth planes d, d+1, d+2.
# ---------------------------------------------------------------------------
def _stage1_kernel(x0_ref, x1_ref, x2_ref, w11_ref, w12_ref, wd_ref, mask_ref,
                   y1_ref, st_ref, *, Wp, G, L, couth_p):
    xs = [x0_ref[...], x1_ref[...], x2_ref[...]]          # (Cin_p, Lx) bf16

    # conv1_1: taps (depth a, height b) stacked along K -> one matmul, K=9*Cin.
    slabs = []
    for a in range(3):
        for b in range(3):
            s = (b - 1) * Wp
            slabs.append(xs[a][:, G + s: G + s + L])
    acc1 = jnp.dot(w11_ref[...], jnp.concatenate(slabs, axis=0),
                   preferred_element_type=jnp.float32)    # (couth_p, L) f32

    # conv1_2: taps (height b, width c) on the centre depth plane.
    slabs = []
    for b in range(3):
        for c in range(3):
            s = (b - 1) * Wp + (c - 1)
            slabs.append(xs[1][:, G + s: G + s + L])
    acc2 = jnp.dot(w12_ref[...], jnp.concatenate(slabs, axis=0),
                   preferred_element_type=jnp.float32)    # (couth_p, L) f32

    # residual branch r = W_down @ x (1x1x1 conv): only its statistics here,
    # the values are recomputed cheaply in the finalize kernel.
    r = jnp.dot(wd_ref[...], xs[1][:, G: G + L],
                preferred_element_type=jnp.float32)       # (Cout_p, L) f32

    # two aligned (couth_p is a multiple of 16), full-lane-width stores:
    # no masked guard stores, no misaligned concat of the branch accumulators.
    y1_ref[0:couth_p, :] = acc1.astype(y1_ref.dtype)
    y1_ref[couth_p:, :] = acc2.astype(y1_ref.dtype)

    # per-plane partial stats over interior voxels only (mask excludes guards,
    # padding ring and lane-padding tail).
    m = mask_ref[...]                                     # (1, L) f32
    a1m = acc1 * m
    a2m = acc2 * m
    rm = r * m
    st_ref[...] = jnp.concatenate(
        [jnp.concatenate([jnp.sum(a1m, axis=1, keepdims=True),
                          jnp.sum(a2m, axis=1, keepdims=True)], axis=0),
         jnp.concatenate([jnp.sum(a1m * acc1, axis=1, keepdims=True),
                          jnp.sum(a2m * acc2, axis=1, keepdims=True)], axis=0),
         jnp.sum(rm, axis=1, keepdims=True),
         jnp.sum(rm * r, axis=1, keepdims=True)], axis=1)  # (Cout_p, 4)


# ---------------------------------------------------------------------------
# Stage 2: rolling 3-plane window over the depth axis (marked "arbitrary").
# Each y1 plane is fetched once, bn1 + LeakyReLU + boundary masking applied
# once, pre-stacked over its 3 height taps and kept in VMEM for the 3 output
# planes that need it.  Grid step d (0..D) produces output plane d-1; the
# garbage written at d==0 targets the same output block as d==1 and is
# overwritten before write-back.  bn2 stats accumulate in a resident block.
# ---------------------------------------------------------------------------
def _stage2_kernel(y1_ref, norm1_ref, w2_ref, mask_ref, y2_ref, st_ref, win_ref,
                   *, Wp, G, Lp, D, Cout_p):
    d = pl.program_id(1)

    @pl.when(d == 0)
    def _():
        win_ref[...] = jnp.zeros_like(win_ref)
        st_ref[...] = jnp.zeros_like(st_ref)

    jslot = lax.rem(d, 3)

    @pl.when(d < D)
    def _():
        mean1 = norm1_ref[:, 0:1]                         # (Cout_p, 1) f32
        inv1 = norm1_ref[:, 1:2]
        y = y1_ref[...].astype(jnp.float32)               # (Cout_p, L)
        m = mask_ref[...] > 0.5                           # (1, L)
        nz = jnp.where(m, _lrelu((y - mean1) * inv1), 0.0).astype(MATMUL_DTYPE)
        # pre-stack the 3 height taps so conv2 needs no per-step slab copies.
        win_ref[jslot] = jnp.concatenate(
            [nz[:, G - Wp: G - Wp + Lp],
             nz[:, G:      G + Lp],
             nz[:, G + Wp: G + Wp + Lp]], axis=0)         # (3*Cout_p, Lp)

    @pl.when(d == D)
    def _():
        # the "plane D" depth tap of the last output plane is the zero pad.
        win_ref[jslot] = jnp.zeros((3 * Cout_p, Lp), MATMUL_DTYPE)

    # output plane (d-1): depth taps come from window slots for planes
    # d-2, d-1, d ((d+a+1) mod 3 == (d-2+a) mod 3, kept non-negative).
    acc = jnp.zeros((Cout_p, Lp), jnp.float32)
    for a in range(3):
        ja = lax.rem(d + a + 1, 3)
        acc = acc + jnp.dot(w2_ref[a], win_ref[ja],
                            preferred_element_type=jnp.float32)
    y2_ref[...] = acc.astype(y2_ref.dtype)

    @pl.when(d > 0)
    def _():
        mp = mask_ref[:, G: G + Lp]                       # (1, Lp)
        am = acc * mp
        st_ref[...] += jnp.concatenate(
            [jnp.sum(am, axis=1, keepdims=True),
             jnp.sum(am * acc, axis=1, keepdims=True)], axis=1)   # (Cout_p, 2)


# ---------------------------------------------------------------------------
# Stage 3: bn2, residual (1x1x1 conv + InstanceNorm), add, LeakyReLU.
# ---------------------------------------------------------------------------
def _finalize_kernel(y2_ref, xc_ref, wd_ref, norm2_ref, normr_ref, o_ref, *, G, Lp):
    y2 = y2_ref[...].astype(jnp.float32)                              # (Cout_p, Lp)
    y2n = (y2 - norm2_ref[:, 0:1]) * norm2_ref[:, 1:2]
    r = jnp.dot(wd_ref[...], xc_ref[:, 2 * G: 2 * G + Lp],
                preferred_element_type=jnp.float32)                   # (Cout_p, Lp)
    rn = (r - normr_ref[:, 0:1]) * normr_ref[:, 1:2]
    o_ref[...] = _lrelu(y2n + rn).astype(o_ref.dtype)


# ----------------------------- JAX-side glue --------------------------------
def _moments(sums, sumsqs, count):
    mean = sums / count
    var = sumsqs / count - mean * mean
    # TODO(synk): switch to shifted/Welford-style stat combine if f32
    # E[x^2]-mean^2 cancellation becomes visible at production volume sizes.
    return jnp.stack([mean, lax.rsqrt(var + EPS)], axis=-1)          # (..., 2)


def mixconvblock_forward(x, params):
    """x: (N, Cin, D, H, W) f32 (NCDHW)  ->  (N, Cout, D, H, W) f32."""
    N, Cin, D, H, W = x.shape
    couth = params["conv1_1_w"].shape[0]
    Cout = 2 * couth

    # channel padding: branch width to a bf16 sublane tile (16), input to 8.
    couth_p = _round_up(couth, 16)
    Cout_p = 2 * couth_p
    Cin_p = _round_up(max(Cin, 8), 8)
    # TODO(synk): for the first UNet level (Cin < 8) pack several depth planes
    # into the sublane axis instead of zero-padding the input channels.

    Hp, Wp = H + 2, W + 2
    P2 = Hp * Wp
    G = _round_up(Wp + 1, 128)    # 128-aligned guard -> body starts lane-aligned
    Lp = _round_up(P2, 128)       # lane-dense un-guarded plane width
    L = Lp + 2 * G                # guarded plane width (y1); body at [G, G+P2)
    Lx = L + 2 * G                # input plane width; body at [2G, 2G+P2)
    nvox = float(D * H * W)
    # TODO(synk): for production UNet3D volumes add a row-tile grid axis over Hp
    # (with a +/-Wp lane halo) and re-derive vmem_limit_bytes for v7x's 64 MiB.

    chan_pos = jnp.concatenate(
        [jnp.arange(couth), couth_p + jnp.arange(couth)])   # real channel slots

    # ---- activation layout: channel-major, flattened padded HW plane on lanes
    xp = jnp.transpose(x, (0, 2, 1, 3, 4))                           # (N,D,Cin,H,W)
    xp = jnp.pad(xp, ((0, 0), (1, 1), (0, Cin_p - Cin), (1, 1), (1, 1)))
    xp = xp.reshape(N, D + 2, Cin_p, P2)
    xp = jnp.pad(xp, ((0, 0), (0, 0), (0, 0), (2 * G, Lx - 2 * G - P2)))
    xp = xp.astype(MATMUL_DTYPE)

    # interior-voxel mask over one guarded plane (width L, body at [G, G+P2))
    hh = jnp.arange(Hp)
    ww = jnp.arange(Wp)
    m2 = ((hh >= 1) & (hh <= H))[:, None] & ((ww >= 1) & (ww <= W))[None, :]
    mask = jnp.pad(m2.reshape(1, P2).astype(jnp.float32),
                   ((0, 0), (G, L - G - P2)))

    # ---- weights: K-stacked tap matrices; conv biases dropped (they cancel
    # under the affine-free InstanceNorm that immediately follows each conv).
    def stack_dh(w):   # (couth, Cin, 3, 3, 1) -> (couth_p, 9*Cin_p), taps (a,b)
        t = jnp.transpose(w[:, :, :, :, 0], (0, 2, 3, 1))
        out = jnp.zeros((couth_p, 3, 3, Cin_p), w.dtype)
        out = out.at[:couth, :, :, :Cin].set(t)
        return out.reshape(couth_p, 9 * Cin_p)

    def stack_hw(w):   # (couth, Cin, 1, 3, 3) -> (couth_p, 9*Cin_p), taps (b,c)
        t = jnp.transpose(w[:, :, 0, :, :], (0, 2, 3, 1))
        out = jnp.zeros((couth_p, 3, 3, Cin_p), w.dtype)
        out = out.at[:couth, :, :, :Cin].set(t)
        return out.reshape(couth_p, 9 * Cin_p)

    w11 = stack_dh(params["conv1_1_w"]).astype(MATMUL_DTYPE)
    w12 = stack_hw(params["conv1_2_w"]).astype(MATMUL_DTYPE)

    w2 = params["conv2_w"][:, :, :, :, 0]                       # (Cout, Cout, 3, 3)
    w2p = jnp.zeros((Cout_p, Cout_p, 3, 3), w2.dtype)
    w2p = w2p.at[chan_pos[:, None], chan_pos[None, :]].set(w2)
    w2s = jnp.transpose(w2p, (2, 0, 3, 1)).reshape(3, Cout_p, 3 * Cout_p)
    w2s = w2s.astype(MATMUL_DTYPE)                               # per-depth-tap, K=3*Cout_p

    wd = params["down_w"].reshape(Cout, Cin)
    wdp = jnp.zeros((Cout_p, Cin_p), wd.dtype)
    wdp = wdp.at[chan_pos[:, None], jnp.arange(Cin)[None, :]].set(wd)
    wdp = wdp.astype(MATMUL_DTYPE)

    cpar = pltpu.CompilerParams(dimension_semantics=("parallel", "parallel"),
                                vmem_limit_bytes=32 * 1024 * 1024)
    cseq = pltpu.CompilerParams(dimension_semantics=("parallel", "arbitrary"),
                                vmem_limit_bytes=32 * 1024 * 1024)

    def xplane(off):
        return pl.BlockSpec((None, None, Cin_p, Lx),
                            lambda n, d, off=off: (n, d + off, 0, 0))

    def const(shape):
        return pl.BlockSpec(shape, lambda n, d: (0,) * len(shape))

    # ---- stage 1: branch convs (single K=9*Cin_p matmuls) + partial stats ---
    y1, st1 = pl.pallas_call(
        functools.partial(_stage1_kernel, Wp=Wp, G=G, L=L, couth_p=couth_p),
        grid=(N, D),
        in_specs=[xplane(0), xplane(1), xplane(2),
                  const((couth_p, 9 * Cin_p)), const((couth_p, 9 * Cin_p)),
                  const((Cout_p, Cin_p)), const((1, L))],
        out_specs=[pl.BlockSpec((None, None, Cout_p, L),
                                lambda n, d: (n, d, 0, 0)),
                   pl.BlockSpec((None, None, Cout_p, 4),
                                lambda n, d: (n, d, 0, 0))],
        out_shape=[jax.ShapeDtypeStruct((N, D, Cout_p, L), MATMUL_DTYPE),
                   jax.ShapeDtypeStruct((N, D, Cout_p, 4), jnp.float32)],
        compiler_params=cpar,
    )(xp, xp, xp, w11, w12, wdp, mask)

    s1 = jnp.sum(st1, axis=1)                               # (N, Cout_p, 4)
    norm1 = _moments(s1[..., 0], s1[..., 1], nvox)          # bn1: (N, Cout_p, 2)
    normr = _moments(s1[..., 2], s1[..., 3], nvox)          # downsample norm

    # ---- stage 2: rolling depth window, bn1+LeakyReLU fused into conv2 ------
    y2, st2 = pl.pallas_call(
        functools.partial(_stage2_kernel, Wp=Wp, G=G, Lp=Lp, D=D, Cout_p=Cout_p),
        grid=(N, D + 1),
        in_specs=[pl.BlockSpec((None, None, Cout_p, L),
                               lambda n, d: (n, jnp.minimum(d, D - 1), 0, 0)),
                  pl.BlockSpec((None, Cout_p, 2), lambda n, d: (n, 0, 0)),
                  const((3, Cout_p, 3 * Cout_p)), const((1, L))],
        out_specs=[pl.BlockSpec((None, None, Cout_p, Lp),
                                lambda n, d: (n, jnp.maximum(d - 1, 0), 0, 0)),
                   pl.BlockSpec((None, Cout_p, 2), lambda n, d: (n, 0, 0))],
        out_shape=[jax.ShapeDtypeStruct((N, D, Cout_p, Lp), MATMUL_DTYPE),
                   jax.ShapeDtypeStruct((N, Cout_p, 2), jnp.float32)],
        scratch_shapes=[pltpu.VMEM((3, 3 * Cout_p, Lp), MATMUL_DTYPE)],
        compiler_params=cseq,
    )(y1, norm1, w2s, mask)

    norm2 = _moments(st2[..., 0], st2[..., 1], nvox)        # bn2: (N, Cout_p, 2)

    # ---- finalize: bn2, residual norm, add, LeakyReLU (bf16 output) ---------
    outp = pl.pallas_call(
        functools.partial(_finalize_kernel, G=G, Lp=Lp),
        grid=(N, D),
        in_specs=[pl.BlockSpec((None, None, Cout_p, Lp),
                               lambda n, d: (n, d, 0, 0)),
                  xplane(1),
                  const((Cout_p, Cin_p)),
                  pl.BlockSpec((None, Cout_p, 2), lambda n, d: (n, 0, 0)),
                  pl.BlockSpec((None, Cout_p, 2), lambda n, d: (n, 0, 0))],
        out_specs=pl.BlockSpec((None, None, Cout_p, Lp),
                               lambda n, d: (n, d, 0, 0)),
        out_shape=jax.ShapeDtypeStruct((N, D, Cout_p, Lp), MATMUL_DTYPE),
        compiler_params=cpar,
    )(y2, xp, wdp, norm2, normr)

    # drop lane padding / guard garbage, strip padded channels, back to NCDHW.
    out = jnp.take(outp[:, :, :, :P2], chan_pos, axis=2)    # (N, D, Cout, P2)
    out = out.reshape(N, D, Cout, Hp, Wp)[:, :, :, 1:H + 1, 1:W + 1]
    return jnp.transpose(out, (0, 2, 1, 3, 4)).astype(jnp.float32)


# ------------------------- pure-JAX reference -------------------------------
_PREC = lax.Precision.HIGHEST


def _ref_conv3d(x, w, b, pad):
    y = lax.conv_general_dilated(
        x, w, (1, 1, 1),
        [(pad[0], pad[0]), (pad[1], pad[1]), (pad[2], pad[2])],
        dimension_numbers=("NCDHW", "OIDHW", "NCDHW"), precision=_PREC)
    if b is not None:
        y = y + b[None, :, None, None, None]
    return y


def _ref_instnorm(x):
    mean = jnp.mean(x, axis=(2, 3, 4), keepdims=True)
    var = jnp.mean((x - mean) ** 2, axis=(2, 3, 4), keepdims=True)
    return (x - mean) * lax.rsqrt(var + EPS)


def _ref_lrelu(x):
    return jnp.where(x >= 0, x, NEG_SLOPE * x)


def _ref_forward(x, p):
    out = jnp.concatenate(
        [_ref_conv3d(x, p["conv1_1_w"], p["conv1_1_b"], (1, 1, 0)),
         _ref_conv3d(x, p["conv1_2_w"], p["conv1_2_b"], (0, 1, 1))], axis=1)
    out = _ref_lrelu(_ref_instnorm(out))
    out = _ref_conv3d(out, p["conv2_w"], p["conv2_b"], (1, 1, 0))
    out = _ref_instnorm(out)
    residual = _ref_instnorm(_ref_conv3d(x, p["down_w"], None, (0, 0, 0)))
    return _ref_lrelu(out + residual)


# ---------------------------------- main -------------------------------------
if __name__ == "__main__":
    key = jax.random.PRNGKey(0)
    N, Cin, Cout, D, H, W = 2, 4, 8, 8, 8, 8
    ks = jax.random.split(key, 8)
    params = {
        "conv1_1_w": 0.1 * jax.random.normal(ks[0], (Cout // 2, Cin, 3, 3, 1), jnp.float32),
        "conv1_1_b": 0.1 * jax.random.normal(ks[1], (Cout // 2,), jnp.float32),
        "conv1_2_w": 0.1 * jax.random.normal(ks[2], (Cout // 2, Cin, 1, 3, 3), jnp.float32),
        "conv1_2_b": 0.1 * jax.random.normal(ks[3], (Cout // 2,), jnp.float32),
        "conv2_w":   0.1 * jax.random.normal(ks[4], (Cout, Cout, 3, 3, 1), jnp.float32),
        "conv2_b":   0.1 * jax.random.normal(ks[5], (Cout,), jnp.float32),
        "down_w":    0.1 * jax.random.normal(ks[6], (Cout, Cin, 1, 1, 1), jnp.float32),
    }
    x = jax.random.normal(ks[7], (N, Cin, D, H, W), jnp.float32)

    out = jax.block_until_ready(jax.jit(mixconvblock_forward)(x, params))
    ref = jax.block_until_ready(_ref_forward(x, params))

    assert out.shape == (N, Cout, D, H, W), out.shape
    max_err = float(jnp.max(jnp.abs(out - ref)))
    # bf16 matmul operands / bf16 intermediates / bf16 final store vs a
    # HIGHEST-precision f32 reference -> loose tolerance (structural bugs
    # would produce O(1) errors).
    if not bool(jnp.allclose(out, ref, atol=6e-2, rtol=6e-2)):
        raise AssertionError(f"Pallas output mismatch, max abs err = {max_err}")
    print("KERNEL_OK")
</pallas_src>

<mosaic_0001>
module attributes {stable_mosaic.version = 11 : i64} {
  func.func @_stage1_kernel(%arg0: i32, %arg1: i32, %arg2: memref<1x1x8x640xbf16, #tpu.memory_space<vmem>>, %arg3: memref<1x1x8x640xbf16, #tpu.memory_space<vmem>>, %arg4: memref<1x1x8x640xbf16, #tpu.memory_space<vmem>>, %arg5: memref<16x72xbf16, #tpu.memory_space<vmem>>, %arg6: memref<16x72xbf16, #tpu.memory_space<vmem>>, %arg7: memref<32x8xbf16, #tpu.memory_space<vmem>>, %arg8: memref<1x384xf32, #tpu.memory_space<vmem>>, %arg9: memref<1x1x32x384xbf16, #tpu.memory_space<vmem>>, %arg10: memref<1x1x32x4xf32, #tpu.memory_space<vmem>>) attributes {dimension_semantics = [#tpu.dimension_semantics<parallel>, #tpu.dimension_semantics<parallel>], iteration_bounds = array<i64: 2, 8>, scalar_prefetch = 0 : i64, scratch_operands = 0 : i64, tpu.core_type = #tpu.core_type<tc>, window_params = [{transform_indices = @transform_0, window_bounds = array<i64: 1, 1, 8, 640>}, {transform_indices = @transform_1, window_bounds = array<i64: 1, 1, 8, 640>}, {transform_indices = @transform_2, window_bounds = array<i64: 1, 1, 8, 640>}, {pipeline_mode = #tpu.pipeline_mode<synchronous>, transform_indices = @transform_3, window_bounds = array<i64: 16, 72>}, {pipeline_mode = #tpu.pipeline_mode<synchronous>, transform_indices = @transform_4, window_bounds = array<i64: 16, 72>}, {pipeline_mode = #tpu.pipeline_mode<synchronous>, transform_indices = @transform_5, window_bounds = array<i64: 32, 8>}, {pipeline_mode = #tpu.pipeline_mode<synchronous>, transform_indices = @transform_6, window_bounds = array<i64: 1, 384>}, {transform_indices = @transform_7, window_bounds = array<i64: 1, 1, 32, 384>}, {transform_indices = @transform_8, window_bounds = array<i64: 1, 1, 32, 4>}]} {
    %c0 = arith.constant 0 : index
    %c0_0 = arith.constant 0 : index
    %c0_1 = arith.constant 0 : index
    %c0_2 = arith.constant 0 : index
    %0 = vector.load %arg2[%c0, %c0_0, %c0_1, %c0_2] : memref<1x1x8x640xbf16, #tpu.memory_space<vmem>>, vector<1x1x8x640xbf16>
    %1 = vector.shape_cast %0 : vector<1x1x8x640xbf16> to vector<8x640xbf16>
    %c0_3 = arith.constant 0 : index
    %c0_4 = arith.constant 0 : index
    %c0_5 = arith.constant 0 : index
    %c0_6 = arith.constant 0 : index
    %2 = vector.load %arg3[%c0_3, %c0_4, %c0_5, %c0_6] : memref<1x1x8x640xbf16, #tpu.memory_space<vmem>>, vector<1x1x8x640xbf16>
    %3 = vector.shape_cast %2 : vector<1x1x8x640xbf16> to vector<8x640xbf16>
    %c0_7 = arith.constant 0 : index
    %c0_8 = arith.constant 0 : index
    %c0_9 = arith.constant 0 : index
    %c0_10 = arith.constant 0 : index
    %4 = vector.load %arg4[%c0_7, %c0_8, %c0_9, %c0_10] : memref<1x1x8x640xbf16, #tpu.memory_space<vmem>>, vector<1x1x8x640xbf16>
    %5 = vector.shape_cast %4 : vector<1x1x8x640xbf16> to vector<8x640xbf16>
    %6 = vector.extract_strided_slice %1 {offsets = [0, 118], sizes = [8, 384], strides = [1, 1]} : vector<8x640xbf16> to vector<8x384xbf16>
    %7 = vector.extract_strided_slice %1 {offsets = [0, 128], sizes = [8, 384], strides = [1, 1]} : vector<8x640xbf16> to vector<8x384xbf16>
    %8 = vector.extract_strided_slice %1 {offsets = [0, 138], sizes = [8, 384], strides = [1, 1]} : vector<8x640xbf16> to vector<8x384xbf16>
    %9 = vector.extract_strided_slice %3 {offsets = [0, 118], sizes = [8, 384], strides = [1, 1]} : vector<8x640xbf16> to vector<8x384xbf16>
    %10 = vector.extract_strided_slice %3 {offsets = [0, 128], sizes = [8, 384], strides = [1, 1]} : vector<8x640xbf16> to vector<8x384xbf16>
    %11 = vector.extract_strided_slice %3 {offsets = [0, 138], sizes = [8, 384], strides = [1, 1]} : vector<8x640xbf16> to vector<8x384xbf16>
    %12 = vector.extract_strided_slice %5 {offsets = [0, 118], sizes = [8, 384], strides = [1, 1]} : vector<8x640xbf16> to vector<8x384xbf16>
    %13 = vector.extract_strided_slice %5 {offsets = [0, 128], sizes = [8, 384], strides = [1, 1]} : vector<8x640xbf16> to vector<8x384xbf16>
    %14 = vector.extract_strided_slice %5 {offsets = [0, 138], sizes = [8, 384], strides = [1, 1]} : vector<8x640xbf16> to vector<8x384xbf16>
    %c0_11 = arith.constant 0 : index
    %c0_12 = arith.constant 0 : index
    %15 = vector.load %arg5[%c0_11, %c0_12] : memref<16x72xbf16, #tpu.memory_space<vmem>>, vector<16x72xbf16>
    %16 = tpu.concatenate %6, %7, %8, %9, %10, %11, %12, %13, %14 in 0 : vector<8x384xbf16>, vector<8x384xbf16>, vector<8x384xbf16>, vector<8x384xbf16>, vector<8x384xbf16>, vector<8x384xbf16>, vector<8x384xbf16>, vector<8x384xbf16>, vector<8x384xbf16> -> vector<72x384xbf16>
    %cst = arith.constant dense<0.000000e+00> : vector<16x384xf32>
    %17 = tpu.matmul %15, %16, %cst {dimension_numbers = #tpu.dot_dimension_numbers<[1], [0], [0], [1], [0, 0, 1, 1], [], []>} : vector<16x72xbf16>, vector<72x384xbf16>, vector<16x384xf32> -> vector<16x384xf32>
    %18 = vector.extract_strided_slice %3 {offsets = [0, 117], sizes = [8, 384], strides = [1, 1]} : vector<8x640xbf16> to vector<8x384xbf16>
    %19 = vector.extract_strided_slice %3 {offsets = [0, 118], sizes = [8, 384], strides = [1, 1]} : vector<8x640xbf16> to vector<8x384xbf16>
    %20 = vector.extract_strided_slice %3 {offsets = [0, 119], sizes = [8, 384], strides = [1, 1]} : vector<8x640xbf16> to vector<8x384xbf16>
    %21 = vector.extract_strided_slice %3 {offsets = [0, 127], sizes = [8, 384], strides = [1, 1]} : vector<8x640xbf16> to vector<8x384xbf16>
    %22 = vector.extract_strided_slice %3 {offsets = [0, 128], sizes = [8, 384], strides = [1, 1]} : vector<8x640xbf16> to vector<8x384xbf16>
    %23 = vector.extract_strided_slice %3 {offsets = [0, 129], sizes = [8, 384], strides = [1, 1]} : vector<8x640xbf16> to vector<8x384xbf16>
    %24 = vector.extract_strided_slice %3 {offsets = [0, 137], sizes = [8, 384], strides = [1, 1]} : vector<8x640xbf16> to vector<8x384xbf16>
    %25 = vector.extract_strided_slice %3 {offsets = [0, 138], sizes = [8, 384], strides = [1, 1]} : vector<8x640xbf16> to vector<8x384xbf16>
    %26 = vector.extract_strided_slice %3 {offsets = [0, 139], sizes = [8, 384], strides = [1, 1]} : vector<8x640xbf16> to vector<8x384xbf16>
    %c0_13 = arith.constant 0 : index
    %c0_14 = arith.constant 0 : index
    %27 = vector.load %arg6[%c0_13, %c0_14] : memref<16x72xbf16, #tpu.memory_space<vmem>>, vector<16x72xbf16>
    %28 = tpu.concatenate %18, %19, %20, %21, %22, %23, %24, %25, %26 in 0 : vector<8x384xbf16>, vector<8x384xbf16>, vector<8x384xbf16>, vector<8x384xbf16>, vector<8x384xbf16>, vector<8x384xbf16>, vector<8x384xbf16>, vector<8x384xbf16>, vector<8x384xbf16> -> vector<72x384xbf16>
    %cst_15 = arith.constant dense<0.000000e+00> : vector<16x384xf32>
    %29 = tpu.matmul %27, %28, %cst_15 {dimension_numbers = #tpu.dot_dimension_numbers<[1], [0], [0], [1], [0, 0, 1, 1], [], []>} : vector<16x72xbf16>, vector<72x384xbf16>, vector<16x384xf32> -> vector<16x384xf32>
    %c0_16 = arith.constant 0 : index
    %c0_17 = arith.constant 0 : index
    %30 = vector.load %arg7[%c0_16, %c0_17] : memref<32x8xbf16, #tpu.memory_space<vmem>>, vector<32x8xbf16>
    %31 = vector.extract_strided_slice %3 {offsets = [0, 128], sizes = [8, 384], strides = [1, 1]} : vector<8x640xbf16> to vector<8x384xbf16>
    %cst_18 = arith.constant dense<0.000000e+00> : vector<32x384xf32>
    %32 = tpu.matmul %30, %31, %cst_18 {dimension_numbers = #tpu.dot_dimension_numbers<[1], [0], [0], [1], [0, 0, 1, 1], [], []>} : vector<32x8xbf16>, vector<8x384xbf16>, vector<32x384xf32> -> vector<32x384xf32>
    %33 = arith.truncf %17 : vector<16x384xf32> to vector<16x384xbf16>
    %c0_19 = arith.constant 0 : index
    %c0_20 = arith.constant 0 : index
    %c0_21 = arith.constant 0 : index
    %c0_22 = arith.constant 0 : index
    %34 = vector.load %arg9[%c0_19, %c0_20, %c0_21, %c0_22] : memref<1x1x32x384xbf16, #tpu.memory_space<vmem>>, vector<1x1x16x384xbf16>
    %35 = vector.shape_cast %34 : vector<1x1x16x384xbf16> to vector<16x384xbf16>
    %36 = vector.shape_cast %33 : vector<16x384xbf16> to vector<1x1x16x384xbf16>
    tpu.vector_store %arg9[%c0_19, %c0_20, %c0_21, %c0_22], %36 {strides = array<i32>} : memref<1x1x32x384xbf16, #tpu.memory_space<vmem>>, vector<1x1x16x384xbf16>,
    %37 = arith.truncf %29 : vector<16x384xf32> to vector<16x384xbf16>
    %c0_23 = arith.constant 0 : index
    %c0_24 = arith.constant 0 : index
    %c16 = arith.constant 16 : index
    %c0_25 = arith.constant 0 : index
    %38 = vector.load %arg9[%c0_23, %c0_24, %c16, %c0_25] : memref<1x1x32x384xbf16, #tpu.memory_space<vmem>>, vector<1x1x16x384xbf16>
    %39 = vector.shape_cast %38 : vector<1x1x16x384xbf16> to vector<16x384xbf16>
    %40 = vector.shape_cast %37 : vector<16x384xbf16> to vector<1x1x16x384xbf16>
    tpu.vector_store %arg9[%c0_23, %c0_24, %c16, %c0_25], %40 {strides = array<i32>} : memref<1x1x32x384xbf16, #tpu.memory_space<vmem>>, vector<1x1x16x384xbf16>,
    %c0_26 = arith.constant 0 : index
    %c0_27 = arith.constant 0 : index
    %41 = vector.load %arg8[%c0_26, %c0_27] : memref<1x384xf32, #tpu.memory_space<vmem>>, vector<1x384xf32>
    %42 = vector.broadcast %41 : vector<1x384xf32> to vector<16x384xf32>
    %43 = arith.mulf %17, %42 : vector<16x384xf32>
    %44 = vector.broadcast %41 : vector<1x384xf32> to vector<16x384xf32>
    %45 = arith.mulf %29, %44 : vector<16x384xf32>
    %46 = vector.broadcast %41 : vector<1x384xf32> to vector<32x384xf32>
    %47 = arith.mulf %32, %46 : vector<32x384xf32>
    %cst_28 = arith.constant dense<0.000000e+00> : vector<16xf32>
    %48 = vector.multi_reduction <add>, %43, %cst_28 [1] : vector<16x384xf32> to vector<16xf32>
    %49 = vector.shape_cast %48 : vector<16xf32> to vector<16x1xf32>
    %cst_29 = arith.constant dense<0.000000e+00> : vector<16xf32>
    %50 = vector.multi_reduction <add>, %45, %cst_29 [1] : vector<16x384xf32> to vector<16xf32>
    %51 = vector.shape_cast %50 : vector<16xf32> to vector<16x1xf32>
    %52 = tpu.concatenate %49, %51 in 0 : vector<16x1xf32>, vector<16x1xf32> -> vector<32x1xf32>
    %53 = arith.mulf %43, %17 : vector<16x384xf32>
    %cst_30 = arith.constant dense<0.000000e+00> : vector<16xf32>
    %54 = vector.multi_reduction <add>, %53, %cst_30 [1] : vector<16x384xf32> to vector<16xf32>
    %55 = vector.shape_cast %54 : vector<16xf32> to vector<16x1xf32>
    %56 = arith.mulf %45, %29 : vector<16x384xf32>
    %cst_31 = arith.constant dense<0.000000e+00> : vector<16xf32>
    %57 = vector.multi_reduction <add>, %56, %cst_31 [1] : vector<16x384xf32> to vector<16xf32>
    %58 = vector.shape_cast %57 : vector<16xf32> to vector<16x1xf32>
    %59 = tpu.concatenate %55, %58 in 0 : vector<16x1xf32>, vector<16x1xf32> -> vector<32x1xf32>
    %cst_32 = arith.constant dense<0.000000e+00> : vector<32xf32>
    %60 = vector.multi_reduction <add>, %47, %cst_32 [1] : vector<32x384xf32> to vector<32xf32>
    %61 = vector.shape_cast %60 : vector<32xf32> to vector<32x1xf32>
    %62 = arith.mulf %47, %32 : vector<32x384xf32>
    %cst_33 = arith.constant dense<0.000000e+00> : vector<32xf32>
    %63 = vector.multi_reduction <add>, %62, %cst_33 [1] : vector<32x384xf32> to vector<32xf32>
    %64 = vector.shape_cast %63 : vector<32xf32> to vector<32x1xf32>
    %65 = tpu.concatenate %52, %59, %61, %64 in 1 : vector<32x1xf32>, vector<32x1xf32>, vector<32x1xf32>, vector<32x1xf32> -> vector<32x4xf32>
    %c0_34 = arith.constant 0 : index
    %c0_35 = arith.constant 0 : index
    %c0_36 = arith.constant 0 : index
    %c0_37 = arith.constant 0 : index
    %66 = vector.load %arg10[%c0_34, %c0_35, %c0_36, %c0_37] : memref<1x1x32x4xf32, #tpu.memory_space<vmem>>, vector<1x1x32x4xf32>
    %67 = vector.shape_cast %66 : vector<1x1x32x4xf32> to vector<32x4xf32>
    %68 = vector.shape_cast %65 : vector<32x4xf32> to vector<1x1x32x4xf32>
    tpu.vector_store %arg10[%c0_34, %c0_35, %c0_36, %c0_37], %68 {strides = array<i32>} : memref<1x1x32x4xf32, #tpu.memory_space<vmem>>, vector<1x1x32x4xf32>,
    return
  }
  func.func @transform_0(%arg0: i32, %arg1: i32) -> (i32, i32, i32, i32) {
    %c0_i32 = arith.constant 0 : i32
    %0 = arith.addi %arg1, %c0_i32 : i32
    %c0_i32_0 = arith.constant 0 : i32
    %c0_i32_1 = arith.constant 0 : i32
    %c0_i32_2 = arith.constant 0 : i32
    return %arg0, %0, %c0_i32_0, %c0_i32_1 : i32, i32, i32, i32
  }
  func.func @transform_1(%arg0: i32, %arg1: i32) -> (i32, i32, i32, i32) {
    %c1_i32 = arith.constant 1 : i32
    %0 = arith.addi %arg1, %c1_i32 : i32
    %c0_i32 = arith.constant 0 : i32
    %c0_i32_0 = arith.constant 0 : i32
    %c0_i32_1 = arith.constant 0 : i32
    return %arg0, %0, %c0_i32, %c0_i32_0 : i32, i32, i32, i32
  }
  func.func @transform_2(%arg0: i32, %arg1: i32) -> (i32, i32, i32, i32) {
    %c2_i32 = arith.constant 2 : i32
    %0 = arith.addi %arg1, %c2_i32 : i32
    %c0_i32 = arith.constant 0 : i32
    %c0_i32_0 = arith.constant 0 : i32
    %c0_i32_1 = arith.constant 0 : i32
    return %arg0, %0, %c0_i32, %c0_i32_0 : i32, i32, i32, i32
  }
  func.func @transform_3(%arg0: i32, %arg1: i32) -> (i32, i32) {
    %c0_i32 = arith.constant 0 : i32
    %c0_i32_0 = arith.constant 0 : i32
    %c0_i32_1 = arith.constant 0 : i32
    return %c0_i32, %c0_i32_0 : i32, i32
  }
  func.func @transform_4(%arg0: i32, %arg1: i32) -> (i32, i32) {
    %c0_i32 = arith.constant 0 : i32
    %c0_i32_0 = arith.constant 0 : i32
    %c0_i32_1 = arith.constant 0 : i32
    return %c0_i32, %c0_i32_0 : i32, i32
  }
  func.func @transform_5(%arg0: i32, %arg1: i32) -> (i32, i32) {
    %c0_i32 = arith.constant 0 : i32
    %c0_i32_0 = arith.constant 0 : i32
    %c0_i32_1 = arith.constant 0 : i32
    return %c0_i32, %c0_i32_0 : i32, i32
  }
  func.func @transform_6(%arg0: i32, %arg1: i32) -> (i32, i32) {
    %c0_i32 = arith.constant 0 : i32
    %c0_i32_0 = arith.constant 0 : i32
    %c0_i32_1 = arith.constant 0 : i32
    return %c0_i32, %c0_i32_0 : i32, i32
  }
  func.func @transform_7(%arg0: i32, %arg1: i32) -> (i32, i32, i32, i32) {
    %c0_i32 = arith.constant 0 : i32
    %c0_i32_0 = arith.constant 0 : i32
    %c0_i32_1 = arith.constant 0 : i32
    return %arg0, %arg1, %c0_i32, %c0_i32_0 : i32, i32, i32, i32
  }
  func.func @transform_8(%arg0: i32, %arg1: i32) -> (i32, i32, i32, i32) {
    %c0_i32 = arith.constant 0 : i32
    %c0_i32_0 = arith.constant 0 : i32
    %c0_i32_1 = arith.constant 0 : i32
    return %arg0, %arg1, %c0_i32, %c0_i32_0 : i32, i32, i32, i32
  }
}

module attributes {stable_mosaic.version = 11 : i64} {
  func.func @_finalize_kernel(%arg0: i32, %arg1: i32, %arg2: memref<1x1x32x128xbf16, #tpu.memory_space<vmem>>, %arg3: memref<1x1x8x640xbf16, #tpu.memory_space<vmem>>, %arg4: memref<32x8xbf16, #tpu.memory_space<vmem>>, %arg5: memref<1x32x2xf32, #tpu.memory_space<vmem>>, %arg6: memref<1x32x2xf32, #tpu.memory_space<vmem>>, %arg7: memref<1x1x32x128xbf16, #tpu.memory_space<vmem>>) attributes {dimension_semantics = [#tpu.dimension_semantics<parallel>, #tpu.dimension_semantics<parallel>], iteration_bounds = array<i64: 2, 8>, scalar_prefetch = 0 : i64, scratch_operands = 0 : i64, tpu.core_type = #tpu.core_type<tc>, window_params = [{transform_indices = @transform_0, window_bounds = array<i64: 1, 1, 32, 128>}, {transform_indices = @transform_1, window_bounds = array<i64: 1, 1, 8, 640>}, {pipeline_mode = #tpu.pipeline_mode<synchronous>, transform_indices = @transform_2, window_bounds = array<i64: 32, 8>}, {transform_indices = @transform_3, window_bounds = array<i64: 1, 32, 2>}, {transform_indices = @transform_4, window_bounds = array<i64: 1, 32, 2>}, {transform_indices = @transform_5, window_bounds = array<i64: 1, 1, 32, 128>}]} {
    %c0 = arith.constant 0 : index
    %c0_0 = arith.constant 0 : index
    %c0_1 = arith.constant 0 : index
    %c0_2 = arith.constant 0 : index
    %0 = vector.load %arg2[%c0, %c0_0, %c0_1, %c0_2] : memref<1x1x32x128xbf16, #tpu.memory_space<vmem>>, vector<1x1x32x128xbf16>
    %1 = vector.shape_cast %0 : vector<1x1x32x128xbf16> to vector<32x128xbf16>
    %2 = arith.extf %1 : vector<32x128xbf16> to vector<32x128xf32>
    %c0_3 = arith.constant 0 : index
    %c0_4 = arith.constant 0 : index
    %c0_5 = arith.constant 0 : index
    %3 = vector.load %arg5[%c0_3, %c0_4, %c0_5] : memref<1x32x2xf32, #tpu.memory_space<vmem>>, vector<1x32x1xf32>
    %4 = vector.shape_cast %3 : vector<1x32x1xf32> to vector<32x1xf32>
    %5 = vector.broadcast %4 : vector<32x1xf32> to vector<32x128xf32>
    %6 = arith.subf %2, %5 : vector<32x128xf32>
    %c0_6 = arith.constant 0 : index
    %c0_7 = arith.constant 0 : index
    %c1 = arith.constant 1 : index
    %7 = vector.load %arg5[%c0_6, %c0_7, %c1] : memref<1x32x2xf32, #tpu.memory_space<vmem>>, vector<1x32x1xf32>
    %8 = vector.shape_cast %7 : vector<1x32x1xf32> to vector<32x1xf32>
    %9 = vector.broadcast %8 : vector<32x1xf32> to vector<32x128xf32>
    %10 = arith.mulf %6, %9 : vector<32x128xf32>
    %c0_8 = arith.constant 0 : index
    %c0_9 = arith.constant 0 : index
    %11 = vector.load %arg4[%c0_8, %c0_9] : memref<32x8xbf16, #tpu.memory_space<vmem>>, vector<32x8xbf16>
    %c0_10 = arith.constant 0 : index
    %c0_11 = arith.constant 0 : index
    %c0_12 = arith.constant 0 : index
    %c256 = arith.constant 256 : index
    %12 = vector.load %arg3[%c0_10, %c0_11, %c0_12, %c256] : memref<1x1x8x640xbf16, #tpu.memory_space<vmem>>, vector<1x1x8x128xbf16>
    %13 = vector.shape_cast %12 : vector<1x1x8x128xbf16> to vector<8x128xbf16>
    %cst = arith.constant dense<0.000000e+00> : vector<32x128xf32>
    %14 = tpu.matmul %11, %13, %cst {dimension_numbers = #tpu.dot_dimension_numbers<[1], [0], [0], [1], [0, 0, 1, 1], [], []>} : vector<32x8xbf16>, vector<8x128xbf16>, vector<32x128xf32> -> vector<32x128xf32>
    %c0_13 = arith.constant 0 : index
    %c0_14 = arith.constant 0 : index
    %c0_15 = arith.constant 0 : index
    %15 = vector.load %arg6[%c0_13, %c0_14, %c0_15] : memref<1x32x2xf32, #tpu.memory_space<vmem>>, vector<1x32x1xf32>
    %16 = vector.shape_cast %15 : vector<1x32x1xf32> to vector<32x1xf32>
    %17 = vector.broadcast %16 : vector<32x1xf32> to vector<32x128xf32>
    %18 = arith.subf %14, %17 : vector<32x128xf32>
    %c0_16 = arith.constant 0 : index
    %c0_17 = arith.constant 0 : index
    %c1_18 = arith.constant 1 : index
    %19 = vector.load %arg6[%c0_16, %c0_17, %c1_18] : memref<1x32x2xf32, #tpu.memory_space<vmem>>, vector<1x32x1xf32>
    %20 = vector.shape_cast %19 : vector<1x32x1xf32> to vector<32x1xf32>
    %21 = vector.broadcast %20 : vector<32x1xf32> to vector<32x128xf32>
    %22 = arith.mulf %18, %21 : vector<32x128xf32>
    %23 = arith.addf %10, %22 : vector<32x128xf32>
    %cst_19 = arith.constant 0.000000e+00 : f32
    %24 = vector.broadcast %cst_19 : f32 to vector<32x128xf32>
    %25 = arith.cmpf oge, %23, %24 : vector<32x128xf32>
    %cst_20 = arith.constant 0.00999999977 : f32
    %26 = vector.broadcast %cst_20 : f32 to vector<32x128xf32>
    %27 = arith.mulf %26, %23 : vector<32x128xf32>
    %28 = arith.select %25, %23, %27 : vector<32x128xi1>, vector<32x128xf32>
    %29 = arith.truncf %28 : vector<32x128xf32> to vector<32x128xbf16>
    %c0_21 = arith.constant 0 : index
    %c0_22 = arith.constant 0 : index
    %c0_23 = arith.constant 0 : index
    %c0_24 = arith.constant 0 : index
    %30 = vector.load %arg7[%c0_21, %c0_22, %c0_23, %c0_24] : memref<1x1x32x128xbf16, #tpu.memory_space<vmem>>, vector<1x1x32x128xbf16>
    %31 = vector.shape_cast %30 : vector<1x1x32x128xbf16> to vector<32x128xbf16>
    %32 = vector.shape_cast %29 : vector<32x128xbf16> to vector<1x1x32x128xbf16>
    tpu.vector_store %arg7[%c0_21, %c0_22, %c0_23, %c0_24], %32 {strides = array<i32>} : memref<1x1x32x128xbf16, #tpu.memory_space<vmem>>, vector<1x1x32x128xbf16>,
    return
  }
  func.func @transform_0(%arg0: i32, %arg1: i32) -> (i32, i32, i32, i32) {
    %c0_i32 = arith.constant 0 : i32
    %c0_i32_0 = arith.constant 0 : i32
    %c0_i32_1 = arith.constant 0 : i32
    return %arg0, %arg1, %c0_i32, %c0_i32_0 : i32, i32, i32, i32
  }
  func.func @transform_1(%arg0: i32, %arg1: i32) -> (i32, i32, i32, i32) {
    %c1_i32 = arith.constant 1 : i32
    %0 = arith.addi %arg1, %c1_i32 : i32
    %c0_i32 = arith.constant 0 : i32
    %c0_i32_0 = arith.constant 0 : i32
    %c0_i32_1 = arith.constant 0 : i32
    return %arg0, %0, %c0_i32, %c0_i32_0 : i32, i32, i32, i32
  }
  func.func @transform_2(%arg0: i32, %arg1: i32) -> (i32, i32) {
    %c0_i32 = arith.constant 0 : i32
    %c0_i32_0 = arith.constant 0 : i32
    %c0_i32_1 = arith.constant 0 : i32
    return %c0_i32, %c0_i32_0 : i32, i32
  }
  func.func @transform_3(%arg0: i32, %arg1: i32) -> (i32, i32, i32) {
    %c0_i32 = arith.constant 0 : i32
    %c0_i32_0 = arith.constant 0 : i32
    %c0_i32_1 = arith.constant 0 : i32
    return %arg0, %c0_i32, %c0_i32_0 : i32, i32, i32
  }
  func.func @transform_4(%arg0: i32, %arg1: i32) -> (i32, i32, i32) {
    %c0_i32 = arith.constant 0 : i32
    %c0_i32_0 = arith.constant 0 : i32
    %c0_i32_1 = arith.constant 0 : i32
    return %arg0, %c0_i32, %c0_i32_0 : i32, i32, i32
  }
  func.func @transform_5(%arg0: i32, %arg1: i32) -> (i32, i32, i32, i32) {
    %c0_i32 = arith.constant 0 : i32
    %c0_i32_0 = arith.constant 0 : i32
    %c0_i32_1 = arith.constant 0 : i32
    return %arg0, %arg1, %c0_i32, %c0_i32_0 : i32, i32, i32, i32
  }
}

module attributes {stable_mosaic.version = 11 : i64} {
  func.func @_stage2_kernel(%arg0: i32, %arg1: i32, %arg2: memref<1x1x32x384xbf16, #tpu.memory_space<vmem>>, %arg3: memref<1x32x2xf32, #tpu.memory_space<vmem>>, %arg4: memref<3x32x96xbf16, #tpu.memory_space<vmem>>, %arg5: memref<1x384xf32, #tpu.memory_space<vmem>>, %arg6: memref<1x1x32x128xbf16, #tpu.memory_space<vmem>>, %arg7: memref<1x32x2xf32, #tpu.memory_space<vmem>>, %arg8: memref<3x96x128xbf16, #tpu.memory_space<vmem>>) attributes {dimension_semantics = [#tpu.dimension_semantics<parallel>, #tpu.dimension_semantics<arbitrary>], iteration_bounds = array<i64: 2, 9>, scalar_prefetch = 0 : i64, scratch_operands = 1 : i64, tpu.core_type = #tpu.core_type<tc>, window_params = [{transform_indices = @transform_0, window_bounds = array<i64: 1, 1, 32, 384>}, {transform_indices = @transform_1, window_bounds = array<i64: 1, 32, 2>}, {pipeline_mode = #tpu.pipeline_mode<synchronous>, transform_indices = @transform_2, window_bounds = array<i64: 3, 32, 96>}, {pipeline_mode = #tpu.pipeline_mode<synchronous>, transform_indices = @transform_3, window_bounds = array<i64: 1, 384>}, {transform_indices = @transform_4, window_bounds = array<i64: 1, 1, 32, 128>}, {transform_indices = @transform_5, window_bounds = array<i64: 1, 32, 2>}]} {
    %c0_i32 = arith.constant 0 : i32
    %0 = arith.cmpi eq, %arg1, %c0_i32 : i32
    %1 = arith.extui %0 : i1 to i32
    %c0_i32_0 = arith.constant 0 : i32
    %2 = arith.cmpi ne, %1, %c0_i32_0 : i32
    scf.if %2 {
      %cst_32 = arith.constant 0.000000e+00 : bf16
      %48 = vector.broadcast %cst_32 : bf16 to vector<3x96x128xbf16>
      %c0_33 = arith.constant 0 : index
      %c0_34 = arith.constant 0 : index
      %c0_35 = arith.constant 0 : index
      %49 = vector.load %arg8[%c0_33, %c0_34, %c0_35] : memref<3x96x128xbf16, #tpu.memory_space<vmem>>, vector<3x96x128xbf16>
      tpu.vector_store %arg8[%c0_33, %c0_34, %c0_35], %48 {strides = array<i32>} : memref<3x96x128xbf16, #tpu.memory_space<vmem>>, vector<3x96x128xbf16>,
      %cst_36 = arith.constant 0.000000e+00 : f32
      %50 = vector.broadcast %cst_36 : f32 to vector<32x2xf32>
      %c0_37 = arith.constant 0 : index
      %c0_38 = arith.constant 0 : index
      %c0_39 = arith.constant 0 : index
      %51 = vector.load %arg7[%c0_37, %c0_38, %c0_39] : memref<1x32x2xf32, #tpu.memory_space<vmem>>, vector<1x32x2xf32>
      %52 = vector.shape_cast %51 : vector<1x32x2xf32> to vector<32x2xf32>
      %53 = vector.shape_cast %50 : vector<32x2xf32> to vector<1x32x2xf32>
      tpu.vector_store %arg7[%c0_37, %c0_38, %c0_39], %53 {strides = array<i32>} : memref<1x32x2xf32, #tpu.memory_space<vmem>>, vector<1x32x2xf32>,
    } else {
    }
    %c3_i32 = arith.constant 3 : i32
    %3 = arith.remsi %arg1, %c3_i32 : i32
    %c8_i32 = arith.constant 8 : i32
    %4 = arith.cmpi slt, %arg1, %c8_i32 : i32
    %5 = arith.extui %4 : i1 to i32
    %c0_i32_1 = arith.constant 0 : i32
    %6 = arith.cmpi ne, %5, %c0_i32_1 : i32
    scf.if %6 {
      %c0_32 = arith.constant 0 : index
      %c0_33 = arith.constant 0 : index
      %c0_34 = arith.constant 0 : index
      %48 = vector.load %arg3[%c0_32, %c0_33, %c0_34] : memref<1x32x2xf32, #tpu.memory_space<vmem>>, vector<1x32x1xf32>
      %49 = vector.shape_cast %48 : vector<1x32x1xf32> to vector<32x1xf32>
      %c0_35 = arith.constant 0 : index
      %c0_36 = arith.constant 0 : index
      %c1_37 = arith.constant 1 : index
      %50 = vector.load %arg3[%c0_35, %c0_36, %c1_37] : memref<1x32x2xf32, #tpu.memory_space<vmem>>, vector<1x32x1xf32>
      %51 = vector.shape_cast %50 : vector<1x32x1xf32> to vector<32x1xf32>
      %c0_38 = arith.constant 0 : index
      %c0_39 = arith.constant 0 : index
      %c0_40 = arith.constant 0 : index
      %c0_41 = arith.constant 0 : index
      %52 = vector.load %arg2[%c0_38, %c0_39, %c0_40, %c0_41] : memref<1x1x32x384xbf16, #tpu.memory_space<vmem>>, vector<1x1x32x384xbf16>
      %53 = vector.shape_cast %52 : vector<1x1x32x384xbf16> to vector<32x384xbf16>
      %54 = arith.extf %53 : vector<32x384xbf16> to vector<32x384xf32>
      %c0_42 = arith.constant 0 : index
      %c0_43 = arith.constant 0 : index
      %55 = vector.load %arg5[%c0_42, %c0_43] : memref<1x384xf32, #tpu.memory_space<vmem>>, vector<1x384xf32>
      %cst_44 = arith.constant 5.000000e-01 : f32
      %56 = vector.broadcast %cst_44 : f32 to vector<1x384xf32>
      %57 = arith.cmpf ogt, %55, %56 : vector<1x384xf32>
      %58 = vector.broadcast %49 : vector<32x1xf32> to vector<32x384xf32>
      %59 = arith.subf %54, %58 : vector<32x384xf32>
      %60 = vector.broadcast %51 : vector<32x1xf32> to vector<32x384xf32>
      %61 = arith.mulf %59, %60 : vector<32x384xf32>
      %cst_45 = arith.constant 0.000000e+00 : f32
      %62 = vector.broadcast %cst_45 : f32 to vector<32x384xf32>
      %63 = arith.cmpf oge, %61, %62 : vector<32x384xf32>
      %cst_46 = arith.constant 0.00999999977 : f32
      %64 = vector.broadcast %cst_46 : f32 to vector<32x384xf32>
      %65 = arith.mulf %64, %61 : vector<32x384xf32>
      %66 = arith.select %63, %61, %65 : vector<32x384xi1>, vector<32x384xf32>
      %cst_47 = arith.constant 0.000000e+00 : f32
      %67 = vector.shape_cast %57 : vector<1x384xi1> to vector<1x384xi1>
      %68 = vector.broadcast %67 : vector<1x384xi1> to vector<32x384xi1>
      %69 = vector.broadcast %cst_47 : f32 to vector<32x384xf32>
      %70 = arith.select %68, %66, %69 : vector<32x384xi1>, vector<32x384xf32>
      %71 = arith.truncf %70 : vector<32x384xf32> to vector<32x384xbf16>
      %72 = vector.extract_strided_slice %71 {offsets = [0, 118], sizes = [32, 128], strides = [1, 1]} : vector<32x384xbf16> to vector<32x128xbf16>
      %73 = vector.extract_strided_slice %71 {offsets = [0, 128], sizes = [32, 128], strides = [1, 1]} : vector<32x384xbf16> to vector<32x128xbf16>
      %74 = vector.extract_strided_slice %71 {offsets = [0, 138], sizes = [32, 128], strides = [1, 1]} : vector<32x384xbf16> to vector<32x128xbf16>
      %75 = tpu.concatenate %72, %73, %74 in 0 : vector<32x128xbf16>, vector<32x128xbf16>, vector<32x128xbf16> -> vector<96x128xbf16>
      %76 = arith.index_cast %3 : i32 to index
      %c0_48 = arith.constant 0 : index
      %c0_49 = arith.constant 0 : index
      %77 = vector.load %arg8[%76, %c0_48, %c0_49] : memref<3x96x128xbf16, #tpu.memory_space<vmem>>, vector<1x96x128xbf16>
      %78 = vector.shape_cast %77 : vector<1x96x128xbf16> to vector<96x128xbf16>
      %79 = vector.shape_cast %75 : vector<96x128xbf16> to vector<1x96x128xbf16>
      tpu.vector_store %arg8[%76, %c0_48, %c0_49], %79 {strides = array<i32>} : memref<3x96x128xbf16, #tpu.memory_space<vmem>>, vector<1x96x128xbf16>,
    } else {
    }
    %c8_i32_2 = arith.constant 8 : i32
    %7 = arith.cmpi eq, %arg1, %c8_i32_2 : i32
    %8 = arith.extui %7 : i1 to i32
    %c0_i32_3 = arith.constant 0 : i32
    %9 = arith.cmpi ne, %8, %c0_i32_3 : i32
    scf.if %9 {
      %cst_32 = arith.constant 0.000000e+00 : bf16
      %48 = vector.broadcast %cst_32 : bf16 to vector<96x128xbf16>
      %49 = arith.index_cast %3 : i32 to index
      %c0_33 = arith.constant 0 : index
      %c0_34 = arith.constant 0 : index
      %50 = vector.load %arg8[%49, %c0_33, %c0_34] : memref<3x96x128xbf16, #tpu.memory_space<vmem>>, vector<1x96x128xbf16>
      %51 = vector.shape_cast %50 : vector<1x96x128xbf16> to vector<96x128xbf16>
      %52 = vector.shape_cast %48 : vector<96x128xbf16> to vector<1x96x128xbf16>
      tpu.vector_store %arg8[%49, %c0_33, %c0_34], %52 {strides = array<i32>} : memref<3x96x128xbf16, #tpu.memory_space<vmem>>, vector<1x96x128xbf16>,
    } else {
    }
    %cst = arith.constant 0.000000e+00 : f32
    %10 = vector.broadcast %cst : f32 to vector<32x128xf32>
    %c0_i32_4 = arith.constant 0 : i32
    %11 = arith.addi %arg1, %c0_i32_4 : i32
    %c1_i32 = arith.constant 1 : i32
    %12 = arith.addi %11, %c1_i32 : i32
    %c3_i32_5 = arith.constant 3 : i32
    %13 = arith.remsi %12, %c3_i32_5 : i32
    %c0 = arith.constant 0 : index
    %c0_6 = arith.constant 0 : index
    %c0_7 = arith.constant 0 : index
    %14 = vector.load %arg4[%c0, %c0_6, %c0_7] : memref<3x32x96xbf16, #tpu.memory_space<vmem>>, vector<1x32x96xbf16>
    %15 = vector.shape_cast %14 : vector<1x32x96xbf16> to vector<32x96xbf16>
    %16 = arith.index_cast %13 : i32 to index
    %c0_8 = arith.constant 0 : index
    %c0_9 = arith.constant 0 : index
    %17 = vector.load %arg8[%16, %c0_8, %c0_9] : memref<3x96x128xbf16, #tpu.memory_space<vmem>>, vector<1x96x128xbf16>
    %18 = vector.shape_cast %17 : vector<1x96x128xbf16> to vector<96x128xbf16>
    %cst_10 = arith.constant dense<0.000000e+00> : vector<32x128xf32>
    %19 = tpu.matmul %15, %18, %cst_10 {dimension_numbers = #tpu.dot_dimension_numbers<[1], [0], [0], [1], [0, 0, 1, 1], [], []>} : vector<32x96xbf16>, vector<96x128xbf16>, vector<32x128xf32> -> vector<32x128xf32>
    %20 = arith.addf %10, %19 : vector<32x128xf32>
    %c1_i32_11 = arith.constant 1 : i32
    %21 = arith.addi %arg1, %c1_i32_11 : i32
    %c1_i32_12 = arith.constant 1 : i32
    %22 = arith.addi %21, %c1_i32_12 : i32
    %c3_i32_13 = arith.constant 3 : i32
    %23 = arith.remsi %22, %c3_i32_13 : i32
    %c1 = arith.constant 1 : index
    %c0_14 = arith.constant 0 : index
    %c0_15 = arith.constant 0 : index
    %24 = vector.load %arg4[%c1, %c0_14, %c0_15] : memref<3x32x96xbf16, #tpu.memory_space<vmem>>, vector<1x32x96xbf16>
    %25 = vector.shape_cast %24 : vector<1x32x96xbf16> to vector<32x96xbf16>
    %26 = arith.index_cast %23 : i32 to index
    %c0_16 = arith.constant 0 : index
    %c0_17 = arith.constant 0 : index
    %27 = vector.load %arg8[%26, %c0_16, %c0_17] : memref<3x96x128xbf16, #tpu.memory_space<vmem>>, vector<1x96x128xbf16>
    %28 = vector.shape_cast %27 : vector<1x96x128xbf16> to vector<96x128xbf16>
    %cst_18 = arith.constant dense<0.000000e+00> : vector<32x128xf32>
    %29 = tpu.matmul %25, %28, %cst_18 {dimension_numbers = #tpu.dot_dimension_numbers<[1], [0], [0], [1], [0, 0, 1, 1], [], []>} : vector<32x96xbf16>, vector<96x128xbf16>, vector<32x128xf32> -> vector<32x128xf32>
    %30 = arith.addf %20, %29 : vector<32x128xf32>
    %c2_i32 = arith.constant 2 : i32
    %31 = arith.addi %arg1, %c2_i32 : i32
    %c1_i32_19 = arith.constant 1 : i32
    %32 = arith.addi %31, %c1_i32_19 : i32
    %c3_i32_20 = arith.constant 3 : i32
    %33 = arith.remsi %32, %c3_i32_20 : i32
    %c2 = arith.constant 2 : index
    %c0_21 = arith.constant 0 : index
    %c0_22 = arith.constant 0 : index
    %34 = vector.load %arg4[%c2, %c0_21, %c0_22] : memref<3x32x96xbf16, #tpu.memory_space<vmem>>, vector<1x32x96xbf16>
    %35 = vector.shape_cast %34 : vector<1x32x96xbf16> to vector<32x96xbf16>
    %36 = arith.index_cast %33 : i32 to index
    %c0_23 = arith.constant 0 : index
    %c0_24 = arith.constant 0 : index
    %37 = vector.load %arg8[%36, %c0_23, %c0_24] : memref<3x96x128xbf16, #tpu.memory_space<vmem>>, vector<1x96x128xbf16>
    %38 = vector.shape_cast %37 : vector<1x96x128xbf16> to vector<96x128xbf16>
    %cst_25 = arith.constant dense<0.000000e+00> : vector<32x128xf32>
    %39 = tpu.matmul %35, %38, %cst_25 {dimension_numbers = #tpu.dot_dimension_numbers<[1], [0], [0], [1], [0, 0, 1, 1], [], []>} : vector<32x96xbf16>, vector<96x128xbf16>, vector<32x128xf32> -> vector<32x128xf32>
    %40 = arith.addf %30, %39 : vector<32x128xf32>
    %41 = arith.truncf %40 : vector<32x128xf32> to vector<32x128xbf16>
    %c0_26 = arith.constant 0 : index
    %c0_27 = arith.constant 0 : index
    %c0_28 = arith.constant 0 : index
    %c0_29 = arith.constant 0 : index
    %42 = vector.load %arg6[%c0_26, %c0_27, %c0_28, %c0_29] : memref<1x1x32x128xbf16, #tpu.memory_space<vmem>>, vector<1x1x32x128xbf16>
    %43 = vector.shape_cast %42 : vector<1x1x32x128xbf16> to vector<32x128xbf16>
    %44 = vector.shape_cast %41 : vector<32x128xbf16> to vector<1x1x32x128xbf16>
    tpu.vector_store %arg6[%c0_26, %c0_27, %c0_28, %c0_29], %44 {strides = array<i32>} : memref<1x1x32x128xbf16, #tpu.memory_space<vmem>>, vector<1x1x32x128xbf16>,
    %c0_i32_30 = arith.constant 0 : i32
    %45 = arith.cmpi sgt, %arg1, %c0_i32_30 : i32
    %46 = arith.extui %45 : i1 to i32
    %c0_i32_31 = arith.constant 0 : i32
    %47 = arith.cmpi ne, %46, %c0_i32_31 : i32
    scf.if %47 {
      %c0_32 = arith.constant 0 : index
      %c128 = arith.constant 128 : index
      %48 = vector.load %arg5[%c0_32, %c128] : memref<1x384xf32, #tpu.memory_space<vmem>>, vector<1x128xf32>
      %49 = vector.broadcast %48 : vector<1x128xf32> to vector<32x128xf32>
      %50 = arith.mulf %40, %49 : vector<32x128xf32>
      %c0_33 = arith.constant 0 : index
      %c0_34 = arith.constant 0 : index
      %c0_35 = arith.constant 0 : index
      %51 = vector.load %arg7[%c0_33, %c0_34, %c0_35] : memref<1x32x2xf32, #tpu.memory_space<vmem>>, vector<1x32x2xf32>
      %52 = vector.shape_cast %51 : vector<1x32x2xf32> to vector<32x2xf32>
      %cst_36 = arith.constant dense<0.000000e+00> : vector<32xf32>
      %53 = vector.multi_reduction <add>, %50, %cst_36 [1] : vector<32x128xf32> to vector<32xf32>
      %54 = vector.shape_cast %53 : vector<32xf32> to vector<32x1xf32>
      %55 = arith.mulf %50, %40 : vector<32x128xf32>
      %cst_37 = arith.constant dense<0.000000e+00> : vector<32xf32>
      %56 = vector.multi_reduction <add>, %55, %cst_37 [1] : vector<32x128xf32> to vector<32xf32>
      %57 = vector.shape_cast %56 : vector<32xf32> to vector<32x1xf32>
      %58 = tpu.concatenate %54, %57 in 1 : vector<32x1xf32>, vector<32x1xf32> -> vector<32x2xf32>
      %59 = arith.addf %52, %58 : vector<32x2xf32>
      %c0_38 = arith.constant 0 : index
      %c0_39 = arith.constant 0 : index
      %c0_40 = arith.constant 0 : index
      %60 = vector.load %arg7[%c0_38, %c0_39, %c0_40] : memref<1x32x2xf32, #tpu.memory_space<vmem>>, vector<1x32x2xf32>
      %61 = vector.shape_cast %60 : vector<1x32x2xf32> to vector<32x2xf32>
      %62 = vector.shape_cast %59 : vector<32x2xf32> to vector<1x32x2xf32>
      tpu.vector_store %arg7[%c0_38, %c0_39, %c0_40], %62 {strides = array<i32>} : memref<1x32x2xf32, #tpu.memory_space<vmem>>, vector<1x32x2xf32>,
    } else {
    }
    return
  }
  func.func @transform_0(%arg0: i32, %arg1: i32) -> (i32, i32, i32, i32) {
    %c7_i32 = arith.constant 7 : i32
    %0 = arith.minsi %arg1, %c7_i32 : i32
    %c0_i32 = arith.constant 0 : i32
    %c0_i32_0 = arith.constant 0 : i32
    %c0_i32_1 = arith.constant 0 : i32
    return %arg0, %0, %c0_i32, %c0_i32_0 : i32, i32, i32, i32
  }
  func.func @transform_1(%arg0: i32, %arg1: i32) -> (i32, i32, i32) {
    %c0_i32 = arith.constant 0 : i32
    %c0_i32_0 = arith.constant 0 : i32
    %c0_i32_1 = arith.constant 0 : i32
    return %arg0, %c0_i32, %c0_i32_0 : i32, i32, i32
  }
  func.func @transform_2(%arg0: i32, %arg1: i32) -> (i32, i32, i32) {
    %c0_i32 = arith.constant 0 : i32
    %c0_i32_0 = arith.constant 0 : i32
    %c0_i32_1 = arith.constant 0 : i32
    %c0_i32_2 = arith.constant 0 : i32
    return %c0_i32, %c0_i32_0, %c0_i32_1 : i32, i32, i32
  }
  func.func @transform_3(%arg0: i32, %arg1: i32) -> (i32, i32) {
    %c0_i32 = arith.constant 0 : i32
    %c0_i32_0 = arith.constant 0 : i32
    %c0_i32_1 = arith.constant 0 : i32
    return %c0_i32, %c0_i32_0 : i32, i32
  }
  func.func @transform_4(%arg0: i32, %arg1: i32) -> (i32, i32, i32, i32) {
    %c1_i32 = arith.constant 1 : i32
    %0 = arith.subi %arg1, %c1_i32 : i32
    %c0_i32 = arith.constant 0 : i32
    %1 = arith.maxsi %0, %c0_i32 : i32
    %c0_i32_0 = arith.constant 0 : i32
    %c0_i32_1 = arith.constant 0 : i32
    %c0_i32_2 = arith.constant 0 : i32
    return %arg0, %1, %c0_i32_0, %c0_i32_1 : i32, i32, i32, i32
  }
  func.func @transform_5(%arg0: i32, %arg1: i32) -> (i32, i32, i32) {
    %c0_i32 = arith.constant 0 : i32
    %c0_i32_0 = arith.constant 0 : i32
    %c0_i32_1 = arith.constant 0 : i32
    return %arg0, %c0_i32, %c0_i32_0 : i32, i32, i32
  }
}

</mosaic_0001>

<llo_original>
// kernel: mixconvblock_forward.3
$region0: #{mixconvblock_forward.3}
  #allocation0 [shape = 'u32[]', space=smem, size = 0x4, offset = 0x4, fixed_abs, tag = 'smem constant byte address 0x4 - core index']
  #allocation1 [shape = 'u32[144,128]{1,0:T(1,128)}', space=vmem, size = 0x12000, scoped, tag = 'internal scratch']
  %s0 = inlined_call_operand.vmem [shape: bf16[2,10,8,640], index: 0, kind: input, shape index: {}, may-alias: {0,1,2}]
  %s1 = inlined_call_operand.vmem [shape: bf16[2,10,8,640], index: 1, kind: input, shape index: {}, may-alias: {0,1,2}]
  %s2 = inlined_call_operand.vmem [shape: bf16[2,10,8,640], index: 2, kind: input, shape index: {}, may-alias: {0,1,2}]
  %s3 = inlined_call_operand.vmem [shape: bf16[16,72], index: 3, kind: input, shape index: {}]
  %s4 = inlined_call_operand.vmem [shape: bf16[16,72], index: 4, kind: input, shape index: {}]
  %s5 = inlined_call_operand.vmem [shape: bf16[32,8], index: 5, kind: input, shape index: {}]
  %s6 = inlined_call_operand.vmem [shape: f32[1,384], index: 6, kind: input, shape index: {}]
  %s7 = inlined_call_operand.vmem [shape: bf16[2,8,32,384], index: 7, kind: output, shape index: {0}]
  %s8 = inlined_call_operand.vmem [shape: f32[2,8,32,4], index: 8, kind: output, shape index: {1}]
  %9 = xla_tuple %s7, %s8
  %s10 = sld [smem:[#allocation0]]
  $region69: #{mixconvblock_forward.3} parent=0
    _
  %s12 = ssub.s32 1, %s10
  %s13 = scalar_select 0, %s12, %s10
  loop: start=0, step=1, limit=18
  $region2: #{mixconvblock_forward.3} parent=0 // loop_pre_header
    _
  $region3: #{mixconvblock_forward.3} parent=0 // loop_header
    %s15 = sphi 0, %s19
    %p16 = scmp.ge.s32.totalorder %s15, 18
    %s22 = sphi 0, %s34
    %s23 = sphi 0, %s30
    %s24 = sphi 0, %s22
    %s25 = sphi 0, %s23
    %s26 = sphi 0, %s24
    %s27 = sphi 0, %s25
    %s39 = sphi 0, %s41
    %s42 = sphi 0, %s39
    %s43 = sphi 0, %s42
    %s59 = sphi 0, %s43
    %s69 = sphi 0, %s71
    %s72 = sphi 0, %s69
    %s73 = sphi 0, %s72
    %s89 = sphi 0, %s73
    %s99 = sphi 0, %s101
    %s102 = sphi 0, %s99
    %s103 = sphi 0, %s102
    %s119 = sphi 0, %s103
    %s123 = sphi 0, %s123
    %s125 = sphi 0, %s123
    %s126 = sphi 0, %s125
    %s140 = sphi 0, %s126
    %s144 = sphi 0, %s144
    %s146 = sphi 0, %s144
    %s147 = sphi 0, %s146
    %s161 = sphi 0, %s147
    %s165 = sphi 0, %s165
    %s167 = sphi 0, %s165
    %s168 = sphi 0, %s167
    %s182 = sphi 0, %s168
    %s186 = sphi 0, %s186
    %s188 = sphi 0, %s186
    %s189 = sphi 0, %s188
    %s203 = sphi 0, %s189
    %s211 = sphi 0, %s213
    %s214 = sphi 0, %s211
    %s215 = sphi 0, %s214
    %s231 = sphi 0, %s215
    %s239 = sphi 0, %s241
    %s242 = sphi 0, %s239
    %s243 = sphi 0, %s242
    %s259 = sphi 0, %s243
  $region4: #{mixconvblock_forward.3} parent=0 // loop_header_branch
    %18 = sbr.rel (%p16) target = $region8
  $region5: #{mixconvblock_forward.3} parent=0 // loop_body
    %s20 = ssub.s32 %s15, 1
    %s21 = ssub.s32 %s15, 2
    %s28 = sadd.s32 1, %s23
    %p29 = scmp.ge.s32.totalorder %s28, 8
    %s30 = scalar_select %p29, 0, %s28
    %s31 = sadd.s32 1, %s22
    %s32 = scalar_select %p29, %s31, %s22
    %p33 = scmp.ge.s32.totalorder %s32, 2
    %s34 = scalar_select %p33, 0, %s32
    %s35 = ssub.s32 %s22, %s34
    %s36 = ssub.s32 %s23, %s30
    %s37 = sor.u32 %s35, %s36
    %p38 = scmp.eq.s32.totalorder %s37, 0
    %s40 = sadd.s32 %s39, 1
    %s41 = scalar_select %p38, %s39, %s40
    %p44 = pneg %p38
    %p45 = scmp.eq.s32.totalorder %s15, 15
    %p46 = por %p44, %p45
    %p47 = scmp.ne.s32.totalorder %s39, %s42
    %p48 = scmp.eq.s32.totalorder %s15, 0
    %p49 = por %p47, %p48
    %p50 = scmp.ne.s32.totalorder %s39, %s42
    %p51 = scmp.eq.s32.totalorder %s20, 15
    %p52 = por %p50, %p51
    %p53 = scmp.ne.s32.totalorder %s42, %s43
    %p54 = scmp.eq.s32.totalorder %s20, 0
    %p55 = por %p53, %p54
    %p56 = scmp.ne.s32.totalorder %s42, %s43
    %p57 = scmp.eq.s32.totalorder %s21, 15
    %p58 = por %p56, %p57
    %p60 = scmp.ne.s32.totalorder %s43, %s59
    %p61 = scmp.eq.s32.totalorder %s21, 0
    %p62 = por %p60, %p61
    %s63 = sadd.s32 %s23, 1
    %s64 = sadd.s32 %s30, 1
    %s65 = ssub.s32 %s22, %s34
    %s66 = ssub.s32 %s63, %s64
    %s67 = sor.u32 %s65, %s66
    %p68 = scmp.eq.s32.totalorder %s67, 0
    %s70 = sadd.s32 %s69, 1
    %s71 = scalar_select %p68, %s69, %s70
    %p74 = pneg %p68
    %p75 = scmp.eq.s32.totalorder %s15, 15
    %p76 = por %p74, %p75
    %p77 = scmp.ne.s32.totalorder %s69, %s72
    %p78 = scmp.eq.s32.totalorder %s15, 0
    %p79 = por %p77, %p78
    %p80 = scmp.ne.s32.totalorder %s69, %s72
    %p81 = scmp.eq.s32.totalorder %s20, 15
    %p82 = por %p80, %p81
    %p83 = scmp.ne.s32.totalorder %s72, %s73
    %p84 = scmp.eq.s32.totalorder %s20, 0
    %p85 = por %p83, %p84
    %p86 = scmp.ne.s32.totalorder %s72, %s73
    %p87 = scmp.eq.s32.totalorder %s21, 15
    %p88 = por %p86, %p87
    %p90 = scmp.ne.s32.totalorder %s73, %s89
    %p91 = scmp.eq.s32.totalorder %s21, 0
    %p92 = por %p90, %p91
    %s93 = sadd.s32 %s23, 2
    %s94 = sadd.s32 %s30, 2
    %s95 = ssub.s32 %s22, %s34
    %s96 = ssub.s32 %s93, %s94
    %s97 = sor.u32 %s95, %s96
    %p98 = scmp.eq.s32.totalorder %s97, 0
    %s100 = sadd.s32 %s99, 1
    %s101 = scalar_select %p98, %s99, %s100
    %p104 = pneg %p98
    %p105 = scmp.eq.s32.totalorder %s15, 15
    %p106 = por %p104, %p105
    %p107 = scmp.ne.s32.totalorder %s99, %s102
    %p108 = scmp.eq.s32.totalorder %s15, 0
    %p109 = por %p107, %p108
    %p110 = scmp.ne.s32.totalorder %s99, %s102
    %p111 = scmp.eq.s32.totalorder %s20, 15
    %p112 = por %p110, %p111
    %p113 = scmp.ne.s32.totalorder %s102, %s103
    %p114 = scmp.eq.s32.totalorder %s20, 0
    %p115 = por %p113, %p114
    %p116 = scmp.ne.s32.totalorder %s102, %s103
    %p117 = scmp.eq.s32.totalorder %s21, 15
    %p118 = por %p116, %p117
    %p120 = scmp.ne.s32.totalorder %s103, %s119
    %p121 = scmp.eq.s32.totalorder %s21, 0
    %p122 = por %p120, %p121
    %s124 = sadd.s32 %s123, 1
    %p127 = scmp.eq.s32.totalorder %s15, 15
    %p128 = scmp.ne.s32.totalorder %s123, %s125
    %p129 = scmp.eq.s32.totalorder %s15, 0
    %p130 = por %p128, %p129
    %p131 = scmp.ne.s32.totalorder %s123, %s125
    %p132 = scmp.eq.s32.totalorder %s20, 15
    %p133 = por %p131, %p132
    %p134 = scmp.ne.s32.totalorder %s125, %s126
    %p135 = scmp.eq.s32.totalorder %s20, 0
    %p136 = por %p134, %p135
    %p137 = scmp.ne.s32.totalorder %s125, %s126
    %p138 = scmp.eq.s32.totalorder %s21, 15
    %p139 = por %p137, %p138
    %p141 = scmp.ne.s32.totalorder %s126, %s140
    %p142 = scmp.eq.s32.totalorder %s21, 0
    %p143 = por %p141, %p142
    %s145 = sadd.s32 %s144, 1
    %p148 = scmp.eq.s32.totalorder %s15, 15
    %p149 = scmp.ne.s32.totalorder %s144, %s146
    %p150 = scmp.eq.s32.totalorder %s15, 0
    %p151 = por %p149, %p150
    %p152 = scmp.ne.s32.totalorder %s144, %s146
    %p153 = scmp.eq.s32.totalorder %s20, 15
    %p154 = por %p152, %p153
    %p155 = scmp.ne.s32.totalorder %s146, %s147
    %p156 = scmp.eq.s32.totalorder %s20, 0
    %p157 = por %p155, %p156
    %p158 = scmp.ne.s32.totalorder %s146, %s147
    %p159 = scmp.eq.s32.totalorder %s21, 15
    %p160 = por %p158, %p159
    %p162 = scmp.ne.s32.totalorder %s147, %s161
    %p163 = scmp.eq.s32.totalorder %s21, 0
    %p164 = por %p162, %p163
    %s166 = sadd.s32 %s165, 1
    %p169 = scmp.eq.s32.totalorder %s15, 15
    %p170 = scmp.ne.s32.totalorder %s165, %s167
    %p171 = scmp.eq.s32.totalorder %s15, 0
    %p172 = por %p170, %p171
    %p173 = scmp.ne.s32.totalorder %s165, %s167
    %p174 = scmp.eq.s32.totalorder %s20, 15
    %p175 = por %p173, %p174
    %p176 = scmp.ne.s32.totalorder %s167, %s168
    %p177 = scmp.eq.s32.totalorder %s20, 0
    %p178 = por %p176, %p177
    %p179 = scmp.ne.s32.totalorder %s167, %s168
    %p180 = scmp.eq.s32.totalorder %s21, 15
    %p181 = por %p179, %p180
    %p183 = scmp.ne.s32.totalorder %s168, %s182
    %p184 = scmp.eq.s32.totalorder %s21, 0
    %p185 = por %p183, %p184
    %s187 = sadd.s32 %s186, 1
    %p190 = scmp.eq.s32.totalorder %s15, 15
    %p191 = scmp.ne.s32.totalorder %s186, %s188
    %p192 = scmp.eq.s32.totalorder %s15, 0
    %p193 = por %p191, %p192
    %p194 = scmp.ne.s32.totalorder %s186, %s188
    %p195 = scmp.eq.s32.totalorder %s20, 15
    %p196 = por %p194, %p195
    %p197 = scmp.ne.s32.totalorder %s188, %s189
    %p198 = scmp.eq.s32.totalorder %s20, 0
    %p199 = por %p197, %p198
    %p200 = scmp.ne.s32.totalorder %s188, %s189
    %p201 = scmp.eq.s32.totalorder %s21, 15
    %p202 = por %p200, %p201
    %p204 = scmp.ne.s32.totalorder %s189, %s203
    %p205 = scmp.eq.s32.totalorder %s21, 0
    %p206 = por %p204, %p205
    %s207 = ssub.s32 %s22, %s34
    %s208 = ssub.s32 %s23, %s30
    %s209 = sor.u32 %s207, %s208
    %p210 = scmp.eq.s32.totalorder %s209, 0
    %s212 = sadd.s32 %s211, 1
    %s213 = scalar_select %p210, %s211, %s212
    %p216 = pneg %p210
    %p217 = scmp.eq.s32.totalorder %s15, 15
    %p218 = por %p216, %p217
    %p219 = scmp.ne.s32.totalorder %s211, %s214
    %p220 = scmp.eq.s32.totalorder %s15, 0
    %p221 = por %p219, %p220
    %p222 = scmp.ne.s32.totalorder %s211, %s214
    %p223 = scmp.eq.s32.totalorder %s20, 15
    %p224 = por %p222, %p223
    %p225 = scmp.ne.s32.totalorder %s214, %s215
    %p226 = scmp.eq.s32.totalorder %s20, 0
    %p227 = por %p225, %p226
    %p228 = scmp.ne.s32.totalorder %s214, %s215
    %p229 = scmp.eq.s32.totalorder %s21, 15
    %p230 = por %p228, %p229
    %p232 = scmp.ne.s32.totalorder %s215, %s231
    %p233 = scmp.eq.s32.totalorder %s21, 0
    %p234 = por %p232, %p233
    %s235 = ssub.s32 %s22, %s34
    %s236 = ssub.s32 %s23, %s30
    %s237 = sor.u32 %s235, %s236
    %p238 = scmp.eq.s32.totalorder %s237, 0
    %s240 = sadd.s32 %s239, 1
    %s241 = scalar_select %p238, %s239, %s240
    %p244 = pneg %p238
    %p245 = scmp.eq.s32.totalorder %s15, 15
    %p246 = por %p244, %p245
    %p247 = scmp.ne.s32.totalorder %s239, %s242
    %p248 = scmp.eq.s32.totalorder %s15, 0
    %p249 = por %p247, %p248
    %p250 = scmp.ne.s32.totalorder %s239, %s242
    %p251 = scmp.eq.s32.totalorder %s20, 15
    %p252 = por %p250, %p251
    %p253 = scmp.ne.s32.totalorder %s242, %s243
    %p254 = scmp.eq.s32.totalorder %s20, 0
    %p255 = por %p253, %p254
    %p256 = scmp.ne.s32.totalorder %s242, %s243
    %p257 = scmp.eq.s32.totalorder %s21, 15
    %p258 = por %p256, %p257
    %p260 = scmp.ne.s32.totalorder %s243, %s259
    %p261 = scmp.eq.s32.totalorder %s21, 0
    %p262 = por %p260, %p261
    %p263 = scmp.le.s32.totalorder 1, %s15
    %p264 = scmp.lt.s32.totalorder %s15, 17
    %p265 = pnand %p263, %p264
    %p266 = pneg %p265
    // Predicated region
    $region9: #{mixconvblock_forward.3} parent=5 // pred_check
      _
    $region10: #{mixconvblock_forward.3} parent=5 // pred_check_branch
      %268 = sbr.rel (%p265) target = $region12
    $region11: #{mixconvblock_forward.3} parent=5 // pred_region
      %s269 = ssub.s32 %s15, 1
      // Predicated region
      $region13: #{mixconvblock_forward.3} parent=11 // pred_check
        %p270 = pneg %p136
      $region14: #{mixconvblock_forward.3} parent=11 // pred_check_branch
        %272 = sbr.rel (%p270) target = $region16
      $region15: #{mixconvblock_forward.3} parent=11 // pred_region
        _
      $region16: #{mixconvblock_forward.3} parent=11 // pred_fallthru
        _
      // Predicated region
      $region17: #{mixconvblock_forward.3} parent=11 // pred_check
        %p273 = pneg %p157
      $region18: #{mixconvblock_forward.3} parent=11 // pred_check_branch
        %275 = sbr.rel (%p273) target = $region20
      $region19: #{mixconvblock_forward.3} parent=11 // pred_region
        _
      $region20: #{mixconvblock_forward.3} parent=11 // pred_fallthru
        _
      // Predicated region
      $region21: #{mixconvblock_forward.3} parent=11 // pred_check
        %p276 = pneg %p178
      $region22: #{mixconvblock_forward.3} parent=11 // pred_check_branch
        %278 = sbr.rel (%p276) target = $region24
      $region23: #{mixconvblock_forward.3} parent=11 // pred_region
        _
      $region24: #{mixconvblock_forward.3} parent=11 // pred_fallthru
        _
      // Predicated region
      $region25: #{mixconvblock_forward.3} parent=11 // pred_check
        %p279 = pneg %p199
      $region26: #{mixconvblock_forward.3} parent=11 // pred_check_branch
        %281 = sbr.rel (%p279) target = $region28
      $region27: #{mixconvblock_forward.3} parent=11 // pred_region
        _
      $region28: #{mixconvblock_forward.3} parent=11 // pred_fallthru
        _
    $region12: #{mixconvblock_forward.3} parent=5 // pred_fallthru
      _
    %p282 = scmp.lt.s32.totalorder %s15, 16
    // Predicated region
    $region29: #{mixconvblock_forward.3} parent=5 // pred_check
      %p283 = pneg %p282
    $region30: #{mixconvblock_forward.3} parent=5 // pred_check_branch
      %285 = sbr.rel (%p283) target = $region32
    $region31: #{mixconvblock_forward.3} parent=5 // pred_region
      // Predicated region
      $region33: #{mixconvblock_forward.3} parent=31 // pred_check
        %p286 = pneg %p49
      $region34: #{mixconvblock_forward.3} parent=31 // pred_check_branch
        %288 = sbr.rel (%p286) target = $region36
      $region35: #{mixconvblock_forward.3} parent=31 // pred_region
        %p289 = scmp.lt.s32.totalorder %s22, 1
        %s290 = scalar_select %p289, %s22, 1
        %p291 = scmp.lt.s32.totalorder %s23, 9
        %s292 = scalar_select %p291, %s23, 9
        %s293 = smul.addr %s292, 5
        %s294 = smul.addr %s290, 50
        %s295 = sadd.s32 %s293, %s294
        %s296 = smul.addr %s295, 4
        %s297 = scalar_lea.vmem %s0, %s296
      $region36: #{mixconvblock_forward.3} parent=31 // pred_fallthru
        _
      // Predicated region
      $region37: #{mixconvblock_forward.3} parent=31 // pred_check
        %p298 = pneg %p79
      $region38: #{mixconvblock_forward.3} parent=31 // pred_check_branch
        %300 = sbr.rel (%p298) target = $region40
      $region39: #{mixconvblock_forward.3} parent=31 // pred_region
        %s301 = sadd.s32 %s23, 1
        %p302 = scmp.lt.s32.totalorder %s22, 1
        %s303 = scalar_select %p302, %s22, 1
        %p304 = scmp.lt.s32.totalorder %s301, 9
        %s305 = scalar_select %p304, %s301, 9
        %s306 = smul.addr %s305, 5
        %s307 = smul.addr %s303, 50
        %s308 = sadd.s32 %s306, %s307
        %s309 = smul.addr %s308, 4
        %s310 = scalar_lea.vmem %s1, %s309
        %s311 = sadd.s32 %s23, 1
      $region40: #{mixconvblock_forward.3} parent=31 // pred_fallthru
        _
      // Predicated region
      $region41: #{mixconvblock_forward.3} parent=31 // pred_check
        %p312 = pneg %p109
      $region42: #{mixconvblock_forward.3} parent=31 // pred_check_branch
        %314 = sbr.rel (%p312) target = $region44
      $region43: #{mixconvblock_forward.3} parent=31 // pred_region
        %s315 = sadd.s32 %s23, 2
        %p316 = scmp.lt.s32.totalorder %s22, 1
        %s317 = scalar_select %p316, %s22, 1
        %p318 = scmp.lt.s32.totalorder %s315, 9
        %s319 = scalar_select %p318, %s315, 9
        %s320 = smul.addr %s319, 5
        %s321 = smul.addr %s317, 50
        %s322 = sadd.s32 %s320, %s321
        %s323 = smul.addr %s322, 4
        %s324 = scalar_lea.vmem %s2, %s323
        %s325 = sadd.s32 %s23, 2
      $region44: #{mixconvblock_forward.3} parent=31 // pred_fallthru
        _
    $region32: #{mixconvblock_forward.3} parent=5 // pred_fallthru
      _
    %p326 = scmp.le.s32.totalorder 1, %s15
    %p327 = scmp.lt.s32.totalorder %s15, 17
    %p328 = pnand %p326, %p327
    %p329 = pneg %p328
    // Predicated region
    $region45: #{mixconvblock_forward.3} parent=5 // pred_check
      _
    $region46: #{mixconvblock_forward.3} parent=5 // pred_check_branch
      %331 = sbr.rel (%p328) target = $region48
    $region47: #{mixconvblock_forward.3} parent=5 // pred_region
      %s332 = ssub.s32 %s15, 1
      %p333 = scmp.lt.s32.totalorder %s24, 1
      %s334 = scalar_select %p333, %s24, 1
      %p335 = scmp.lt.s32.totalorder %s25, 9
      %s336 = scalar_select %p335, %s25, 9
      %s337 = smul.addr %s336, 5
      %s338 = smul.addr %s334, 50
      %s339 = sadd.s32 %s337, %s338
      %s340 = smul.addr %s339, 4
      %s341 = scalar_lea.vmem %s0, %s340
      %p342 = pneg %p55
      %p343 = pneg %p52
      %s344 = sadd.s32 %s25, 1
      %p345 = scmp.lt.s32.totalorder %s24, 1
      %s346 = scalar_select %p345, %s24, 1
      %p347 = scmp.lt.s32.totalorder %s344, 9
      %s348 = scalar_select %p347, %s344, 9
      %s349 = smul.addr %s348, 5
      %s350 = smul.addr %s346, 50
      %s351 = sadd.s32 %s349, %s350
      %s352 = smul.addr %s351, 4
      %s353 = scalar_lea.vmem %s1, %s352
      %p354 = pneg %p85
      %p355 = pneg %p82
      %s356 = sadd.s32 %s25, 2
      %p357 = scmp.lt.s32.totalorder %s24, 1
      %s358 = scalar_select %p357, %s24, 1
      %p359 = scmp.lt.s32.totalorder %s356, 9
      %s360 = scalar_select %p359, %s356, 9
      %s361 = smul.addr %s360, 5
      %s362 = smul.addr %s358, 50
      %s363 = sadd.s32 %s361, %s362
      %s364 = smul.addr %s363, 4
      %s365 = scalar_lea.vmem %s2, %s364
      %p366 = pneg %p115
      %p367 = pneg %p112
      %p368 = pneg %p136
      %p369 = pneg %p133
      %p370 = pneg %p157
      %p371 = pneg %p154
      %p372 = pneg %p178
      %p373 = pneg %p175
      %p374 = pneg %p199
      %p375 = pneg %p196
      %p376 = pneg %p227
      %p377 = pneg %p224
      %p378 = scmp.lt.s32.totalorder %s24, 1
      %s379 = scalar_select %p378, %s24, 1
      %p380 = scmp.lt.s32.totalorder %s25, 7
      %s381 = scalar_select %p380, %s25, 7
      %s382 = smul.addr %s381, 12
      %s383 = smul.addr %s379, 96
      %s384 = sadd.s32 %s382, %s383
      %s385 = smul.addr %s384, 4
      %s386 = scalar_lea.vmem %s7, %s385
      %p387 = pneg %p255
      %p388 = pneg %p252
      %p389 = scmp.lt.s32.totalorder %s24, 1
      %s390 = scalar_select %p389, %s24, 1
      %p391 = scmp.lt.s32.totalorder %s25, 7
      %s392 = scalar_select %p391, %s25, 7
      %s393 = smul.addr %s392, 4
      %s394 = smul.addr %s390, 32
      %s395 = sadd.s32 %s393, %s394
      %s396 = smul.addr %s395, 8
      %s397 = scalar_lea.vmem %s8, %s396
      %p398 = scmp.lt.s32.totalorder %s24, 1
      %s399 = scalar_select %p398, %s24, 1
      %p400 = scmp.lt.s32.totalorder %s25, 9
      %s401 = scalar_select %p400, %s25, 9
      %s402 = smul.addr %s401, 5
      %s403 = smul.addr %s399, 50
      %s404 = sadd.s32 %s402, %s403
      %s405 = smul.addr %s404, 4
      %s406 = scalar_lea.vmem %s0, %s405
      %s407 = sadd.s32 %s25, 1
      %p408 = scmp.lt.s32.totalorder %s24, 1
      %s409 = scalar_select %p408, %s24, 1
      %p410 = scmp.lt.s32.totalorder %s407, 9
      %s411 = scalar_select %p410, %s407, 9
      %s412 = smul.addr %s411, 5
      %s413 = smul.addr %s409, 50
      %s414 = sadd.s32 %s412, %s413
      %s415 = smul.addr %s414, 4
      %s416 = scalar_lea.vmem %s1, %s415
      %s417 = sadd.s32 %s25, 1
      %s418 = sadd.s32 %s25, 2
      %p419 = scmp.lt.s32.totalorder %s24, 1
      %s420 = scalar_select %p419, %s24, 1
      %p421 = scmp.lt.s32.totalorder %s418, 9
      %s422 = scalar_select %p421, %s418, 9
      %s423 = smul.addr %s422, 5
      %s424 = smul.addr %s420, 50
      %s425 = sadd.s32 %s423, %s424
      %s426 = smul.addr %s425, 4
      %s427 = scalar_lea.vmem %s2, %s426
      %s428 = sadd.s32 %s25, 2
      %p429 = scmp.lt.s32.totalorder %s24, 1
      %s430 = scalar_select %p429, %s24, 1
      %p431 = scmp.lt.s32.totalorder %s25, 7
      %s432 = scalar_select %p431, %s25, 7
      %s433 = smul.addr %s432, 12
      %s434 = smul.addr %s430, 96
      %s435 = sadd.s32 %s433, %s434
      %s436 = smul.addr %s435, 4
      %s437 = scalar_lea.vmem %s7, %s436
      %p438 = scmp.lt.s32.totalorder %s24, 1
      %s439 = scalar_select %p438, %s24, 1
      %p440 = scmp.lt.s32.totalorder %s25, 7
      %s441 = scalar_select %p440, %s25, 7
      %s442 = smul.addr %s441, 4
      %s443 = smul.addr %s439, 32
      %s444 = sadd.s32 %s442, %s443
      %s445 = smul.addr %s444, 8
      %s446 = scalar_lea.vmem %s8, %s445
      %v448 = vld [vmem:[%s406] sm:$0xff]
      %v449 = vld [vmem:[%s406 + $0x8] sm:$0xff]
      %v450 = vld [vmem:[%s406 + $0x10] sm:$0xf]
      %v451 = vld [vmem:[%s416] sm:$0xff]
      %v452 = vld [vmem:[%s416 + $0x8] sm:$0xff]
      %v453 = vld [vmem:[%s416 + $0x10] sm:$0xf]
      %v454 = vld [vmem:[%s427] sm:$0xff]
      %v455 = vld [vmem:[%s427 + $0x8] sm:$0xff]
      %v456 = vld [vmem:[%s427 + $0x10] sm:$0xf]
      %v457 = vld [vmem:[%s3] sm:$0xf]
      %v458 = vld [vmem:[%s3 + $0x4] sm:$0xf]
      %v461 = vunpack.c.l.b16 %v448
      %v462 = vunpack.c.h.b16 %v448
      %v463 = vunpack.c.l.b16 %v449
      %v464 = vunpack.c.h.b16 %v449
      %v465 = vpack.c.b16 %v461, %v461
      %v466 = vpack.c.b16 %v462, %v462
      %v467 = vpack.c.b16 %v463, %v463
      %v468 = vpack.c.b16 %v464, %v464
      %469 = vrot.lane.b32.xlu0 %v466, 118
      %v470 = vpop.permute.xlu0 %469
      %471 = vrot.lane.b32.xlu0 %v467, 118
      %v472 = vpop.permute.xlu0 %471
      %473 = vrot.lane.b32.xlu0 %v468, 118
      %v474 = vpop.permute.xlu0 %473
      %vm475 = vcmask 965632
      %v476 = vsel %vm475, %v470, %v472
      %v477 = vsel %vm475, %v472, %v474
      %v479 = vunpack.c.l.b16 %v450
      %v480 = vpack.c.b16 %v479, %v479
      %481 = vrot.lane.b32.xlu0 %v466, 108
      %v482 = vpop.permute.xlu0 %481
      %483 = vrot.lane.b32.xlu0 %v467, 108
      %v484 = vpop.permute.xlu0 %483
      %485 = vrot.lane.b32.xlu0 %v468, 108
      %v486 = vpop.permute.xlu0 %485
      %487 = vrot.lane.b32.xlu0 %v480, 108
      %v488 = vpop.permute.xlu0 %487
      %vm489 = vcmask 883712
      %v490 = vsel %vm489, %v482, %v484
      %v491 = vsel %vm489, %v484, %v486
      %v492 = vsel %vm489, %v486, %v488
      %v495 = vunpack.c.l.b16 %v451
      %v496 = vunpack.c.h.b16 %v451
      %v497 = vunpack.c.l.b16 %v452
      %v498 = vunpack.c.h.b16 %v452
      %v499 = vpack.c.b16 %v495, %v495
      %v500 = vpack.c.b16 %v496, %v496
      %v501 = vpack.c.b16 %v497, %v497
      %v502 = vpack.c.b16 %v498, %v498
      %503 = vrot.lane.b32.xlu0 %v500, 118
      %v504 = vpop.permute.xlu0 %503
      %505 = vrot.lane.b32.xlu0 %v501, 118
      %v506 = vpop.permute.xlu0 %505
      %507 = vrot.lane.b32.xlu0 %v502, 118
      %v508 = vpop.permute.xlu0 %507
      %v509 = vsel %vm475, %v504, %v506
      %v510 = vsel %vm475, %v506, %v508
      %v512 = vunpack.c.l.b16 %v453
      %v513 = vpack.c.b16 %v512, %v512
      %514 = vrot.lane.b32.xlu0 %v500, 108
      %v515 = vpop.permute.xlu0 %514
      %516 = vrot.lane.b32.xlu0 %v501, 108
      %v517 = vpop.permute.xlu0 %516
      %518 = vrot.lane.b32.xlu0 %v502, 108
      %v519 = vpop.permute.xlu0 %518
      %520 = vrot.lane.b32.xlu0 %v513, 108
      %v521 = vpop.permute.xlu0 %520
      %v522 = vsel %vm489, %v515, %v517
      %v523 = vsel %vm489, %v517, %v519
      %v524 = vsel %vm489, %v519, %v521
      %v527 = vunpack.c.l.b16 %v454
      %v528 = vunpack.c.h.b16 %v454
      %v529 = vunpack.c.l.b16 %v455
      %v530 = vunpack.c.h.b16 %v455
      %v531 = vpack.c.b16 %v527, %v527
      %v532 = vpack.c.b16 %v528, %v528
      %v533 = vpack.c.b16 %v529, %v529
      %v534 = vpack.c.b16 %v530, %v530
      %535 = vrot.lane.b32.xlu0 %v532, 118
      %v536 = vpop.permute.xlu0 %535
      %537 = vrot.lane.b32.xlu0 %v533, 118
      %v538 = vpop.permute.xlu0 %537
      %539 = vrot.lane.b32.xlu0 %v534, 118
      %v540 = vpop.permute.xlu0 %539
      %v541 = vsel %vm475, %v536, %v538
      %v542 = vsel %vm475, %v538, %v540
      %v544 = vunpack.c.l.b16 %v456
      %v545 = vpack.c.b16 %v544, %v544
      %546 = vrot.lane.b32.xlu0 %v532, 108
      %v547 = vpop.permute.xlu0 %546
      %548 = vrot.lane.b32.xlu0 %v533, 108
      %v549 = vpop.permute.xlu0 %548
      %550 = vrot.lane.b32.xlu0 %v534, 108
      %v551 = vpop.permute.xlu0 %550
      %552 = vrot.lane.b32.xlu0 %v545, 108
      %v553 = vpop.permute.xlu0 %552
      %v554 = vsel %vm489, %v547, %v549
      %v555 = vsel %vm489, %v549, %v551
      %v556 = vsel %vm489, %v551, %v553
      %vm557 = vcmask 1043456
      %v560 = vsel %vm557, %v465, %v470
      %v563 = vsel %vm557, %v466, %v476
      %v566 = vsel %vm557, %v467, %v477
      %v569 = vsel %vm557, %v468, %v474
      %v572 = vsel %vm557, %v482, %v499
      %v575 = vsel %vm557, %v490, %v500
      %v578 = vsel %vm557, %v491, %v501
      %v581 = vsel %vm557, %v492, %v502
      %v584 = vsel %vm557, %v504, %v515
      %v587 = vsel %vm557, %v509, %v522
      %v590 = vsel %vm557, %v510, %v523
      %v593 = vsel %vm557, %v508, %v524
      %v596 = vsel %vm557, %v531, %v536
      %v599 = vsel %vm557, %v532, %v541
      %v602 = vsel %vm557, %v533, %v542
      %v605 = vsel %vm557, %v534, %v540
      %v608 = vunpack.c.l.b16 %v457
      %v609 = vunpack.c.l.b16 %v458
      %v610 = vpack.c.b16 %v609, %v608
      %627 = vrot.lane.b32.xlu0 %v560, 10
      %v628 = vpop.permute.xlu0 %627
      %629 = vrot.lane.b32.xlu0 %v563, 10
      %v630 = vpop.permute.xlu0 %629
      %631 = vrot.lane.b32.xlu0 %v566, 10
      %v632 = vpop.permute.xlu0 %631
      %633 = vrot.lane.b32.xlu0 %v569, 10
      %v634 = vpop.permute.xlu0 %633
      %635 = vrot.lane.b32.xlu0 %v572, 10
      %v636 = vpop.permute.xlu0 %635
      %637 = vrot.lane.b32.xlu0 %v575, 10
      %v638 = vpop.permute.xlu0 %637
      %639 = vrot.lane.b32.xlu0 %v578, 10
      %v640 = vpop.permute.xlu0 %639
      %641 = vrot.lane.b32.xlu0 %v581, 10
      %v642 = vpop.permute.xlu0 %641
      %643 = vrot.lane.b32.xlu0 %v584, 10
      %v644 = vpop.permute.xlu0 %643
      %645 = vrot.lane.b32.xlu0 %v587, 10
      %v646 = vpop.permute.xlu0 %645
      %647 = vrot.lane.b32.xlu0 %v590, 10
      %v648 = vpop.permute.xlu0 %647
      %649 = vrot.lane.b32.xlu0 %v593, 10
      %v650 = vpop.permute.xlu0 %649
      %651 = vrot.lane.b32.xlu0 %v596, 10
      %v652 = vpop.permute.xlu0 %651
      %653 = vrot.lane.b32.xlu0 %v599, 10
      %v654 = vpop.permute.xlu0 %653
      %655 = vrot.lane.b32.xlu0 %v602, 10
      %v656 = vpop.permute.xlu0 %655
      %657 = vrot.lane.b32.xlu0 %v605, 10
      %v658 = vpop.permute.xlu0 %657
      %659 = vrot.lane.b32.xlu0 %v547, 10
      %v660 = vpop.permute.xlu0 %659
      %661 = vrot.lane.b32.xlu0 %v554, 10
      %v662 = vpop.permute.xlu0 %661
      %663 = vrot.lane.b32.xlu0 %v555, 10
      %v664 = vpop.permute.xlu0 %663
      %665 = vrot.lane.b32.xlu0 %v556, 10
      %v666 = vpop.permute.xlu0 %665
      %vm667 = vcmask 80896
      %v668 = vsel %vm667, %v628, %v630
      %v669 = vsel %vm667, %v630, %v632
      %v670 = vsel %vm667, %v632, %v634
      %v671 = vsel %vm667, %v636, %v638
      %v672 = vsel %vm667, %v638, %v640
      %v673 = vsel %vm667, %v640, %v642
      %v674 = vsel %vm667, %v644, %v646
      %v675 = vsel %vm667, %v646, %v648
      %v676 = vsel %vm667, %v648, %v650
      %v677 = vsel %vm667, %v652, %v654
      %v678 = vsel %vm667, %v654, %v656
      %v679 = vsel %vm667, %v656, %v658
      %v680 = vsel %vm667, %v660, %v662
      %v681 = vsel %vm667, %v662, %v664
      %v682 = vsel %vm667, %v664, %v666
      %vm695 = vcmask 588800
      %v697 = vsel %vm695, %v610, 0
      %v700 = vsel %vm557, %v680, 0
      %v703 = vsel %vm557, %v681, 0
      %v706 = vsel %vm557, %v682, 0
      %708 = vmatprep.subr.bf16.mxu0 %v669
      %709 = vmatpush1.bf16.msra.mxu0 %v668
      %710 = vmatprep.subr.bf16.mxu0 %v672
      %711 = vmatpush1.bf16.msra.mxu0 %v671
      %712 = vmatprep.subr.bf16.mxu0 %v675
      %713 = vmatpush1.bf16.msra.mxu0 %v674
      %714 = vmatprep.subr.bf16.mxu0 %v678
      %715 = vmatpush1.bf16.msra.mxu0 %v677
      %716 = vmatprep.subr.bf16.mxu0 %v703
      %717 = vmatpush1.bf16.msra.mxu0 %v700
      %718 = vmatprep.subr.bf16.mxu0 0
      %719 = vmatpush1.bf16.msra.mxu0 0
      %720 = vmatprep.subr.bf16.mxu0 0
      %721 = vmatpush1.bf16.msra.mxu0 0
      %722 = vmatprep.subr.bf16.mxu0 0
      %723 = vmatpush1.bf16.msra.mxu0 0
      %724 = vmatprep.subr.bf16.mxu0 0
      %725 = vmatpush1.bf16.msra.mxu0 0
      %726 = vmatprep.subr.bf16.mxu0 0
      %727 = vmatpush1.bf16.msra.mxu0 0
      %728 = vmatprep.subr.bf16.mxu0 0
      %729 = vmatpush1.bf16.msra.mxu0 0
      %730 = vmatprep.subr.bf16.mxu0 0
      %731 = vmatpush1.bf16.msra.mxu0 0
      %732 = vmatprep.subr.bf16.mxu0 0
      %733 = vmatpush1.bf16.msra.mxu0 0
      %734 = vmatprep.subr.bf16.mxu0 0
      %735 = vmatpush1.bf16.msra.mxu0 0
      %736 = vmatprep.subr.bf16.mxu0 0
      %737 = vmatpush1.bf16.msra.mxu0 0
      %738 = vmatprep.subr.bf16.mxu0 0
      %739 = vmatpush1.bf16.msra.mxu0 0
      %740 = vmatprep.mubr.bf16.mxu0 0
      %741 = vmatmul.mubr.bf16.gmra.mrb[0].mxu0 %v697
      %v742 = vpop.f32.mrb[0].mxu0
      %v743 = vadd.f32 0.0, %v742
      %v744 = vpop.f32.mrb[0].mxu0
      %v745 = vadd.f32 0.0, %v744
      %v746 = vpop.f32.mrb[0].mxu0
      %v747 = vadd.f32 0.0, %v746
      %v748 = vpop.f32.mrb[0].mxu0
      %v749 = vadd.f32 0.0, %v748
      %750 = vdwg.mxu0
      %751 = vmatprep.subr.bf16.mxu0 0
      %752 = vmatpush1.bf16.msra.mxu0 %v670
      %753 = vmatprep.subr.bf16.mxu0 0
      %754 = vmatpush1.bf16.msra.mxu0 %v673
      %755 = vmatprep.subr.bf16.mxu0 0
      %756 = vmatpush1.bf16.msra.mxu0 %v676
      %757 = vmatprep.subr.bf16.mxu0 0
      %758 = vmatpush1.bf16.msra.mxu0 %v679
      %759 = vmatprep.subr.bf16.mxu0 0
      %760 = vmatpush1.bf16.msra.mxu0 %v706
      %761 = vmatprep.subr.bf16.mxu0 0
      %762 = vmatpush1.bf16.msra.mxu0 0
      %763 = vmatprep.subr.bf16.mxu0 0
      %764 = vmatpush1.bf16.msra.mxu0 0
      %765 = vmatprep.subr.bf16.mxu0 0
      %766 = vmatpush1.bf16.msra.mxu0 0
      %767 = vmatprep.subr.bf16.mxu0 0
      %768 = vmatpush1.bf16.msra.mxu0 0
      %769 = vmatprep.subr.bf16.mxu0 0
      %770 = vmatpush1.bf16.msra.mxu0 0
      %771 = vmatprep.subr.bf16.mxu0 0
      %772 = vmatpush1.bf16.msra.mxu0 0
      %773 = vmatprep.subr.bf16.mxu0 0
      %774 = vmatpush1.bf16.msra.mxu0 0
      %775 = vmatprep.subr.bf16.mxu0 0
      %776 = vmatpush1.bf16.msra.mxu0 0
      %777 = vmatprep.subr.bf16.mxu0 0
      %778 = vmatpush1.bf16.msra.mxu0 0
      %779 = vmatprep.subr.bf16.mxu0 0
      %780 = vmatpush1.bf16.msra.mxu0 0
      %781 = vmatprep.subr.bf16.mxu0 0
      %782 = vmatpush1.bf16.msra.mxu0 0
      %783 = vmatprep.mubr.bf16.mxu0 0
      %784 = vmatmul.mubr.bf16.gmra.mrb[0].mxu0 %v697
      %v785 = vpop.f32.mrb[0].mxu0
      %v786 = vadd.f32 0.0, %v785
      %v787 = vpop.f32.mrb[0].mxu0
      %v788 = vpop.f32.mrb[0].mxu0
      %v789 = vadd.f32 0.0, %v788
      %v790 = vpop.f32.mrb[0].mxu0
      %791 = vdwg.mxu0
      %v792 = vld [vmem:[%s4] sm:$0xf]
      %v793 = vld [vmem:[%s4 + $0x4] sm:$0xf]
      %794 = vrot.lane.b32.xlu0 %v499, 127
      %v795 = vpop.permute.xlu0 %794
      %796 = vrot.lane.b32.xlu0 %v500, 127
      %v797 = vpop.permute.xlu0 %796
      %798 = vrot.lane.b32.xlu0 %v501, 127
      %v799 = vpop.permute.xlu0 %798
      %800 = vrot.lane.b32.xlu0 %v502, 127
      %v801 = vpop.permute.xlu0 %800
      %vm802 = vcmask 1039360
      %v803 = vsel %vm802, %v795, %v797
      %v804 = vsel %vm802, %v797, %v799
      %v805 = vsel %vm802, %v799, %v801
      %806 = vrot.lane.b32.xlu0 %v499, 126
      %v807 = vpop.permute.xlu0 %806
      %808 = vrot.lane.b32.xlu0 %v500, 126
      %v809 = vpop.permute.xlu0 %808
      %810 = vrot.lane.b32.xlu0 %v501, 126
      %v811 = vpop.permute.xlu0 %810
      %812 = vrot.lane.b32.xlu0 %v502, 126
      %v813 = vpop.permute.xlu0 %812
      %vm814 = vcmask 1031168
      %v815 = vsel %vm814, %v807, %v809
      %v816 = vsel %vm814, %v809, %v811
      %v817 = vsel %vm814, %v811, %v813
      %818 = vrot.lane.b32.xlu0 %v499, 118
      %v819 = vpop.permute.xlu0 %818
      %v820 = vsel %vm475, %v819, %v504
      %821 = vrot.lane.b32.xlu0 %v500, 117
      %v822 = vpop.permute.xlu0 %821
      %823 = vrot.lane.b32.xlu0 %v501, 117
      %v824 = vpop.permute.xlu0 %823
      %825 = vrot.lane.b32.xlu0 %v502, 117
      %v826 = vpop.permute.xlu0 %825
      %vm827 = vcmask 957440
      %v828 = vsel %vm827, %v822, %v824
      %v829 = vsel %vm827, %v824, %v826
      %830 = vrot.lane.b32.xlu0 %v500, 116
      %v831 = vpop.permute.xlu0 %830
      %832 = vrot.lane.b32.xlu0 %v501, 116
      %v833 = vpop.permute.xlu0 %832
      %834 = vrot.lane.b32.xlu0 %v502, 116
      %v835 = vpop.permute.xlu0 %834
      %836 = vrot.lane.b32.xlu0 %v513, 116
      %v837 = vpop.permute.xlu0 %836
      %vm838 = vcmask 949248
      %v839 = vsel %vm838, %v831, %v833
      %v840 = vsel %vm838, %v833, %v835
      %v841 = vsel %vm838, %v835, %v837
      %842 = vrot.lane.b32.xlu0 %v500, 107
      %v843 = vpop.permute.xlu0 %842
      %844 = vrot.lane.b32.xlu0 %v501, 107
      %v845 = vpop.permute.xlu0 %844
      %846 = vrot.lane.b32.xlu0 %v502, 107
      %v847 = vpop.permute.xlu0 %846
      %848 = vrot.lane.b32.xlu0 %v513, 107
      %v849 = vpop.permute.xlu0 %848
      %vm850 = vcmask 875520
      %v851 = vsel %vm850, %v843, %v845
      %v852 = vsel %vm850, %v845, %v847
      %v853 = vsel %vm850, %v847, %v849
      %854 = vrot.lane.b32.xlu0 %v500, 106
      %v855 = vpop.permute.xlu0 %854
      %856 = vrot.lane.b32.xlu0 %v501, 106
      %v857 = vpop.permute.xlu0 %856
      %858 = vrot.lane.b32.xlu0 %v502, 106
      %v859 = vpop.permute.xlu0 %858
      %860 = vrot.lane.b32.xlu0 %v513, 106
      %v861 = vpop.permute.xlu0 %860
      %vm862 = vcmask 867328
      %v863 = vsel %vm862, %v855, %v857
      %v864 = vsel %vm862, %v857, %v859
      %v865 = vsel %vm862, %v859, %v861
      %v867 = vsel %vm557, %v499, %v803
      %v869 = vsel %vm557, %v500, %v804
      %v871 = vsel %vm557, %v501, %v805
      %v873 = vsel %vm557, %v502, %v801
      %v876 = vsel %vm557, %v815, %v820
      %v878 = vsel %vm557, %v816, %v509
      %v880 = vsel %vm557, %v817, %v510
      %v882 = vsel %vm557, %v813, %v508
      %v885 = vsel %vm557, %v822, %v831
      %v888 = vsel %vm557, %v828, %v839
      %v891 = vsel %vm557, %v829, %v840
      %v894 = vsel %vm557, %v826, %v841
      %v896 = vsel %vm557, %v515, %v843
      %v898 = vsel %vm557, %v522, %v851
      %v900 = vsel %vm557, %v523, %v852
      %v902 = vsel %vm557, %v524, %v853
      %v905 = vunpack.c.l.b16 %v792
      %v906 = vunpack.c.l.b16 %v793
      %v907 = vpack.c.b16 %v906, %v905
      %924 = vrot.lane.b32.xlu0 %v867, 11
      %v925 = vpop.permute.xlu0 %924
      %926 = vrot.lane.b32.xlu0 %v869, 11
      %v927 = vpop.permute.xlu0 %926
      %928 = vrot.lane.b32.xlu0 %v871, 11
      %v929 = vpop.permute.xlu0 %928
      %930 = vrot.lane.b32.xlu0 %v873, 11
      %v931 = vpop.permute.xlu0 %930
      %932 = vrot.lane.b32.xlu0 %v876, 11
      %v933 = vpop.permute.xlu0 %932
      %934 = vrot.lane.b32.xlu0 %v878, 11
      %v935 = vpop.permute.xlu0 %934
      %936 = vrot.lane.b32.xlu0 %v880, 11
      %v937 = vpop.permute.xlu0 %936
      %938 = vrot.lane.b32.xlu0 %v882, 11
      %v939 = vpop.permute.xlu0 %938
      %940 = vrot.lane.b32.xlu0 %v885, 11
      %v941 = vpop.permute.xlu0 %940
      %942 = vrot.lane.b32.xlu0 %v888, 11
      %v943 = vpop.permute.xlu0 %942
      %944 = vrot.lane.b32.xlu0 %v891, 11
      %v945 = vpop.permute.xlu0 %944
      %946 = vrot.lane.b32.xlu0 %v894, 11
      %v947 = vpop.permute.xlu0 %946
      %948 = vrot.lane.b32.xlu0 %v896, 11
      %v949 = vpop.permute.xlu0 %948
      %950 = vrot.lane.b32.xlu0 %v898, 11
      %v951 = vpop.permute.xlu0 %950
      %952 = vrot.lane.b32.xlu0 %v900, 11
      %v953 = vpop.permute.xlu0 %952
      %954 = vrot.lane.b32.xlu0 %v902, 11
      %v955 = vpop.permute.xlu0 %954
      %956 = vrot.lane.b32.xlu0 %v855, 11
      %v957 = vpop.permute.xlu0 %956
      %958 = vrot.lane.b32.xlu0 %v863, 11
      %v959 = vpop.permute.xlu0 %958
      %960 = vrot.lane.b32.xlu0 %v864, 11
      %v961 = vpop.permute.xlu0 %960
      %962 = vrot.lane.b32.xlu0 %v865, 11
      %v963 = vpop.permute.xlu0 %962
      %vm964 = vcmask 89088
      %v965 = vsel %vm964, %v925, %v927
      %v966 = vsel %vm964, %v927, %v929
      %v967 = vsel %vm964, %v929, %v931
      %v968 = vsel %vm964, %v933, %v935
      %v969 = vsel %vm964, %v935, %v937
      %v970 = vsel %vm964, %v937, %v939
      %v971 = vsel %vm964, %v941, %v943
      %v972 = vsel %vm964, %v943, %v945
      %v973 = vsel %vm964, %v945, %v947
      %v974 = vsel %vm964, %v949, %v951
      %v975 = vsel %vm964, %v951, %v953
      %v976 = vsel %vm964, %v953, %v955
      %v977 = vsel %vm964, %v957, %v959
      %v978 = vsel %vm964, %v959, %v961
      %v979 = vsel %vm964, %v961, %v963
      %v993 = vsel %vm695, %v907, 0
      %v996 = vsel %vm557, %v977, 0
      %v999 = vsel %vm557, %v978, 0
      %v1002 = vsel %vm557, %v979, 0
      %1004 = vmatprep.subr.bf16.mxu0 %v966
      %1005 = vmatpush1.bf16.msra.mxu0 %v965
      %1006 = vmatprep.subr.bf16.mxu0 %v969
      %1007 = vmatpush1.bf16.msra.mxu0 %v968
      %1008 = vmatprep.subr.bf16.mxu0 %v972
      %1009 = vmatpush1.bf16.msra.mxu0 %v971
      %1010 = vmatprep.subr.bf16.mxu0 %v975
      %1011 = vmatpush1.bf16.msra.mxu0 %v974
      %1012 = vmatprep.subr.bf16.mxu0 %v999
      %1013 = vmatpush1.bf16.msra.mxu0 %v996
      %1014 = vmatprep.subr.bf16.mxu0 0
      %1015 = vmatpush1.bf16.msra.mxu0 0
      %1016 = vmatprep.subr.bf16.mxu0 0
      %1017 = vmatpush1.bf16.msra.mxu0 0
      %1018 = vmatprep.subr.bf16.mxu0 0
      %1019 = vmatpush1.bf16.msra.mxu0 0
      %1020 = vmatprep.subr.bf16.mxu0 0
      %1021 = vmatpush1.bf16.msra.mxu0 0
      %1022 = vmatprep.subr.bf16.mxu0 0
      %1023 = vmatpush1.bf16.msra.mxu0 0
      %1024 = vmatprep.subr.bf16.mxu0 0
      %1025 = vmatpush1.bf16.msra.mxu0 0
      %1026 = vmatprep.subr.bf16.mxu0 0
      %1027 = vmatpush1.bf16.msra.mxu0 0
      %1028 = vmatprep.subr.bf16.mxu0 0
      %1029 = vmatpush1.bf16.msra.mxu0 0
      %1030 = vmatprep.subr.bf16.mxu0 0
      %1031 = vmatpush1.bf16.msra.mxu0 0
      %1032 = vmatprep.subr.bf16.mxu0 0
      %1033 = vmatpush1.bf16.msra.mxu0 0
      %1034 = vmatprep.subr.bf16.mxu0 0
      %1035 = vmatpush1.bf16.msra.mxu0 0
      %1036 = vmatprep.mubr.bf16.mxu0 0
      %1037 = vmatmul.mubr.bf16.gmra.mrb[0].mxu0 %v993
      %v1038 = vpop.f32.mrb[0].mxu0
      %v1039 = vadd.f32 0.0, %v1038
      %v1040 = vpop.f32.mrb[0].mxu0
      %v1041 = vadd.f32 0.0, %v1040
      %v1042 = vpop.f32.mrb[0].mxu0
      %v1043 = vadd.f32 0.0, %v1042
      %v1044 = vpop.f32.mrb[0].mxu0
      %v1045 = vadd.f32 0.0, %v1044
      %1046 = vdwg.mxu0
      %1047 = vmatprep.subr.bf16.mxu0 0
      %1048 = vmatpush1.bf16.msra.mxu0 %v967
      %1049 = vmatprep.subr.bf16.mxu0 0
      %1050 = vmatpush1.bf16.msra.mxu0 %v970
      %1051 = vmatprep.subr.bf16.mxu0 0
      %1052 = vmatpush1.bf16.msra.mxu0 %v973
      %1053 = vmatprep.subr.bf16.mxu0 0
      %1054 = vmatpush1.bf16.msra.mxu0 %v976
      %1055 = vmatprep.subr.bf16.mxu0 0
      %1056 = vmatpush1.bf16.msra.mxu0 %v1002
      %1057 = vmatprep.subr.bf16.mxu0 0
      %1058 = vmatpush1.bf16.msra.mxu0 0
      %1059 = vmatprep.subr.bf16.mxu0 0
      %1060 = vmatpush1.bf16.msra.mxu0 0
      %1061 = vmatprep.subr.bf16.mxu0 0
      %1062 = vmatpush1.bf16.msra.mxu0 0
      %1063 = vmatprep.subr.bf16.mxu0 0
      %1064 = vmatpush1.bf16.msra.mxu0 0
      %1065 = vmatprep.subr.bf16.mxu0 0
      %1066 = vmatpush1.bf16.msra.mxu0 0
      %1067 = vmatprep.subr.bf16.mxu0 0
      %1068 = vmatpush1.bf16.msra.mxu0 0
      %1069 = vmatprep.subr.bf16.mxu0 0
      %1070 = vmatpush1.bf16.msra.mxu0 0
      %1071 = vmatprep.subr.bf16.mxu0 0
      %1072 = vmatpush1.bf16.msra.mxu0 0
      %1073 = vmatprep.subr.bf16.mxu0 0
      %1074 = vmatpush1.bf16.msra.mxu0 0
      %1075 = vmatprep.subr.bf16.mxu0 0
      %1076 = vmatpush1.bf16.msra.mxu0 0
      %1077 = vmatprep.subr.bf16.mxu0 0
      %1078 = vmatpush1.bf16.msra.mxu0 0
      %1079 = vmatprep.mubr.bf16.mxu0 0
      %1080 = vmatmul.mubr.bf16.gmra.mrb[0].mxu0 %v993
      %v1081 = vpop.f32.mrb[0].mxu0
      %v1082 = vadd.f32 0.0, %v1081
      %v1083 = vpop.f32.mrb[0].mxu0
      %v1084 = vpop.f32.mrb[0].mxu0
      %v1085 = vadd.f32 0.0, %v1084
      %v1086 = vpop.f32.mrb[0].mxu0
      %1087 = vdwg.mxu0
      %v1088 = vld [vmem:[%s5] sm:$0xf]
      %v1089 = vld [vmem:[%s5 + $0x4] sm:$0xf]
      %v1090 = vld [vmem:[%s5 + $0x8] sm:$0xf]
      %v1091 = vld [vmem:[%s5 + $0xc] sm:$0xf]
      %v1096 = vunpack.c.l.b16 %v1088
      %v1097 = vunpack.c.l.b16 %v1089
      %v1098 = vunpack.c.l.b16 %v1090
      %v1099 = vunpack.c.l.b16 %v1091
      %v1100 = vpack.c.b16 %v1097, %v1096
      %v1101 = vpack.c.b16 %v1099, %v1098
      %vm1102 = vcmask 64512
      %v1104 = vsel %vm1102, %v1100, 0
      %v1107 = vsel %vm1102, %v1101, 0
      %v1109 = vsel %vm557, %v500, 0
      %v1111 = vsel %vm557, %v501, 0
      %v1113 = vsel %vm557, %v502, 0
      %1115 = vmatprep.subr.bf16.mxu0 %v1111
      %1116 = vmatpush1.bf16.msra.mxu0 %v1109
      %1117 = vmatprep.subr.bf16.mxu0 0
      %1118 = vmatpush1.bf16.msra.mxu0 0
      %1119 = vmatprep.subr.bf16.mxu0 0
      %1120 = vmatpush1.bf16.msra.mxu0 0
      %1121 = vmatprep.subr.bf16.mxu0 0
      %1122 = vmatpush1.bf16.msra.mxu0 0
      %1123 = vmatprep.subr.bf16.mxu0 0
      %1124 = vmatpush1.bf16.msra.mxu0 0
      %1125 = vmatprep.subr.bf16.mxu0 0
      %1126 = vmatpush1.bf16.msra.mxu0 0
      %1127 = vmatprep.subr.bf16.mxu0 0
      %1128 = vmatpush1.bf16.msra.mxu0 0
      %1129 = vmatprep.subr.bf16.mxu0 0
      %1130 = vmatpush1.bf16.msra.mxu0 0
      %1131 = vmatprep.subr.bf16.mxu0 0
      %1132 = vmatpush1.bf16.msra.mxu0 0
      %1133 = vmatprep.subr.bf16.mxu0 0
      %1134 = vmatpush1.bf16.msra.mxu0 0
      %1135 = vmatprep.subr.bf16.mxu0 0
      %1136 = vmatpush1.bf16.msra.mxu0 0
      %1137 = vmatprep.subr.bf16.mxu0 0
      %1138 = vmatpush1.bf16.msra.mxu0 0
      %1139 = vmatprep.subr.bf16.mxu0 0
      %1140 = vmatpush1.bf16.msra.mxu0 0
      %1141 = vmatprep.subr.bf16.mxu0 0
      %1142 = vmatpush1.bf16.msra.mxu0 0
      %1143 = vmatprep.subr.bf16.mxu0 0
      %1144 = vmatpush1.bf16.msra.mxu0 0
      %1145 = vmatprep.subr.bf16.mxu0 0
      %1146 = vmatpush1.bf16.msra.mxu0 0
      %1147 = vmatprep.mubr.bf16.mxu0 0
      %1148 = vmatmul.mubr.bf16.gmra.mrb[0].mxu0 %v1104
      %v1149 = vpop.f32.mrb[0].mxu0
      %v1150 = vadd.f32 0.0, %v1149
      %v1151 = vpop.f32.mrb[0].mxu0
      %v1152 = vadd.f32 0.0, %v1151
      %v1153 = vpop.f32.mrb[0].mxu0
      %v1154 = vadd.f32 0.0, %v1153
      %v1155 = vpop.f32.mrb[0].mxu0
      %v1156 = vadd.f32 0.0, %v1155
      %1157 = vmatprep.mubr.bf16.mxu0 0
      %1158 = vmatmul.mubr.bf16.gmra.mrb[0].mxu0 %v1107
      %v1159 = vpop.f32.mrb[0].mxu0
      %v1160 = vadd.f32 0.0, %v1159
      %v1161 = vpop.f32.mrb[0].mxu0
      %v1162 = vadd.f32 0.0, %v1161
      %v1163 = vpop.f32.mrb[0].mxu0
      %v1164 = vadd.f32 0.0, %v1163
      %v1165 = vpop.f32.mrb[0].mxu0
      %v1166 = vadd.f32 0.0, %v1165
      %1167 = vdwg.mxu0
      %1168 = vmatprep.subr.bf16.mxu0 0
      %1169 = vmatpush1.bf16.msra.mxu0 %v1113
      %1170 = vmatprep.subr.bf16.mxu0 0
      %1171 = vmatpush1.bf16.msra.mxu0 0
      %1172 = vmatprep.subr.bf16.mxu0 0
      %1173 = vmatpush1.bf16.msra.mxu0 0
      %1174 = vmatprep.subr.bf16.mxu0 0
      %1175 = vmatpush1.bf16.msra.mxu0 0
      %1176 = vmatprep.subr.bf16.mxu0 0
      %1177 = vmatpush1.bf16.msra.mxu0 0
      %1178 = vmatprep.subr.bf16.mxu0 0
      %1179 = vmatpush1.bf16.msra.mxu0 0
      %1180 = vmatprep.subr.bf16.mxu0 0
      %1181 = vmatpush1.bf16.msra.mxu0 0
      %1182 = vmatprep.subr.bf16.mxu0 0
      %1183 = vmatpush1.bf16.msra.mxu0 0
      %1184 = vmatprep.subr.bf16.mxu0 0
      %1185 = vmatpush1.bf16.msra.mxu0 0
      %1186 = vmatprep.subr.bf16.mxu0 0
      %1187 = vmatpush1.bf16.msra.mxu0 0
      %1188 = vmatprep.subr.bf16.mxu0 0
      %1189 = vmatpush1.bf16.msra.mxu0 0
      %1190 = vmatprep.subr.bf16.mxu0 0
      %1191 = vmatpush1.bf16.msra.mxu0 0
      %1192 = vmatprep.subr.bf16.mxu0 0
      %1193 = vmatpush1.bf16.msra.mxu0 0
      %1194 = vmatprep.subr.bf16.mxu0 0
      %1195 = vmatpush1.bf16.msra.mxu0 0
      %1196 = vmatprep.subr.bf16.mxu0 0
      %1197 = vmatpush1.bf16.msra.mxu0 0
      %1198 = vmatprep.subr.bf16.mxu0 0
      %1199 = vmatpush1.bf16.msra.mxu0 0
      %1200 = vmatprep.mubr.bf16.mxu0 0
      %1201 = vmatmul.mubr.bf16.gmra.mrb[0].mxu0 %v1104
      %v1202 = vpop.f32.mrb[0].mxu0
      %v1203 = vadd.f32 0.0, %v1202
      %v1204 = vpop.f32.mrb[0].mxu0
      %v1205 = vpop.f32.mrb[0].mxu0
      %v1206 = vadd.f32 0.0, %v1205
      %v1207 = vpop.f32.mrb[0].mxu0
      %1208 = vmatprep.mubr.bf16.mxu0 0
      %1209 = vmatmul.mubr.bf16.gmra.mrb[0].mxu0 %v1107
      %v1210 = vpop.f32.mrb[0].mxu0
      %v1211 = vadd.f32 0.0, %v1210
      %v1212 = vpop.f32.mrb[0].mxu0
      %v1213 = vpop.f32.mrb[0].mxu0
      %v1214 = vadd.f32 0.0, %v1213
      %v1215 = vpop.f32.mrb[0].mxu0
      %1216 = vdwg.mxu0
      %v1217 = vpack.c.bf16 %v747, %v743
      %v1218 = vpack.c.bf16 %v749, %v745
      %v1219 = vpack.c.bf16 %v789, %v786
      %v1223 = vunpack.c.l.b16 %v1217
      %v1224 = vunpack.c.l.b16 %v1218
      %v1225 = vunpack.c.l.b16 %v1219
      %v1226 = vunpack.c.h.b16 %v1217
      %v1227 = vunpack.c.h.b16 %v1218
      %v1228 = vunpack.c.h.b16 %v1219
      %v1229 = vpack.c.b16 %v1224, %v1223
      %v1230 = vpack.c.b16 %v1225, %v1225
      %v1231 = vpack.c.b16 %v1227, %v1226
      %v1232 = vpack.c.b16 %v1228, %v1228
      %1237 = vst [vmem:[%s437] sm:$0xff] %v1229
      %1238 = vst [vmem:[%s437 + $0x8] sm:$0xf] %v1230
      %1239 = vst [vmem:[%s437 + $0xc] sm:$0xff] %v1231
      %1240 = vst [vmem:[%s437 + $0x14] sm:$0xf] %v1232
      %v1241 = vpack.c.bf16 %v1043, %v1039
      %v1242 = vpack.c.bf16 %v1045, %v1041
      %v1243 = vpack.c.bf16 %v1085, %v1082
      %v1247 = vunpack.c.l.b16 %v1241
      %v1248 = vunpack.c.l.b16 %v1242
      %v1249 = vunpack.c.l.b16 %v1243
      %v1250 = vunpack.c.h.b16 %v1241
      %v1251 = vunpack.c.h.b16 %v1242
      %v1252 = vunpack.c.h.b16 %v1243
      %v1253 = vpack.c.b16 %v1248, %v1247
      %v1254 = vpack.c.b16 %v1249, %v1249
      %v1255 = vpack.c.b16 %v1251, %v1250
      %v1256 = vpack.c.b16 %v1252, %v1252
      %1261 = vst [vmem:[%s437 + $0x18] sm:$0xff] %v1253
      %1262 = vst [vmem:[%s437 + $0x20] sm:$0xf] %v1254
      %1263 = vst [vmem:[%s437 + $0x24] sm:$0xff] %v1255
      %1264 = vst [vmem:[%s437 + $0x2c] sm:$0xf] %v1256
      %v1265 = vld [vmem:[%s6] sm:$0x7]
      %v1267 = vlaneseq
      %v1268 = vshrl.u32 %v1267, 7
      %v1269 = vsub.s32 0, %v1268
      %v1270 = vrot.slane %v1265, %v1269
      %v1271 = vlaneseq
      %v1272 = vshrl.u32 %v1271, 7
      %v1273 = vsub.s32 1, %v1272
      %v1274 = vrot.slane %v1265, %v1273
      %v1275 = vlaneseq
      %v1276 = vshrl.u32 %v1275, 7
      %v1277 = vsub.s32 2, %v1276
      %v1278 = vrot.slane %v1265, %v1277
      %v1282 = vmul.f32 %v743, %v1270
      %v1283 = vmul.f32 %v745, %v1274
      %v1284 = vmul.f32 %v786, %v1278
      %v1285 = vmul.f32 %v747, %v1270
      %v1286 = vmul.f32 %v749, %v1274
      %v1287 = vmul.f32 %v789, %v1278
      %v1288 = vmul.f32 %v1039, %v1270
      %v1289 = vmul.f32 %v1041, %v1274
      %v1290 = vmul.f32 %v1082, %v1278
      %v1291 = vmul.f32 %v1043, %v1270
      %v1292 = vmul.f32 %v1045, %v1274
      %v1293 = vmul.f32 %v1085, %v1278
      %v1294 = vmul.f32 %v1150, %v1270
      %v1295 = vmul.f32 %v1152, %v1274
      %v1296 = vmul.f32 %v1203, %v1278
      %v1297 = vmul.f32 %v1154, %v1270
      %v1298 = vmul.f32 %v1156, %v1274
      %v1299 = vmul.f32 %v1206, %v1278
      %v1300 = vmul.f32 %v1160, %v1270
      %v1301 = vmul.f32 %v1162, %v1274
      %v1302 = vmul.f32 %v1211, %v1278
      %v1303 = vmul.f32 %v1164, %v1270
      %v1304 = vmul.f32 %v1166, %v1274
      %v1305 = vmul.f32 %v1214, %v1278
      %v1306 = vadd.f32 %v1282, %v1283
      %v1307 = vadd.f32 %v1306, %v1284
      %1308 = vadd.xlane.f32.xlu0 %v1307
      %v1309 = vpop.xlane.xlu0 %1308
      %v1310 = vadd.f32 %v1285, %v1286
      %v1311 = vadd.f32 %v1310, %v1287
      %1312 = vadd.xlane.f32.xlu0 %v1311
      %v1313 = vpop.xlane.xlu0 %1312
      %v1314 = vadd.f32 %v1288, %v1289
      %v1315 = vadd.f32 %v1314, %v1290
      %1316 = vadd.xlane.f32.xlu0 %v1315
      %v1317 = vpop.xlane.xlu0 %1316
      %v1318 = vadd.f32 %v1291, %v1292
      %v1319 = vadd.f32 %v1318, %v1293
      %1320 = vadd.xlane.f32.xlu0 %v1319
      %v1321 = vpop.xlane.xlu0 %1320
      %v1322 = vmul.f32 %v1282, %v743
      %v1323 = vmul.f32 %v1283, %v745
      %v1324 = vmul.f32 %v1284, %v786
      %v1325 = vmul.f32 %v1285, %v747
      %v1326 = vmul.f32 %v1286, %v749
      %v1327 = vmul.f32 %v1287, %v789
      %v1328 = vadd.f32 %v1322, %v1323
      %v1329 = vadd.f32 %v1328, %v1324
      %1330 = vadd.xlane.f32.xlu0 %v1329
      %v1331 = vpop.xlane.xlu0 %1330
      %v1332 = vadd.f32 %v1325, %v1326
      %v1333 = vadd.f32 %v1332, %v1327
      %1334 = vadd.xlane.f32.xlu0 %v1333
      %v1335 = vpop.xlane.xlu0 %1334
      %v1336 = vmul.f32 %v1288, %v1039
      %v1337 = vmul.f32 %v1289, %v1041
      %v1338 = vmul.f32 %v1290, %v1082
      %v1339 = vmul.f32 %v1291, %v1043
      %v1340 = vmul.f32 %v1292, %v1045
      %v1341 = vmul.f32 %v1293, %v1085
      %v1342 = vadd.f32 %v1336, %v1337
      %v1343 = vadd.f32 %v1342, %v1338
      %1344 = vadd.xlane.f32.xlu0 %v1343
      %v1345 = vpop.xlane.xlu0 %1344
      %v1346 = vadd.f32 %v1339, %v1340
      %v1347 = vadd.f32 %v1346, %v1341
      %1348 = vadd.xlane.f32.xlu0 %v1347
      %v1349 = vpop.xlane.xlu0 %1348
      %v1350 = vadd.f32 %v1294, %v1295
      %v1351 = vadd.f32 %v1350, %v1296
      %1352 = vadd.xlane.f32.xlu0 %v1351
      %v1353 = vpop.xlane.xlu0 %1352
      %v1354 = vadd.f32 %v1297, %v1298
      %v1355 = vadd.f32 %v1354, %v1299
      %1356 = vadd.xlane.f32.xlu0 %v1355
      %v1357 = vpop.xlane.xlu0 %1356
      %v1358 = vadd.f32 %v1300, %v1301
      %v1359 = vadd.f32 %v1358, %v1302
      %1360 = vadd.xlane.f32.xlu0 %v1359
      %v1361 = vpop.xlane.xlu0 %1360
      %v1362 = vadd.f32 %v1303, %v1304
      %v1363 = vadd.f32 %v1362, %v1305
      %1364 = vadd.xlane.f32.xlu0 %v1363
      %v1365 = vpop.xlane.xlu0 %1364
      %v1366 = vmul.f32 %v1294, %v1150
      %v1367 = vmul.f32 %v1295, %v1152
      %v1368 = vmul.f32 %v1296, %v1203
      %v1369 = vmul.f32 %v1297, %v1154
      %v1370 = vmul.f32 %v1298, %v1156
      %v1371 = vmul.f32 %v1299, %v1206
      %v1372 = vmul.f32 %v1300, %v1160
      %v1373 = vmul.f32 %v1301, %v1162
      %v1374 = vmul.f32 %v1302, %v1211
      %v1375 = vmul.f32 %v1303, %v1164
      %v1376 = vmul.f32 %v1304, %v1166
      %v1377 = vmul.f32 %v1305, %v1214
      %v1378 = vadd.f32 %v1366, %v1367
      %v1379 = vadd.f32 %v1378, %v1368
      %1380 = vadd.xlane.f32.xlu0 %v1379
      %v1381 = vpop.xlane.xlu0 %1380
      %v1382 = vadd.f32 %v1369, %v1370
      %v1383 = vadd.f32 %v1382, %v1371
      %1384 = vadd.xlane.f32.xlu0 %v1383
      %v1385 = vpop.xlane.xlu0 %1384
      %v1386 = vadd.f32 %v1372, %v1373
      %v1387 = vadd.f32 %v1386, %v1374
      %1388 = vadd.xlane.f32.xlu0 %v1387
      %v1389 = vpop.xlane.xlu0 %1388
      %v1390 = vadd.f32 %v1375, %v1376
      %v1391 = vadd.f32 %v1390, %v1377
      %1392 = vadd.xlane.f32.xlu0 %v1391
      %v1393 = vpop.xlane.xlu0 %1392
      %1398 = vrot.lane.b32.xlu0 %v1331, 1
      %v1399 = vpop.permute.xlu0 %1398
      %1400 = vrot.lane.b32.xlu0 %v1335, 1
      %v1401 = vpop.permute.xlu0 %1400
      %1402 = vrot.lane.b32.xlu0 %v1345, 1
      %v1403 = vpop.permute.xlu0 %1402
      %1404 = vrot.lane.b32.xlu0 %v1349, 1
      %v1405 = vpop.permute.xlu0 %1404
      %vm1410 = vcmask 7168
      %v1411 = vsel %vm1410, %v1309, %v1399
      %v1412 = vsel %vm1410, %v1313, %v1401
      %v1413 = vsel %vm1410, %v1317, %v1403
      %v1414 = vsel %vm1410, %v1321, %v1405
      %vm1415 = vcmask 15360
      %v1416 = vsel %vm1415, %v1411, %v1353
      %v1417 = vsel %vm1415, %v1412, %v1357
      %v1418 = vsel %vm1415, %v1413, %v1361
      %v1419 = vsel %vm1415, %v1414, %v1365
      %vm1420 = vcmask 23552
      %v1421 = vsel %vm1420, %v1416, %v1381
      %v1422 = vsel %vm1420, %v1417, %v1385
      %v1423 = vsel %vm1420, %v1418, %v1389
      %v1424 = vsel %vm1420, %v1419, %v1393
      %vm1425 = vcmask 31744
      %1426 = vst.msk [vmem:[%s446] sm:$0xff] %vm1425, %v1421
      %1427 = vst.msk [vmem:[%s446 + $0x8] sm:$0xff] %vm1425, %v1422
      %1428 = vst.msk [vmem:[%s446 + $0x10] sm:$0xff] %vm1425, %v1423
      %1429 = vst.msk [vmem:[%s446 + $0x18] sm:$0xff] %vm1425, %v1424
      %p1430 = scmp.lt.s32.totalorder %s24, 1
      %s1431 = scalar_select %p1430, %s24, 1
      %p1432 = scmp.lt.s32.totalorder %s25, 7
      %s1433 = scalar_select %p1432, %s25, 7
      %s1434 = smul.addr %s1433, 12
      %s1435 = smul.addr %s1431, 96
      %s1436 = sadd.s32 %s1434, %s1435
      %s1437 = smul.addr %s1436, 4
      %s1438 = scalar_lea.vmem %s7, %s1437
      %p1439 = scmp.lt.s32.totalorder %s24, 1
      %s1440 = scalar_select %p1439, %s24, 1
      %p1441 = scmp.lt.s32.totalorder %s25, 7
      %s1442 = scalar_select %p1441, %s25, 7
      %s1443 = smul.addr %s1442, 4
      %s1444 = smul.addr %s1440, 32
      %s1445 = sadd.s32 %s1443, %s1444
      %s1446 = smul.addr %s1445, 8
      %s1447 = scalar_lea.vmem %s8, %s1446
      // Predicated region
      $region49: #{mixconvblock_forward.3} parent=47 // pred_check
        %p1448 = pneg %p224
      $region50: #{mixconvblock_forward.3} parent=47 // pred_check_branch
        %1450 = sbr.rel (%p1448) target = $region52
      $region51: #{mixconvblock_forward.3} parent=47 // pred_region
        _
      $region52: #{mixconvblock_forward.3} parent=47 // pred_fallthru
        _
      // Predicated region
      $region53: #{mixconvblock_forward.3} parent=47 // pred_check
        %p1451 = pneg %p252
      $region54: #{mixconvblock_forward.3} parent=47 // pred_check_branch
        %1453 = sbr.rel (%p1451) target = $region56
      $region55: #{mixconvblock_forward.3} parent=47 // pred_region
        _
      $region56: #{mixconvblock_forward.3} parent=47 // pred_fallthru
        _
    $region48: #{mixconvblock_forward.3} parent=5 // pred_fallthru
      _
    %p1454 = scmp.le.s32.totalorder 2, %s15
    // Predicated region
    $region57: #{mixconvblock_forward.3} parent=5 // pred_check
      %p1455 = pneg %p1454
    $region58: #{mixconvblock_forward.3} parent=5 // pred_check_branch
      %1457 = sbr.rel (%p1455) target = $region60
    $region59: #{mixconvblock_forward.3} parent=5 // pred_region
      %s1458 = ssub.s32 %s15, 2
      // Predicated region
      $region61: #{mixconvblock_forward.3} parent=59 // pred_check
        %p1459 = pneg %p230
      $region62: #{mixconvblock_forward.3} parent=59 // pred_check_branch
        %1461 = sbr.rel (%p1459) target = $region64
      $region63: #{mixconvblock_forward.3} parent=59 // pred_region
        %p1462 = scmp.lt.s32.totalorder %s26, 1
        %s1463 = scalar_select %p1462, %s26, 1
        %p1464 = scmp.lt.s32.totalorder %s27, 7
        %s1465 = scalar_select %p1464, %s27, 7
        %s1466 = smul.addr %s1465, 12
        %s1467 = smul.addr %s1463, 96
        %s1468 = sadd.s32 %s1466, %s1467
        %s1469 = smul.addr %s1468, 4
        %s1470 = scalar_lea.vmem %s7, %s1469
      $region64: #{mixconvblock_forward.3} parent=59 // pred_fallthru
        _
      // Predicated region
      $region65: #{mixconvblock_forward.3} parent=59 // pred_check
        %p1471 = pneg %p258
      $region66: #{mixconvblock_forward.3} parent=59 // pred_check_branch
        %1473 = sbr.rel (%p1471) target = $region68
      $region67: #{mixconvblock_forward.3} parent=59 // pred_region
        %p1474 = scmp.lt.s32.totalorder %s26, 1
        %s1475 = scalar_select %p1474, %s26, 1
        %p1476 = scmp.lt.s32.totalorder %s27, 7
        %s1477 = scalar_select %p1476, %s27, 7
        %s1478 = smul.addr %s1477, 4
        %s1479 = smul.addr %s1475, 32
        %s1480 = sadd.s32 %s1478, %s1479
        %s1481 = smul.addr %s1480, 8
        %s1482 = scalar_lea.vmem %s8, %s1481
      $region68: #{mixconvblock_forward.3} parent=59 // pred_fallthru
        _
    $region60: #{mixconvblock_forward.3} parent=5 // pred_fallthru
      _
  $region6: #{mixconvblock_forward.3} parent=0 // loop_footer
    %s19 = sadd.s32 1, %s15
  $region7: #{mixconvblock_forward.3} parent=0 // loop_footer_branch
    %14 = sbr.rel target = $region3
  $region8: #{mixconvblock_forward.3} parent=0 // loop_exit
    _

// kernel: mixconvblock_forward.5
$region0: #{mixconvblock_forward.5}
  #allocation0 [shape = 'u32[]', space=smem, size = 0x4, offset = 0x4, fixed_abs, tag = 'smem constant byte address 0x4 - core index']
  #allocation1 [shape = 'u32[144,128]{1,0:T(1,128)}', space=vmem, size = 0x12000, scoped, tag = 'internal scratch']
  %s0 = inlined_call_operand.vmem [shape: bf16[2,8,32,128], index: 0, kind: input, shape index: {}]
  %s1 = inlined_call_operand.vmem [shape: bf16[2,10,8,640], index: 1, kind: input, shape index: {}]
  %s2 = inlined_call_operand.vmem [shape: bf16[32,8], index: 2, kind: input, shape index: {}]
  %s3 = inlined_call_operand.vmem [shape: f32[2,32,2], index: 3, kind: input, shape index: {}]
  %s4 = inlined_call_operand.vmem [shape: f32[2,32,2], index: 4, kind: input, shape index: {}]
  %s5 = inlined_call_operand.vmem [shape: bf16[2,8,32,128], index: 5, kind: output, shape index: {}]
  %s6 = sld [smem:[#allocation0]]
  $region53: #{mixconvblock_forward.5} parent=0
    _
  %s8 = ssub.s32 1, %s6
  %s9 = scalar_select 0, %s8, %s6
  loop: start=0, step=1, limit=18
  $region2: #{mixconvblock_forward.5} parent=0 // loop_pre_header
    _
  $region3: #{mixconvblock_forward.5} parent=0 // loop_header
    %s11 = sphi 0, %s15
    %p12 = scmp.ge.s32.totalorder %s11, 18
    %s18 = sphi 0, %s30
    %s19 = sphi 0, %s26
    %s20 = sphi 0, %s18
    %s21 = sphi 0, %s19
    %s22 = sphi 0, %s20
    %s23 = sphi 0, %s21
    %s35 = sphi 0, %s37
    %s38 = sphi 0, %s35
    %s39 = sphi 0, %s38
    %s55 = sphi 0, %s39
    %s65 = sphi 0, %s67
    %s68 = sphi 0, %s65
    %s69 = sphi 0, %s68
    %s85 = sphi 0, %s69
    %s89 = sphi 0, %s89
    %s91 = sphi 0, %s89
    %s92 = sphi 0, %s91
    %s106 = sphi 0, %s92
    %s112 = sphi 0, %s114
    %s115 = sphi 0, %s112
    %s116 = sphi 0, %s115
    %s132 = sphi 0, %s116
    %s138 = sphi 0, %s140
    %s141 = sphi 0, %s138
    %s142 = sphi 0, %s141
    %s158 = sphi 0, %s142
    %s166 = sphi 0, %s168
    %s169 = sphi 0, %s166
    %s170 = sphi 0, %s169
    %s186 = sphi 0, %s170
  $region4: #{mixconvblock_forward.5} parent=0 // loop_header_branch
    %14 = sbr.rel (%p12) target = $region8
  $region5: #{mixconvblock_forward.5} parent=0 // loop_body
    %s16 = ssub.s32 %s11, 1
    %s17 = ssub.s32 %s11, 2
    %s24 = sadd.s32 1, %s19
    %p25 = scmp.ge.s32.totalorder %s24, 8
    %s26 = scalar_select %p25, 0, %s24
    %s27 = sadd.s32 1, %s18
    %s28 = scalar_select %p25, %s27, %s18
    %p29 = scmp.ge.s32.totalorder %s28, 2
    %s30 = scalar_select %p29, 0, %s28
    %s31 = ssub.s32 %s18, %s30
    %s32 = ssub.s32 %s19, %s26
    %s33 = sor.u32 %s31, %s32
    %p34 = scmp.eq.s32.totalorder %s33, 0
    %s36 = sadd.s32 %s35, 1
    %s37 = scalar_select %p34, %s35, %s36
    %p40 = pneg %p34
    %p41 = scmp.eq.s32.totalorder %s11, 15
    %p42 = por %p40, %p41
    %p43 = scmp.ne.s32.totalorder %s35, %s38
    %p44 = scmp.eq.s32.totalorder %s11, 0
    %p45 = por %p43, %p44
    %p46 = scmp.ne.s32.totalorder %s35, %s38
    %p47 = scmp.eq.s32.totalorder %s16, 15
    %p48 = por %p46, %p47
    %p49 = scmp.ne.s32.totalorder %s38, %s39
    %p50 = scmp.eq.s32.totalorder %s16, 0
    %p51 = por %p49, %p50
    %p52 = scmp.ne.s32.totalorder %s38, %s39
    %p53 = scmp.eq.s32.totalorder %s17, 15
    %p54 = por %p52, %p53
    %p56 = scmp.ne.s32.totalorder %s39, %s55
    %p57 = scmp.eq.s32.totalorder %s17, 0
    %p58 = por %p56, %p57
    %s59 = sadd.s32 %s19, 1
    %s60 = sadd.s32 %s26, 1
    %s61 = ssub.s32 %s18, %s30
    %s62 = ssub.s32 %s59, %s60
    %s63 = sor.u32 %s61, %s62
    %p64 = scmp.eq.s32.totalorder %s63, 0
    %s66 = sadd.s32 %s65, 1
    %s67 = scalar_select %p64, %s65, %s66
    %p70 = pneg %p64
    %p71 = scmp.eq.s32.totalorder %s11, 15
    %p72 = por %p70, %p71
    %p73 = scmp.ne.s32.totalorder %s65, %s68
    %p74 = scmp.eq.s32.totalorder %s11, 0
    %p75 = por %p73, %p74
    %p76 = scmp.ne.s32.totalorder %s65, %s68
    %p77 = scmp.eq.s32.totalorder %s16, 15
    %p78 = por %p76, %p77
    %p79 = scmp.ne.s32.totalorder %s68, %s69
    %p80 = scmp.eq.s32.totalorder %s16, 0
    %p81 = por %p79, %p80
    %p82 = scmp.ne.s32.totalorder %s68, %s69
    %p83 = scmp.eq.s32.totalorder %s17, 15
    %p84 = por %p82, %p83
    %p86 = scmp.ne.s32.totalorder %s69, %s85
    %p87 = scmp.eq.s32.totalorder %s17, 0
    %p88 = por %p86, %p87
    %s90 = sadd.s32 %s89, 1
    %p93 = scmp.eq.s32.totalorder %s11, 15
    %p94 = scmp.ne.s32.totalorder %s89, %s91
    %p95 = scmp.eq.s32.totalorder %s11, 0
    %p96 = por %p94, %p95
    %p97 = scmp.ne.s32.totalorder %s89, %s91
    %p98 = scmp.eq.s32.totalorder %s16, 15
    %p99 = por %p97, %p98
    %p100 = scmp.ne.s32.totalorder %s91, %s92
    %p101 = scmp.eq.s32.totalorder %s16, 0
    %p102 = por %p100, %p101
    %p103 = scmp.ne.s32.totalorder %s91, %s92
    %p104 = scmp.eq.s32.totalorder %s17, 15
    %p105 = por %p103, %p104
    %p107 = scmp.ne.s32.totalorder %s92, %s106
    %p108 = scmp.eq.s32.totalorder %s17, 0
    %p109 = por %p107, %p108
    %s110 = ssub.s32 %s18, %s30
    %p111 = scmp.eq.s32.totalorder %s110, 0
    %s113 = sadd.s32 %s112, 1
    %s114 = scalar_select %p111, %s112, %s113
    %p117 = pneg %p111
    %p118 = scmp.eq.s32.totalorder %s11, 15
    %p119 = por %p117, %p118
    %p120 = scmp.ne.s32.totalorder %s112, %s115
    %p121 = scmp.eq.s32.totalorder %s11, 0
    %p122 = por %p120, %p121
    %p123 = scmp.ne.s32.totalorder %s112, %s115
    %p124 = scmp.eq.s32.totalorder %s16, 15
    %p125 = por %p123, %p124
    %p126 = scmp.ne.s32.totalorder %s115, %s116
    %p127 = scmp.eq.s32.totalorder %s16, 0
    %p128 = por %p126, %p127
    %p129 = scmp.ne.s32.totalorder %s115, %s116
    %p130 = scmp.eq.s32.totalorder %s17, 15
    %p131 = por %p129, %p130
    %p133 = scmp.ne.s32.totalorder %s116, %s132
    %p134 = scmp.eq.s32.totalorder %s17, 0
    %p135 = por %p133, %p134
    %s136 = ssub.s32 %s18, %s30
    %p137 = scmp.eq.s32.totalorder %s136, 0
    %s139 = sadd.s32 %s138, 1
    %s140 = scalar_select %p137, %s138, %s139
    %p143 = pneg %p137
    %p144 = scmp.eq.s32.totalorder %s11, 15
    %p145 = por %p143, %p144
    %p146 = scmp.ne.s32.totalorder %s138, %s141
    %p147 = scmp.eq.s32.totalorder %s11, 0
    %p148 = por %p146, %p147
    %p149 = scmp.ne.s32.totalorder %s138, %s141
    %p150 = scmp.eq.s32.totalorder %s16, 15
    %p151 = por %p149, %p150
    %p152 = scmp.ne.s32.totalorder %s141, %s142
    %p153 = scmp.eq.s32.totalorder %s16, 0
    %p154 = por %p152, %p153
    %p155 = scmp.ne.s32.totalorder %s141, %s142
    %p156 = scmp.eq.s32.totalorder %s17, 15
    %p157 = por %p155, %p156
    %p159 = scmp.ne.s32.totalorder %s142, %s158
    %p160 = scmp.eq.s32.totalorder %s17, 0
    %p161 = por %p159, %p160
    %s162 = ssub.s32 %s18, %s30
    %s163 = ssub.s32 %s19, %s26
    %s164 = sor.u32 %s162, %s163
    %p165 = scmp.eq.s32.totalorder %s164, 0
    %s167 = sadd.s32 %s166, 1
    %s168 = scalar_select %p165, %s166, %s167
    %p171 = pneg %p165
    %p172 = scmp.eq.s32.totalorder %s11, 15
    %p173 = por %p171, %p172
    %p174 = scmp.ne.s32.totalorder %s166, %s169
    %p175 = scmp.eq.s32.totalorder %s11, 0
    %p176 = por %p174, %p175
    %p177 = scmp.ne.s32.totalorder %s166, %s169
    %p178 = scmp.eq.s32.totalorder %s16, 15
    %p179 = por %p177, %p178
    %p180 = scmp.ne.s32.totalorder %s169, %s170
    %p181 = scmp.eq.s32.totalorder %s16, 0
    %p182 = por %p180, %p181
    %p183 = scmp.ne.s32.totalorder %s169, %s170
    %p184 = scmp.eq.s32.totalorder %s17, 15
    %p185 = por %p183, %p184
    %p187 = scmp.ne.s32.totalorder %s170, %s186
    %p188 = scmp.eq.s32.totalorder %s17, 0
    %p189 = por %p187, %p188
    %p190 = scmp.le.s32.totalorder 1, %s11
    %p191 = scmp.lt.s32.totalorder %s11, 17
    %p192 = pnand %p190, %p191
    %p193 = pneg %p192
    // Predicated region
    $region9: #{mixconvblock_forward.5} parent=5 // pred_check
      _
    $region10: #{mixconvblock_forward.5} parent=5 // pred_check_branch
      %195 = sbr.rel (%p192) target = $region12
    $region11: #{mixconvblock_forward.5} parent=5 // pred_region
      %s196 = ssub.s32 %s11, 1
      // Predicated region
      $region13: #{mixconvblock_forward.5} parent=11 // pred_check
        %p197 = pneg %p102
      $region14: #{mixconvblock_forward.5} parent=11 // pred_check_branch
        %199 = sbr.rel (%p197) target = $region16
      $region15: #{mixconvblock_forward.5} parent=11 // pred_region
        _
      $region16: #{mixconvblock_forward.5} parent=11 // pred_fallthru
        _
    $region12: #{mixconvblock_forward.5} parent=5 // pred_fallthru
      _
    %p200 = scmp.lt.s32.totalorder %s11, 16
    // Predicated region
    $region17: #{mixconvblock_forward.5} parent=5 // pred_check
      %p201 = pneg %p200
    $region18: #{mixconvblock_forward.5} parent=5 // pred_check_branch
      %203 = sbr.rel (%p201) target = $region20
    $region19: #{mixconvblock_forward.5} parent=5 // pred_region
      // Predicated region
      $region21: #{mixconvblock_forward.5} parent=19 // pred_check
        %p204 = pneg %p45
      $region22: #{mixconvblock_forward.5} parent=19 // pred_check_branch
        %206 = sbr.rel (%p204) target = $region24
      $region23: #{mixconvblock_forward.5} parent=19 // pred_region
        %p207 = scmp.lt.s32.totalorder %s18, 1
        %s208 = scalar_select %p207, %s18, 1
        %p209 = scmp.lt.s32.totalorder %s19, 7
        %s210 = scalar_select %p209, %s19, 7
        %s211 = smul.addr %s210, 4
        %s212 = smul.addr %s208, 32
        %s213 = sadd.s32 %s211, %s212
        %s214 = smul.addr %s213, 4
        %s215 = scalar_lea.vmem %s0, %s214
      $region24: #{mixconvblock_forward.5} parent=19 // pred_fallthru
        _
      // Predicated region
      $region25: #{mixconvblock_forward.5} parent=19 // pred_check
        %p216 = pneg %p75
      $region26: #{mixconvblock_forward.5} parent=19 // pred_check_branch
        %218 = sbr.rel (%p216) target = $region28
      $region27: #{mixconvblock_forward.5} parent=19 // pred_region
        %s219 = sadd.s32 %s19, 1
        %p220 = scmp.lt.s32.totalorder %s18, 1
        %s221 = scalar_select %p220, %s18, 1
        %p222 = scmp.lt.s32.totalorder %s219, 9
        %s223 = scalar_select %p222, %s219, 9
        %s224 = smul.addr %s223, 5
        %s225 = smul.addr %s221, 50
        %s226 = sadd.s32 %s224, %s225
        %s227 = smul.addr %s226, 4
        %s228 = scalar_lea.vmem %s1, %s227
        %s229 = sadd.s32 %s19, 1
      $region28: #{mixconvblock_forward.5} parent=19 // pred_fallthru
        _
      // Predicated region
      $region29: #{mixconvblock_forward.5} parent=19 // pred_check
        %p230 = pneg %p122
      $region30: #{mixconvblock_forward.5} parent=19 // pred_check_branch
        %232 = sbr.rel (%p230) target = $region32
      $region31: #{mixconvblock_forward.5} parent=19 // pred_region
        %p233 = scmp.lt.s32.totalorder %s18, 1
        %s234 = scalar_select %p233, %s18, 1
        %s235 = smul.addr %s234, 4
        %s236 = smul.addr %s235, 8
        %s237 = scalar_lea.vmem %s3, %s236
      $region32: #{mixconvblock_forward.5} parent=19 // pred_fallthru
        _
      // Predicated region
      $region33: #{mixconvblock_forward.5} parent=19 // pred_check
        %p238 = pneg %p148
      $region34: #{mixconvblock_forward.5} parent=19 // pred_check_branch
        %240 = sbr.rel (%p238) target = $region36
      $region35: #{mixconvblock_forward.5} parent=19 // pred_region
        %p241 = scmp.lt.s32.totalorder %s18, 1
        %s242 = scalar_select %p241, %s18, 1
        %s243 = smul.addr %s242, 4
        %s244 = smul.addr %s243, 8
        %s245 = scalar_lea.vmem %s4, %s244
      $region36: #{mixconvblock_forward.5} parent=19 // pred_fallthru
        _
    $region20: #{mixconvblock_forward.5} parent=5 // pred_fallthru
      _
    %p246 = scmp.le.s32.totalorder 1, %s11
    %p247 = scmp.lt.s32.totalorder %s11, 17
    %p248 = pnand %p246, %p247
    %p249 = pneg %p248
    // Predicated region
    $region37: #{mixconvblock_forward.5} parent=5 // pred_check
      _
    $region38: #{mixconvblock_forward.5} parent=5 // pred_check_branch
      %251 = sbr.rel (%p248) target = $region40
    $region39: #{mixconvblock_forward.5} parent=5 // pred_region
      %s252 = ssub.s32 %s11, 1
      %p253 = scmp.lt.s32.totalorder %s20, 1
      %s254 = scalar_select %p253, %s20, 1
      %p255 = scmp.lt.s32.totalorder %s21, 7
      %s256 = scalar_select %p255, %s21, 7
      %s257 = smul.addr %s256, 4
      %s258 = smul.addr %s254, 32
      %s259 = sadd.s32 %s257, %s258
      %s260 = smul.addr %s259, 4
      %s261 = scalar_lea.vmem %s0, %s260
      %p262 = pneg %p51
      %p263 = pneg %p48
      %s264 = sadd.s32 %s21, 1
      %p265 = scmp.lt.s32.totalorder %s20, 1
      %s266 = scalar_select %p265, %s20, 1
      %p267 = scmp.lt.s32.totalorder %s264, 9
      %s268 = scalar_select %p267, %s264, 9
      %s269 = smul.addr %s268, 5
      %s270 = smul.addr %s266, 50
      %s271 = sadd.s32 %s269, %s270
      %s272 = smul.addr %s271, 4
      %s273 = scalar_lea.vmem %s1, %s272
      %p274 = pneg %p81
      %p275 = pneg %p78
      %p276 = pneg %p102
      %p277 = pneg %p99
      %p278 = scmp.lt.s32.totalorder %s20, 1
      %s279 = scalar_select %p278, %s20, 1
      %s280 = smul.addr %s279, 4
      %s281 = smul.addr %s280, 8
      %s282 = scalar_lea.vmem %s3, %s281
      %p283 = pneg %p128
      %p284 = pneg %p125
      %p285 = scmp.lt.s32.totalorder %s20, 1
      %s286 = scalar_select %p285, %s20, 1
      %s287 = smul.addr %s286, 4
      %s288 = smul.addr %s287, 8
      %s289 = scalar_lea.vmem %s4, %s288
      %p290 = pneg %p154
      %p291 = pneg %p151
      %p292 = pneg %p182
      %p293 = pneg %p179
      %p294 = scmp.lt.s32.totalorder %s20, 1
      %s295 = scalar_select %p294, %s20, 1
      %p296 = scmp.lt.s32.totalorder %s21, 7
      %s297 = scalar_select %p296, %s21, 7
      %s298 = smul.addr %s297, 4
      %s299 = smul.addr %s295, 32
      %s300 = sadd.s32 %s298, %s299
      %s301 = smul.addr %s300, 4
      %s302 = scalar_lea.vmem %s5, %s301
      %p303 = scmp.lt.s32.totalorder %s20, 1
      %s304 = scalar_select %p303, %s20, 1
      %p305 = scmp.lt.s32.totalorder %s21, 7
      %s306 = scalar_select %p305, %s21, 7
      %s307 = smul.addr %s306, 4
      %s308 = smul.addr %s304, 32
      %s309 = sadd.s32 %s307, %s308
      %s310 = smul.addr %s309, 4
      %s311 = scalar_lea.vmem %s0, %s310
      %s312 = sadd.s32 %s21, 1
      %p313 = scmp.lt.s32.totalorder %s20, 1
      %s314 = scalar_select %p313, %s20, 1
      %p315 = scmp.lt.s32.totalorder %s312, 9
      %s316 = scalar_select %p315, %s312, 9
      %s317 = smul.addr %s316, 5
      %s318 = smul.addr %s314, 50
      %s319 = sadd.s32 %s317, %s318
      %s320 = smul.addr %s319, 4
      %s321 = scalar_lea.vmem %s1, %s320
      %s322 = sadd.s32 %s21, 1
      %p323 = scmp.lt.s32.totalorder %s20, 1
      %s324 = scalar_select %p323, %s20, 1
      %s325 = smul.addr %s324, 4
      %s326 = smul.addr %s325, 8
      %s327 = scalar_lea.vmem %s3, %s326
      %p328 = scmp.lt.s32.totalorder %s20, 1
      %s329 = scalar_select %p328, %s20, 1
      %s330 = smul.addr %s329, 4
      %s331 = smul.addr %s330, 8
      %s332 = scalar_lea.vmem %s4, %s331
      %p333 = scmp.lt.s32.totalorder %s20, 1
      %s334 = scalar_select %p333, %s20, 1
      %p335 = scmp.lt.s32.totalorder %s21, 7
      %s336 = scalar_select %p335, %s21, 7
      %s337 = smul.addr %s336, 4
      %s338 = smul.addr %s334, 32
      %s339 = sadd.s32 %s337, %s338
      %s340 = smul.addr %s339, 4
      %s341 = scalar_lea.vmem %s5, %s340
      %v343 = vld [vmem:[%s311] sm:$0xf]
      %v344 = vld [vmem:[%s311 + $0x4] sm:$0xf]
      %v345 = vld [vmem:[%s311 + $0x8] sm:$0xf]
      %v346 = vld [vmem:[%s311 + $0xc] sm:$0xf]
      %v347 = vunpack.c.l.bf16 %v343
      %v348 = vunpack.c.l.bf16 %v344
      %v349 = vunpack.c.l.bf16 %v345
      %v350 = vunpack.c.l.bf16 %v346
      %v351 = vld [vmem:[%s327] sm:$0xff]
      %v352 = vld [vmem:[%s327 + $0x8] sm:$0xff]
      %v353 = vld [vmem:[%s327 + $0x10] sm:$0xff]
      %v354 = vld [vmem:[%s327 + $0x18] sm:$0xff]
      %356 = vset.pattern.permute.xlu0 0
      %357 = vperm.xlu0 %356, %v351
      %v358 = vpop.permute.xlu0 %357
      %361 = vset.pattern.permute.xlu0 0
      %362 = vperm.xlu0 %361, %v352
      %v363 = vpop.permute.xlu0 %362
      %366 = vset.pattern.permute.xlu0 0
      %367 = vperm.xlu0 %366, %v353
      %v368 = vpop.permute.xlu0 %367
      %371 = vset.pattern.permute.xlu0 0
      %372 = vperm.xlu0 %371, %v354
      %v373 = vpop.permute.xlu0 %372
      %v375 = vsub.f32 %v347, %v358
      %v376 = vsub.f32 %v348, %v363
      %v377 = vsub.f32 %v349, %v368
      %v378 = vsub.f32 %v350, %v373
      %379 = vset.pattern.permute.xlu0 1
      %380 = vperm.xlu0 %379, %v351
      %v381 = vpop.permute.xlu0 %380
      %383 = vset.pattern.permute.xlu0 1
      %384 = vperm.xlu0 %383, %v352
      %v385 = vpop.permute.xlu0 %384
      %387 = vset.pattern.permute.xlu0 1
      %388 = vperm.xlu0 %387, %v353
      %v389 = vpop.permute.xlu0 %388
      %391 = vset.pattern.permute.xlu0 1
      %392 = vperm.xlu0 %391, %v354
      %v393 = vpop.permute.xlu0 %392
      %v395 = vmul.f32 %v375, %v381
      %v396 = vmul.f32 %v376, %v385
      %v397 = vmul.f32 %v377, %v389
      %v398 = vmul.f32 %v378, %v393
      %v399 = vld [vmem:[%s2] sm:$0xf]
      %v400 = vld [vmem:[%s2 + $0x4] sm:$0xf]
      %v401 = vld [vmem:[%s2 + $0x8] sm:$0xf]
      %v402 = vld [vmem:[%s2 + $0xc] sm:$0xf]
      %v403 = vld [vmem:[%s321 + $0x8] sm:$0xf]
      %v408 = vunpack.c.l.b16 %v399
      %v409 = vunpack.c.l.b16 %v400
      %v410 = vunpack.c.l.b16 %v401
      %v411 = vunpack.c.l.b16 %v402
      %v412 = vpack.c.b16 %v409, %v408
      %v413 = vpack.c.b16 %v411, %v410
      %vm414 = vcmask 64512
      %v416 = vsel %vm414, %v412, 0
      %v419 = vsel %vm414, %v413, 0
      %vm421 = vcmask 1043456
      %v423 = vsel %vm421, %v403, 0
      %425 = vmatprep.subr.bf16.mxu0 0
      %426 = vmatpush1.bf16.msra.mxu0 %v423
      %427 = vmatprep.subr.bf16.mxu0 0
      %428 = vmatpush1.bf16.msra.mxu0 0
      %429 = vmatprep.subr.bf16.mxu0 0
      %430 = vmatpush1.bf16.msra.mxu0 0
      %431 = vmatprep.subr.bf16.mxu0 0
      %432 = vmatpush1.bf16.msra.mxu0 0
      %433 = vmatprep.subr.bf16.mxu0 0
      %434 = vmatpush1.bf16.msra.mxu0 0
      %435 = vmatprep.subr.bf16.mxu0 0
      %436 = vmatpush1.bf16.msra.mxu0 0
      %437 = vmatprep.subr.bf16.mxu0 0
      %438 = vmatpush1.bf16.msra.mxu0 0
      %439 = vmatprep.subr.bf16.mxu0 0
      %440 = vmatpush1.bf16.msra.mxu0 0
      %441 = vmatprep.subr.bf16.mxu0 0
      %442 = vmatpush1.bf16.msra.mxu0 0
      %443 = vmatprep.subr.bf16.mxu0 0
      %444 = vmatpush1.bf16.msra.mxu0 0
      %445 = vmatprep.subr.bf16.mxu0 0
      %446 = vmatpush1.bf16.msra.mxu0 0
      %447 = vmatprep.subr.bf16.mxu0 0
      %448 = vmatpush1.bf16.msra.mxu0 0
      %449 = vmatprep.subr.bf16.mxu0 0
      %450 = vmatpush1.bf16.msra.mxu0 0
      %451 = vmatprep.subr.bf16.mxu0 0
      %452 = vmatpush1.bf16.msra.mxu0 0
      %453 = vmatprep.subr.bf16.mxu0 0
      %454 = vmatpush1.bf16.msra.mxu0 0
      %455 = vmatprep.subr.bf16.mxu0 0
      %456 = vmatpush1.bf16.msra.mxu0 0
      %457 = vmatprep.mubr.bf16.mxu0 0
      %458 = vmatmul.mubr.bf16.gmra.mrb[0].mxu0 %v416
      %v459 = vpop.f32.mrb[0].mxu0
      %v460 = vadd.f32 0.0, %v459
      %v461 = vpop.f32.mrb[0].mxu0
      %v462 = vpop.f32.mrb[0].mxu0
      %v463 = vadd.f32 0.0, %v462
      %v464 = vpop.f32.mrb[0].mxu0
      %465 = vmatprep.mubr.bf16.mxu0 0
      %466 = vmatmul.mubr.bf16.gmra.mrb[0].mxu0 %v419
      %v467 = vpop.f32.mrb[0].mxu0
      %v468 = vadd.f32 0.0, %v467
      %v469 = vpop.f32.mrb[0].mxu0
      %v470 = vpop.f32.mrb[0].mxu0
      %v471 = vadd.f32 0.0, %v470
      %v472 = vpop.f32.mrb[0].mxu0
      %473 = vdwg.mxu0
      %v474 = vld [vmem:[%s332] sm:$0xff]
      %v475 = vld [vmem:[%s332 + $0x8] sm:$0xff]
      %v476 = vld [vmem:[%s332 + $0x10] sm:$0xff]
      %v477 = vld [vmem:[%s332 + $0x18] sm:$0xff]
      %479 = vset.pattern.permute.xlu0 0
      %480 = vperm.xlu0 %479, %v474
      %v481 = vpop.permute.xlu0 %480
      %484 = vset.pattern.permute.xlu0 0
      %485 = vperm.xlu0 %484, %v475
      %v486 = vpop.permute.xlu0 %485
      %489 = vset.pattern.permute.xlu0 0
      %490 = vperm.xlu0 %489, %v476
      %v491 = vpop.permute.xlu0 %490
      %494 = vset.pattern.permute.xlu0 0
      %495 = vperm.xlu0 %494, %v477
      %v496 = vpop.permute.xlu0 %495
      %v498 = vsub.f32 %v460, %v481
      %v499 = vsub.f32 %v463, %v486
      %v500 = vsub.f32 %v468, %v491
      %v501 = vsub.f32 %v471, %v496
      %502 = vset.pattern.permute.xlu0 1
      %503 = vperm.xlu0 %502, %v474
      %v504 = vpop.permute.xlu0 %503
      %506 = vset.pattern.permute.xlu0 1
      %507 = vperm.xlu0 %506, %v475
      %v508 = vpop.permute.xlu0 %507
      %510 = vset.pattern.permute.xlu0 1
      %511 = vperm.xlu0 %510, %v476
      %v512 = vpop.permute.xlu0 %511
      %514 = vset.pattern.permute.xlu0 1
      %515 = vperm.xlu0 %514, %v477
      %v516 = vpop.permute.xlu0 %515
      %v518 = vmul.f32 %v498, %v504
      %v519 = vmul.f32 %v499, %v508
      %v520 = vmul.f32 %v500, %v512
      %v521 = vmul.f32 %v501, %v516
      %v522 = vadd.f32 %v395, %v518
      %v523 = vadd.f32 %v396, %v519
      %v524 = vadd.f32 %v397, %v520
      %v525 = vadd.f32 %v398, %v521
      %vm526 = vcmp.ge.f32.partialorder %v522, 0.0
      %vm527 = vcmp.ge.f32.partialorder %v523, 0.0
      %vm528 = vcmp.ge.f32.partialorder %v524, 0.0
      %vm529 = vcmp.ge.f32.partialorder %v525, 0.0
      %v530 = vmul.f32 %v522, 0.01
      %v531 = vmul.f32 %v523, 0.01
      %v532 = vmul.f32 %v524, 0.01
      %v533 = vmul.f32 %v525, 0.01
      %v534 = vsel %vm526, %v522, %v530
      %v535 = vsel %vm527, %v523, %v531
      %v536 = vsel %vm528, %v524, %v532
      %v537 = vsel %vm529, %v525, %v533
      %v538 = vpack.c.bf16 %v535, %v534
      %v539 = vpack.c.bf16 %v537, %v536
      %v542 = vunpack.c.l.b16 %v538
      %v543 = vunpack.c.h.b16 %v538
      %v544 = vunpack.c.l.b16 %v539
      %v545 = vunpack.c.h.b16 %v539
      %v546 = vpack.c.b16 %v542, %v542
      %v547 = vpack.c.b16 %v543, %v543
      %v548 = vpack.c.b16 %v544, %v544
      %v549 = vpack.c.b16 %v545, %v545
      %554 = vst [vmem:[%s341] sm:$0xf] %v546
      %555 = vst [vmem:[%s341 + $0x4] sm:$0xf] %v547
      %556 = vst [vmem:[%s341 + $0x8] sm:$0xf] %v548
      %557 = vst [vmem:[%s341 + $0xc] sm:$0xf] %v549
      %p558 = scmp.lt.s32.totalorder %s20, 1
      %s559 = scalar_select %p558, %s20, 1
      %p560 = scmp.lt.s32.totalorder %s21, 7
      %s561 = scalar_select %p560, %s21, 7
      %s562 = smul.addr %s561, 4
      %s563 = smul.addr %s559, 32
      %s564 = sadd.s32 %s562, %s563
      %s565 = smul.addr %s564, 4
      %s566 = scalar_lea.vmem %s5, %s565
      // Predicated region
      $region41: #{mixconvblock_forward.5} parent=39 // pred_check
        %p567 = pneg %p179
      $region42: #{mixconvblock_forward.5} parent=39 // pred_check_branch
        %569 = sbr.rel (%p567) target = $region44
      $region43: #{mixconvblock_forward.5} parent=39 // pred_region
        _
      $region44: #{mixconvblock_forward.5} parent=39 // pred_fallthru
        _
    $region40: #{mixconvblock_forward.5} parent=5 // pred_fallthru
      _
    %p570 = scmp.le.s32.totalorder 2, %s11
    // Predicated region
    $region45: #{mixconvblock_forward.5} parent=5 // pred_check
      %p571 = pneg %p570
    $region46: #{mixconvblock_forward.5} parent=5 // pred_check_branch
      %573 = sbr.rel (%p571) target = $region48
    $region47: #{mixconvblock_forward.5} parent=5 // pred_region
      %s574 = ssub.s32 %s11, 2
      // Predicated region
      $region49: #{mixconvblock_forward.5} parent=47 // pred_check
        %p575 = pneg %p185
      $region50: #{mixconvblock_forward.5} parent=47 // pred_check_branch
        %577 = sbr.rel (%p575) target = $region52
      $region51: #{mixconvblock_forward.5} parent=47 // pred_region
        %p578 = scmp.lt.s32.totalorder %s22, 1
        %s579 = scalar_select %p578, %s22, 1
        %p580 = scmp.lt.s32.totalorder %s23, 7
        %s581 = scalar_select %p580, %s23, 7
        %s582 = smul.addr %s581, 4
        %s583 = smul.addr %s579, 32
        %s584 = sadd.s32 %s582, %s583
        %s585 = smul.addr %s584, 4
        %s586 = scalar_lea.vmem %s5, %s585
      $region52: #{mixconvblock_forward.5} parent=47 // pred_fallthru
        _
    $region48: #{mixconvblock_forward.5} parent=5 // pred_fallthru
      _
  $region6: #{mixconvblock_forward.5} parent=0 // loop_footer
    %s15 = sadd.s32 1, %s11
  $region7: #{mixconvblock_forward.5} parent=0 // loop_footer_branch
    %10 = sbr.rel target = $region3
  $region8: #{mixconvblock_forward.5} parent=0 // loop_exit
    _

// kernel: mixconvblock_forward.4
$region0: #{mixconvblock_forward.4}
  #allocation0 [shape = 'u32[]', space=smem, size = 0x4, offset = 0x4, fixed_abs, tag = 'smem constant byte address 0x4 - core index']
  #allocation1 [shape = 'u32[144,128]{1,0:T(1,128)}', space=vmem, size = 0x12000, scoped, tag = 'internal scratch']
  #allocation2 [shape = 'bf16[3,96,128]{2,1,0:T(16,128)(2,1)}', space=vmem, size = 0x12000, scoped, tag = 'scratch operand']
  %s0 = inlined_call_operand.vmem [shape: bf16[2,8,32,384], index: 0, kind: input, shape index: {}]
  %s1 = inlined_call_operand.vmem [shape: f32[2,32,2], index: 1, kind: input, shape index: {}]
  %s2 = inlined_call_operand.vmem [shape: bf16[3,32,96], index: 2, kind: input, shape index: {}]
  %s3 = inlined_call_operand.vmem [shape: f32[1,384], index: 3, kind: input, shape index: {}]
  %s4 = inlined_call_operand.vmem [shape: bf16[2,8,32,128], index: 4, kind: output, shape index: {0}]
  %s5 = inlined_call_operand.vmem [shape: f32[2,32,2], index: 5, kind: output, shape index: {1}]
  %6 = xla_tuple %s4, %s5
  %s7 = sld [smem:[#allocation0]]
  $region73: #{mixconvblock_forward.4} parent=0
    _
  %s9 = ssub.s32 1, %s7
  %s10 = scalar_select 0, %s9, %s7
  loop: start=0, step=1, limit=20
  $region2: #{mixconvblock_forward.4} parent=0 // loop_pre_header
    _
  $region3: #{mixconvblock_forward.4} parent=0 // loop_header
    %s12 = sphi 0, %s16
    %p13 = scmp.ge.s32.totalorder %s12, 20
    %s19 = sphi 0, %s31
    %s20 = sphi 0, %s27
    %s21 = sphi 0, %s19
    %s22 = sphi 0, %s20
    %s23 = sphi 0, %s21
    %s24 = sphi 0, %s22
    %s40 = sphi 0, %s42
    %s43 = sphi 0, %s40
    %s44 = sphi 0, %s43
    %s60 = sphi 0, %s44
    %s66 = sphi 0, %s68
    %s69 = sphi 0, %s66
    %s70 = sphi 0, %s69
    %s86 = sphi 0, %s70
    %s90 = sphi 0, %s90
    %s92 = sphi 0, %s90
    %s93 = sphi 0, %s92
    %s107 = sphi 0, %s93
    %s111 = sphi 0, %s111
    %s113 = sphi 0, %s111
    %s114 = sphi 0, %s113
    %s128 = sphi 0, %s114
    %s142 = sphi 0, %s144
    %s145 = sphi 0, %s142
    %s146 = sphi 0, %s145
    %s162 = sphi 0, %s146
    %s168 = sphi 0, %s170
    %s171 = sphi 0, %s168
    %s172 = sphi 0, %s171
    %s188 = sphi 0, %s172
  $region4: #{mixconvblock_forward.4} parent=0 // loop_header_branch
    %15 = sbr.rel (%p13) target = $region8
  $region5: #{mixconvblock_forward.4} parent=0 // loop_body
    %s17 = ssub.s32 %s12, 1
    %s18 = ssub.s32 %s12, 2
    %s25 = sadd.s32 1, %s20
    %p26 = scmp.ge.s32.totalorder %s25, 9
    %s27 = scalar_select %p26, 0, %s25
    %s28 = sadd.s32 1, %s19
    %s29 = scalar_select %p26, %s28, %s19
    %p30 = scmp.ge.s32.totalorder %s29, 2
    %s31 = scalar_select %p30, 0, %s29
    %p32 = scmp.lt.s32.totalorder %s20, 7
    %s33 = scalar_select %p32, %s20, 7
    %p34 = scmp.lt.s32.totalorder %s27, 7
    %s35 = scalar_select %p34, %s27, 7
    %s36 = ssub.s32 %s19, %s31
    %s37 = ssub.s32 %s33, %s35
    %s38 = sor.u32 %s36, %s37
    %p39 = scmp.eq.s32.totalorder %s38, 0
    %s41 = sadd.s32 %s40, 1
    %s42 = scalar_select %p39, %s40, %s41
    %p45 = pneg %p39
    %p46 = scmp.eq.s32.totalorder %s12, 17
    %p47 = por %p45, %p46
    %p48 = scmp.ne.s32.totalorder %s40, %s43
    %p49 = scmp.eq.s32.totalorder %s12, 0
    %p50 = por %p48, %p49
    %p51 = scmp.ne.s32.totalorder %s40, %s43
    %p52 = scmp.eq.s32.totalorder %s17, 17
    %p53 = por %p51, %p52
    %p54 = scmp.ne.s32.totalorder %s43, %s44
    %p55 = scmp.eq.s32.totalorder %s17, 0
    %p56 = por %p54, %p55
    %p57 = scmp.ne.s32.totalorder %s43, %s44
    %p58 = scmp.eq.s32.totalorder %s18, 17
    %p59 = por %p57, %p58
    %p61 = scmp.ne.s32.totalorder %s44, %s60
    %p62 = scmp.eq.s32.totalorder %s18, 0
    %p63 = por %p61, %p62
    %s64 = ssub.s32 %s19, %s31
    %p65 = scmp.eq.s32.totalorder %s64, 0
    %s67 = sadd.s32 %s66, 1
    %s68 = scalar_select %p65, %s66, %s67
    %p71 = pneg %p65
    %p72 = scmp.eq.s32.totalorder %s12, 17
    %p73 = por %p71, %p72
    %p74 = scmp.ne.s32.totalorder %s66, %s69
    %p75 = scmp.eq.s32.totalorder %s12, 0
    %p76 = por %p74, %p75
    %p77 = scmp.ne.s32.totalorder %s66, %s69
    %p78 = scmp.eq.s32.totalorder %s17, 17
    %p79 = por %p77, %p78
    %p80 = scmp.ne.s32.totalorder %s69, %s70
    %p81 = scmp.eq.s32.totalorder %s17, 0
    %p82 = por %p80, %p81
    %p83 = scmp.ne.s32.totalorder %s69, %s70
    %p84 = scmp.eq.s32.totalorder %s18, 17
    %p85 = por %p83, %p84
    %p87 = scmp.ne.s32.totalorder %s70, %s86
    %p88 = scmp.eq.s32.totalorder %s18, 0
    %p89 = por %p87, %p88
    %s91 = sadd.s32 %s90, 1
    %p94 = scmp.eq.s32.totalorder %s12, 17
    %p95 = scmp.ne.s32.totalorder %s90, %s92
    %p96 = scmp.eq.s32.totalorder %s12, 0
    %p97 = por %p95, %p96
    %p98 = scmp.ne.s32.totalorder %s90, %s92
    %p99 = scmp.eq.s32.totalorder %s17, 17
    %p100 = por %p98, %p99
    %p101 = scmp.ne.s32.totalorder %s92, %s93
    %p102 = scmp.eq.s32.totalorder %s17, 0
    %p103 = por %p101, %p102
    %p104 = scmp.ne.s32.totalorder %s92, %s93
    %p105 = scmp.eq.s32.totalorder %s18, 17
    %p106 = por %p104, %p105
    %p108 = scmp.ne.s32.totalorder %s93, %s107
    %p109 = scmp.eq.s32.totalorder %s18, 0
    %p110 = por %p108, %p109
    %s112 = sadd.s32 %s111, 1
    %p115 = scmp.eq.s32.totalorder %s12, 17
    %p116 = scmp.ne.s32.totalorder %s111, %s113
    %p117 = scmp.eq.s32.totalorder %s12, 0
    %p118 = por %p116, %p117
    %p119 = scmp.ne.s32.totalorder %s111, %s113
    %p120 = scmp.eq.s32.totalorder %s17, 17
    %p121 = por %p119, %p120
    %p122 = scmp.ne.s32.totalorder %s113, %s114
    %p123 = scmp.eq.s32.totalorder %s17, 0
    %p124 = por %p122, %p123
    %p125 = scmp.ne.s32.totalorder %s113, %s114
    %p126 = scmp.eq.s32.totalorder %s18, 17
    %p127 = por %p125, %p126
    %p129 = scmp.ne.s32.totalorder %s114, %s128
    %p130 = scmp.eq.s32.totalorder %s18, 0
    %p131 = por %p129, %p130
    %s132 = ssub.s32 %s20, 1
    %p133 = scmp.gt.s32.totalorder %s132, 0
    %s134 = scalar_select %p133, %s132, 0
    %s135 = ssub.s32 %s27, 1
    %p136 = scmp.gt.s32.totalorder %s135, 0
    %s137 = scalar_select %p136, %s135, 0
    %s138 = ssub.s32 %s19, %s31
    %s139 = ssub.s32 %s134, %s137
    %s140 = sor.u32 %s138, %s139
    %p141 = scmp.eq.s32.totalorder %s140, 0
    %s143 = sadd.s32 %s142, 1
    %s144 = scalar_select %p141, %s142, %s143
    %p147 = pneg %p141
    %p148 = scmp.eq.s32.totalorder %s12, 17
    %p149 = por %p147, %p148
    %p150 = scmp.ne.s32.totalorder %s142, %s145
    %p151 = scmp.eq.s32.totalorder %s12, 0
    %p152 = por %p150, %p151
    %p153 = scmp.ne.s32.totalorder %s142, %s145
    %p154 = scmp.eq.s32.totalorder %s17, 17
    %p155 = por %p153, %p154
    %p156 = scmp.ne.s32.totalorder %s145, %s146
    %p157 = scmp.eq.s32.totalorder %s17, 0
    %p158 = por %p156, %p157
    %p159 = scmp.ne.s32.totalorder %s145, %s146
    %p160 = scmp.eq.s32.totalorder %s18, 17
    %p161 = por %p159, %p160
    %p163 = scmp.ne.s32.totalorder %s146, %s162
    %p164 = scmp.eq.s32.totalorder %s18, 0
    %p165 = por %p163, %p164
    %s166 = ssub.s32 %s19, %s31
    %p167 = scmp.eq.s32.totalorder %s166, 0
    %s169 = sadd.s32 %s168, 1
    %s170 = scalar_select %p167, %s168, %s169
    %p173 = pneg %p167
    %p174 = scmp.eq.s32.totalorder %s12, 17
    %p175 = por %p173, %p174
    %p176 = scmp.ne.s32.totalorder %s168, %s171
    %p177 = scmp.eq.s32.totalorder %s12, 0
    %p178 = por %p176, %p177
    %p179 = scmp.ne.s32.totalorder %s168, %s171
    %p180 = scmp.eq.s32.totalorder %s17, 17
    %p181 = por %p179, %p180
    %p182 = scmp.ne.s32.totalorder %s171, %s172
    %p183 = scmp.eq.s32.totalorder %s17, 0
    %p184 = por %p182, %p183
    %p185 = scmp.ne.s32.totalorder %s171, %s172
    %p186 = scmp.eq.s32.totalorder %s18, 17
    %p187 = por %p185, %p186
    %p189 = scmp.ne.s32.totalorder %s172, %s188
    %p190 = scmp.eq.s32.totalorder %s18, 0
    %p191 = por %p189, %p190
    %p192 = scmp.le.s32.totalorder 1, %s12
    %p193 = scmp.lt.s32.totalorder %s12, 19
    %p194 = pnand %p192, %p193
    %p195 = pneg %p194
    // Predicated region
    $region9: #{mixconvblock_forward.4} parent=5 // pred_check
      _
    $region10: #{mixconvblock_forward.4} parent=5 // pred_check_branch
      %197 = sbr.rel (%p194) target = $region12
    $region11: #{mixconvblock_forward.4} parent=5 // pred_region
      %s198 = ssub.s32 %s12, 1
      // Predicated region
      $region13: #{mixconvblock_forward.4} parent=11 // pred_check
        %p199 = pneg %p103
      $region14: #{mixconvblock_forward.4} parent=11 // pred_check_branch
        %201 = sbr.rel (%p199) target = $region16
      $region15: #{mixconvblock_forward.4} parent=11 // pred_region
        _
      $region16: #{mixconvblock_forward.4} parent=11 // pred_fallthru
        _
      // Predicated region
      $region17: #{mixconvblock_forward.4} parent=11 // pred_check
        %p202 = pneg %p124
      $region18: #{mixconvblock_forward.4} parent=11 // pred_check_branch
        %204 = sbr.rel (%p202) target = $region20
      $region19: #{mixconvblock_forward.4} parent=11 // pred_region
        _
      $region20: #{mixconvblock_forward.4} parent=11 // pred_fallthru
        _
    $region12: #{mixconvblock_forward.4} parent=5 // pred_fallthru
      _
    %p205 = scmp.lt.s32.totalorder %s12, 18
    // Predicated region
    $region21: #{mixconvblock_forward.4} parent=5 // pred_check
      %p206 = pneg %p205
    $region22: #{mixconvblock_forward.4} parent=5 // pred_check_branch
      %208 = sbr.rel (%p206) target = $region24
    $region23: #{mixconvblock_forward.4} parent=5 // pred_region
      // Predicated region
      $region25: #{mixconvblock_forward.4} parent=23 // pred_check
        %p209 = pneg %p50
      $region26: #{mixconvblock_forward.4} parent=23 // pred_check_branch
        %211 = sbr.rel (%p209) target = $region28
      $region27: #{mixconvblock_forward.4} parent=23 // pred_region
        %p212 = scmp.lt.s32.totalorder %s20, 7
        %s213 = scalar_select %p212, %s20, 7
        %p214 = scmp.lt.s32.totalorder %s19, 1
        %s215 = scalar_select %p214, %s19, 1
        %p216 = scmp.lt.s32.totalorder %s213, 7
        %s217 = scalar_select %p216, %s213, 7
        %s218 = smul.addr %s217, 12
        %s219 = smul.addr %s215, 96
        %s220 = sadd.s32 %s218, %s219
        %s221 = smul.addr %s220, 4
        %s222 = scalar_lea.vmem %s0, %s221
        %p223 = scmp.lt.s32.totalorder %s20, 7
        %s224 = scalar_select %p223, %s20, 7
      $region28: #{mixconvblock_forward.4} parent=23 // pred_fallthru
        _
      // Predicated region
      $region29: #{mixconvblock_forward.4} parent=23 // pred_check
        %p225 = pneg %p76
      $region30: #{mixconvblock_forward.4} parent=23 // pred_check_branch
        %227 = sbr.rel (%p225) target = $region32
      $region31: #{mixconvblock_forward.4} parent=23 // pred_region
        %p228 = scmp.lt.s32.totalorder %s19, 1
        %s229 = scalar_select %p228, %s19, 1
        %s230 = smul.addr %s229, 4
        %s231 = smul.addr %s230, 8
        %s232 = scalar_lea.vmem %s1, %s231
      $region32: #{mixconvblock_forward.4} parent=23 // pred_fallthru
        _
    $region24: #{mixconvblock_forward.4} parent=5 // pred_fallthru
      _
    %p233 = scmp.le.s32.totalorder 1, %s12
    %p234 = scmp.lt.s32.totalorder %s12, 19
    %p235 = pnand %p233, %p234
    %p236 = pneg %p235
    // Predicated region
    $region33: #{mixconvblock_forward.4} parent=5 // pred_check
      _
    $region34: #{mixconvblock_forward.4} parent=5 // pred_check_branch
      %238 = sbr.rel (%p235) target = $region36
    $region35: #{mixconvblock_forward.4} parent=5 // pred_region
      %s239 = ssub.s32 %s12, 1
      %p240 = scmp.lt.s32.totalorder %s22, 7
      %s241 = scalar_select %p240, %s22, 7
      %p242 = scmp.lt.s32.totalorder %s21, 1
      %s243 = scalar_select %p242, %s21, 1
      %p244 = scmp.lt.s32.totalorder %s241, 7
      %s245 = scalar_select %p244, %s241, 7
      %s246 = smul.addr %s245, 12
      %s247 = smul.addr %s243, 96
      %s248 = sadd.s32 %s246, %s247
      %s249 = smul.addr %s248, 4
      %s250 = scalar_lea.vmem %s0, %s249
      %p251 = pneg %p56
      %p252 = pneg %p53
      %p253 = scmp.lt.s32.totalorder %s21, 1
      %s254 = scalar_select %p253, %s21, 1
      %s255 = smul.addr %s254, 4
      %s256 = smul.addr %s255, 8
      %s257 = scalar_lea.vmem %s1, %s256
      %p258 = pneg %p82
      %p259 = pneg %p79
      %p260 = pneg %p103
      %p261 = pneg %p100
      %p262 = pneg %p124
      %p263 = pneg %p121
      %p264 = pneg %p158
      %p265 = pneg %p155
      %s266 = ssub.s32 %s22, 1
      %p267 = scmp.gt.s32.totalorder %s266, 0
      %s268 = scalar_select %p267, %s266, 0
      %p269 = scmp.lt.s32.totalorder %s21, 1
      %s270 = scalar_select %p269, %s21, 1
      %p271 = scmp.lt.s32.totalorder %s268, 7
      %s272 = scalar_select %p271, %s268, 7
      %s273 = smul.addr %s272, 4
      %s274 = smul.addr %s270, 32
      %s275 = sadd.s32 %s273, %s274
      %s276 = smul.addr %s275, 4
      %s277 = scalar_lea.vmem %s4, %s276
      %p278 = pneg %p184
      %p279 = pneg %p181
      %p280 = scmp.lt.s32.totalorder %s21, 1
      %s281 = scalar_select %p280, %s21, 1
      %s282 = smul.addr %s281, 4
      %s283 = smul.addr %s282, 8
      %s284 = scalar_lea.vmem %s5, %s283
      %p285 = scmp.lt.s32.totalorder %s22, 7
      %s286 = scalar_select %p285, %s22, 7
      %p287 = scmp.lt.s32.totalorder %s21, 1
      %s288 = scalar_select %p287, %s21, 1
      %p289 = scmp.lt.s32.totalorder %s286, 7
      %s290 = scalar_select %p289, %s286, 7
      %s291 = smul.addr %s290, 12
      %s292 = smul.addr %s288, 96
      %s293 = sadd.s32 %s291, %s292
      %s294 = smul.addr %s293, 4
      %s295 = scalar_lea.vmem %s0, %s294
      %p296 = scmp.lt.s32.totalorder %s22, 7
      %s297 = scalar_select %p296, %s22, 7
      %p298 = scmp.lt.s32.totalorder %s21, 1
      %s299 = scalar_select %p298, %s21, 1
      %s300 = smul.addr %s299, 4
      %s301 = smul.addr %s300, 8
      %s302 = scalar_lea.vmem %s1, %s301
      %s303 = ssub.s32 %s22, 1
      %p304 = scmp.gt.s32.totalorder %s303, 0
      %s305 = scalar_select %p304, %s303, 0
      %p306 = scmp.lt.s32.totalorder %s21, 1
      %s307 = scalar_select %p306, %s21, 1
      %p308 = scmp.lt.s32.totalorder %s305, 7
      %s309 = scalar_select %p308, %s305, 7
      %s310 = smul.addr %s309, 4
      %s311 = smul.addr %s307, 32
      %s312 = sadd.s32 %s310, %s311
      %s313 = smul.addr %s312, 4
      %s314 = scalar_lea.vmem %s4, %s313
      %s315 = ssub.s32 %s22, 1
      %p316 = scmp.gt.s32.totalorder %s315, 0
      %s317 = scalar_select %p316, %s315, 0
      %p318 = scmp.lt.s32.totalorder %s21, 1
      %s319 = scalar_select %p318, %s21, 1
      %s320 = smul.addr %s319, 4
      %s321 = smul.addr %s320, 8
      %s322 = scalar_lea.vmem %s5, %s321
      %p324 = scmp.eq.s32.totalorder %s22, 0
      // Predicated region
      $region37: #{mixconvblock_forward.4} parent=35 // pred_check
        %p325 = pneg %p324
      $region38: #{mixconvblock_forward.4} parent=35 // pred_check_branch
        %327 = sbr.rel (%p325) target = $region40
      $region39: #{mixconvblock_forward.4} parent=35 // pred_region
        %328 = vst [vmem:[#allocation2] sm:$0xff] 0
        %329 = vst [vmem:[#allocation2 + $0x8] sm:$0xff] 0
        %330 = vst [vmem:[#allocation2 + $0x10] sm:$0xff] 0
        %331 = vst [vmem:[#allocation2 + $0x18] sm:$0xff] 0
        %332 = vst [vmem:[#allocation2 + $0x20] sm:$0xff] 0
        %333 = vst [vmem:[#allocation2 + $0x28] sm:$0xff] 0
        %334 = vst [vmem:[#allocation2 + $0x30] sm:$0xff] 0
        %335 = vst [vmem:[#allocation2 + $0x38] sm:$0xff] 0
        %336 = vst [vmem:[#allocation2 + $0x40] sm:$0xff] 0
        %337 = vst [vmem:[#allocation2 + $0x48] sm:$0xff] 0
        %338 = vst [vmem:[#allocation2 + $0x50] sm:$0xff] 0
        %339 = vst [vmem:[#allocation2 + $0x58] sm:$0xff] 0
        %340 = vst [vmem:[#allocation2 + $0x60] sm:$0xff] 0
        %341 = vst [vmem:[#allocation2 + $0x68] sm:$0xff] 0
        %342 = vst [vmem:[#allocation2 + $0x70] sm:$0xff] 0
        %343 = vst [vmem:[#allocation2 + $0x78] sm:$0xff] 0
        %344 = vst [vmem:[#allocation2 + $0x80] sm:$0xff] 0
        %345 = vst [vmem:[#allocation2 + $0x88] sm:$0xff] 0
        %vm346 = vcmask 15360
        %347 = vst.msk [vmem:[%s322] sm:$0xff] %vm346, 0.0
        %348 = vst.msk [vmem:[%s322 + $0x8] sm:$0xff] %vm346, 0.0
        %349 = vst.msk [vmem:[%s322 + $0x10] sm:$0xff] %vm346, 0.0
        %350 = vst.msk [vmem:[%s322 + $0x18] sm:$0xff] %vm346, 0.0
      $region40: #{mixconvblock_forward.4} parent=35 // pred_fallthru
        _
      %p351 = scmp.lt.s32.totalorder %s22, 0
      %s352 = ssub.s32 0, %s22
      %s353 = scalar_select %p351, %s352, %s22
      %s354 = sdiv.u32.pop %s353, 3
      %s355 = srem.u32.pop %s353, 3
      %s356 = ssub.s32 0, %s355
      %s357 = scalar_select %p351, %s356, %s355
      %p358 = scmp.lt.s32.totalorder %s22, 8
      // Predicated region
      $region41: #{mixconvblock_forward.4} parent=35 // pred_check
        %p359 = pneg %p358
      $region42: #{mixconvblock_forward.4} parent=35 // pred_check_branch
        %361 = sbr.rel (%p359) target = $region44
      $region43: #{mixconvblock_forward.4} parent=35 // pred_region
        %v362 = vld [vmem:[%s302] sm:$0xff]
        %v363 = vld [vmem:[%s302 + $0x8] sm:$0xff]
        %v364 = vld [vmem:[%s302 + $0x10] sm:$0xff]
        %v365 = vld [vmem:[%s302 + $0x18] sm:$0xff]
        %v366 = vld [vmem:[%s295] sm:$0xff]
        %v367 = vld [vmem:[%s295 + $0x8] sm:$0xf]
        %v368 = vld [vmem:[%s295 + $0xc] sm:$0xff]
        %v369 = vld [vmem:[%s295 + $0x14] sm:$0xf]
        %v370 = vld [vmem:[%s295 + $0x18] sm:$0xff]
        %v371 = vld [vmem:[%s295 + $0x20] sm:$0xf]
        %v372 = vld [vmem:[%s295 + $0x24] sm:$0xff]
        %v373 = vld [vmem:[%s295 + $0x2c] sm:$0xf]
        %v374 = vunpack.c.l.bf16 %v366
        %v375 = vunpack.c.h.bf16 %v366
        %v376 = vunpack.c.l.bf16 %v367
        %v377 = vunpack.c.l.bf16 %v368
        %v378 = vunpack.c.h.bf16 %v368
        %v379 = vunpack.c.l.bf16 %v369
        %v380 = vunpack.c.l.bf16 %v370
        %v381 = vunpack.c.h.bf16 %v370
        %v382 = vunpack.c.l.bf16 %v371
        %v383 = vunpack.c.l.bf16 %v372
        %v384 = vunpack.c.h.bf16 %v372
        %v385 = vunpack.c.l.bf16 %v373
        %v386 = vld [vmem:[%s3] sm:$0x7]
        %vm387 = vcmp.gt.f32.partialorder %v386, 0.5
        %389 = vset.pattern.permute.xlu0 0
        %390 = vperm.xlu0 %389, %v362
        %v391 = vpop.permute.xlu0 %390
        %394 = vset.pattern.permute.xlu0 0
        %395 = vperm.xlu0 %394, %v363
        %v396 = vpop.permute.xlu0 %395
        %399 = vset.pattern.permute.xlu0 0
        %400 = vperm.xlu0 %399, %v364
        %v401 = vpop.permute.xlu0 %400
        %404 = vset.pattern.permute.xlu0 0
        %405 = vperm.xlu0 %404, %v365
        %v406 = vpop.permute.xlu0 %405
        %v408 = vsub.f32 %v374, %v391
        %v409 = vsub.f32 %v375, %v391
        %v410 = vsub.f32 %v376, %v391
        %v411 = vsub.f32 %v377, %v396
        %v412 = vsub.f32 %v378, %v396
        %v413 = vsub.f32 %v379, %v396
        %v414 = vsub.f32 %v380, %v401
        %v415 = vsub.f32 %v381, %v401
        %v416 = vsub.f32 %v382, %v401
        %v417 = vsub.f32 %v383, %v406
        %v418 = vsub.f32 %v384, %v406
        %v419 = vsub.f32 %v385, %v406
        %420 = vset.pattern.permute.xlu0 1
        %421 = vperm.xlu0 %420, %v362
        %v422 = vpop.permute.xlu0 %421
        %424 = vset.pattern.permute.xlu0 1
        %425 = vperm.xlu0 %424, %v363
        %v426 = vpop.permute.xlu0 %425
        %428 = vset.pattern.permute.xlu0 1
        %429 = vperm.xlu0 %428, %v364
        %v430 = vpop.permute.xlu0 %429
        %432 = vset.pattern.permute.xlu0 1
        %433 = vperm.xlu0 %432, %v365
        %v434 = vpop.permute.xlu0 %433
        %v436 = vmul.f32 %v408, %v422
        %v437 = vmul.f32 %v409, %v422
        %v438 = vmul.f32 %v410, %v422
        %v439 = vmul.f32 %v411, %v426
        %v440 = vmul.f32 %v412, %v426
        %v441 = vmul.f32 %v413, %v426
        %v442 = vmul.f32 %v414, %v430
        %v443 = vmul.f32 %v415, %v430
        %v444 = vmul.f32 %v416, %v430
        %v445 = vmul.f32 %v417, %v434
        %v446 = vmul.f32 %v418, %v434
        %v447 = vmul.f32 %v419, %v434
        %vm448 = vcmp.ge.f32.partialorder %v436, 0.0
        %vm449 = vcmp.ge.f32.partialorder %v437, 0.0
        %vm450 = vcmp.ge.f32.partialorder %v438, 0.0
        %vm451 = vcmp.ge.f32.partialorder %v439, 0.0
        %vm452 = vcmp.ge.f32.partialorder %v440, 0.0
        %vm453 = vcmp.ge.f32.partialorder %v441, 0.0
        %vm454 = vcmp.ge.f32.partialorder %v442, 0.0
        %vm455 = vcmp.ge.f32.partialorder %v443, 0.0
        %vm456 = vcmp.ge.f32.partialorder %v444, 0.0
        %vm457 = vcmp.ge.f32.partialorder %v445, 0.0
        %vm458 = vcmp.ge.f32.partialorder %v446, 0.0
        %vm459 = vcmp.ge.f32.partialorder %v447, 0.0
        %v460 = vmul.f32 %v436, 0.01
        %v461 = vmul.f32 %v437, 0.01
        %v462 = vmul.f32 %v438, 0.01
        %v463 = vmul.f32 %v439, 0.01
        %v464 = vmul.f32 %v440, 0.01
        %v465 = vmul.f32 %v441, 0.01
        %v466 = vmul.f32 %v442, 0.01
        %v467 = vmul.f32 %v443, 0.01
        %v468 = vmul.f32 %v444, 0.01
        %v469 = vmul.f32 %v445, 0.01
        %v470 = vmul.f32 %v446, 0.01
        %v471 = vmul.f32 %v447, 0.01
        %v472 = vsel %vm448, %v436, %v460
        %v473 = vsel %vm449, %v437, %v461
        %v474 = vsel %vm450, %v438, %v462
        %v475 = vsel %vm451, %v439, %v463
        %v476 = vsel %vm452, %v440, %v464
        %v477 = vsel %vm453, %v441, %v465
        %v478 = vsel %vm454, %v442, %v466
        %v479 = vsel %vm455, %v443, %v467
        %v480 = vsel %vm456, %v444, %v468
        %v481 = vsel %vm457, %v445, %v469
        %v482 = vsel %vm458, %v446, %v470
        %v483 = vsel %vm459, %v447, %v471
        %v484 = vsel %vm387, 1, 0
        %v485 = vlaneseq
        %v486 = vshrl.u32 %v485, 7
        %v487 = vsub.s32 0, %v486
        %v488 = vrot.slane %v484, %v487
        %v489 = vlaneseq
        %v490 = vshrl.u32 %v489, 7
        %v491 = vsub.s32 1, %v490
        %v492 = vrot.slane %v484, %v491
        %v493 = vlaneseq
        %v494 = vshrl.u32 %v493, 7
        %v495 = vsub.s32 2, %v494
        %v496 = vrot.slane %v484, %v495
        %vm497 = vcmp.eq.s32.totalorder %v488, 1
        %vm498 = vcmp.eq.s32.totalorder %v492, 1
        %vm499 = vcmp.eq.s32.totalorder %v496, 1
        %v500 = vsel %vm497, %v472, 0.0
        %v501 = vsel %vm498, %v473, 0.0
        %v502 = vsel %vm499, %v474, 0.0
        %v503 = vsel %vm497, %v475, 0.0
        %v504 = vsel %vm498, %v476, 0.0
        %v505 = vsel %vm499, %v477, 0.0
        %v506 = vsel %vm497, %v478, 0.0
        %v507 = vsel %vm498, %v479, 0.0
        %v508 = vsel %vm499, %v480, 0.0
        %v509 = vsel %vm497, %v481, 0.0
        %v510 = vsel %vm498, %v482, 0.0
        %v511 = vsel %vm499, %v483, 0.0
        %v512 = vpack.c.bf16 %v503, %v500
        %v513 = vpack.c.bf16 %v504, %v501
        %v514 = vpack.c.bf16 %v505, %v502
        %v515 = vpack.c.bf16 %v509, %v506
        %v516 = vpack.c.bf16 %v510, %v507
        %v517 = vpack.c.bf16 %v511, %v508
        %520 = vrot.lane.b32.xlu0 %v513, 118
        %v521 = vpop.permute.xlu0 %520
        %522 = vrot.lane.b32.xlu0 %v516, 118
        %v523 = vpop.permute.xlu0 %522
        %526 = vrot.lane.b32.xlu0 %v513, 108
        %v527 = vpop.permute.xlu0 %526
        %528 = vrot.lane.b32.xlu0 %v514, 108
        %v529 = vpop.permute.xlu0 %528
        %530 = vrot.lane.b32.xlu0 %v516, 108
        %v531 = vpop.permute.xlu0 %530
        %532 = vrot.lane.b32.xlu0 %v517, 108
        %v533 = vpop.permute.xlu0 %532
        %vm534 = vcmask 883712
        %v535 = vsel %vm534, %v527, %v529
        %v536 = vsel %vm534, %v531, %v533
        %539 = vrot.lane.b32.xlu0 %v512, 10
        %v540 = vpop.permute.xlu0 %539
        %541 = vrot.lane.b32.xlu0 %v513, 10
        %v542 = vpop.permute.xlu0 %541
        %543 = vrot.lane.b32.xlu0 %v515, 10
        %v544 = vpop.permute.xlu0 %543
        %545 = vrot.lane.b32.xlu0 %v516, 10
        %v546 = vpop.permute.xlu0 %545
        %547 = vrot.lane.b32.xlu0 %v521, 10
        %v548 = vpop.permute.xlu0 %547
        %549 = vrot.lane.b32.xlu0 %v523, 10
        %v550 = vpop.permute.xlu0 %549
        %551 = vrot.lane.b32.xlu0 %v527, 10
        %v552 = vpop.permute.xlu0 %551
        %553 = vrot.lane.b32.xlu0 %v535, 10
        %v554 = vpop.permute.xlu0 %553
        %555 = vrot.lane.b32.xlu0 %v531, 10
        %v556 = vpop.permute.xlu0 %555
        %557 = vrot.lane.b32.xlu0 %v536, 10
        %v558 = vpop.permute.xlu0 %557
        %vm559 = vcmask 80896
        %v560 = vsel %vm559, %v540, %v542
        %v561 = vsel %vm559, %v544, %v546
        %v562 = vsel %vm559, %v552, %v554
        %v563 = vsel %vm559, %v556, %v558
        %s570 = smul.u32 %s357, 6
        %s571 = smul.addr %s570, 8
        %s572 = scalar_lea.vmem [#allocation2], %s571
        %573 = vst [vmem:[%s572] sm:$0xff] %v560
        %574 = vst [vmem:[%s572 + $0x8] sm:$0xff] %v561
        %575 = vst [vmem:[%s572 + $0x10] sm:$0xff] %v548
        %576 = vst [vmem:[%s572 + $0x18] sm:$0xff] %v550
        %577 = vst [vmem:[%s572 + $0x20] sm:$0xff] %v562
        %578 = vst [vmem:[%s572 + $0x28] sm:$0xff] %v563
      $region44: #{mixconvblock_forward.4} parent=35 // pred_fallthru
        _
      %p579 = scmp.eq.s32.totalorder %s22, 8
      // Predicated region
      $region45: #{mixconvblock_forward.4} parent=35 // pred_check
        %p580 = pneg %p579
      $region46: #{mixconvblock_forward.4} parent=35 // pred_check_branch
        %582 = sbr.rel (%p580) target = $region48
      $region47: #{mixconvblock_forward.4} parent=35 // pred_region
        %s583 = smul.u32 %s357, 6
        %s584 = smul.addr %s583, 8
        %s585 = scalar_lea.vmem [#allocation2], %s584
        %586 = vst [vmem:[%s585] sm:$0xff] 0
        %587 = vst [vmem:[%s585 + $0x8] sm:$0xff] 0
        %588 = vst [vmem:[%s585 + $0x10] sm:$0xff] 0
        %589 = vst [vmem:[%s585 + $0x18] sm:$0xff] 0
        %590 = vst [vmem:[%s585 + $0x20] sm:$0xff] 0
        %591 = vst [vmem:[%s585 + $0x28] sm:$0xff] 0
      $region48: #{mixconvblock_forward.4} parent=35 // pred_fallthru
        _
      %s592 = sadd.s32 %s22, 1
      %p593 = scmp.lt.s32.totalorder %s592, 0
      %s594 = ssub.s32 0, %s592
      %s595 = scalar_select %p593, %s594, %s592
      %s596 = sdiv.u32.pop %s595, 3
      %s597 = srem.u32.pop %s595, 3
      %s598 = ssub.s32 0, %s597
      %s599 = scalar_select %p593, %s598, %s597
      %v600 = vld [vmem:[%s2] sm:$0xf]
      %v601 = vld [vmem:[%s2 + $0x4] sm:$0xf]
      %v602 = vld [vmem:[%s2 + $0x8] sm:$0xf]
      %v603 = vld [vmem:[%s2 + $0xc] sm:$0xf]
      %s604 = smul.u32 %s599, 6
      %s605 = smul.addr %s604, 8
      %s606 = scalar_lea.vmem [#allocation2], %s605
      %v607 = vld [vmem:[%s606] sm:$0xff]
      %v608 = vld [vmem:[%s606 + $0x8] sm:$0xff]
      %v609 = vld [vmem:[%s606 + $0x10] sm:$0xff]
      %v610 = vld [vmem:[%s606 + $0x18] sm:$0xff]
      %v611 = vld [vmem:[%s606 + $0x20] sm:$0xff]
      %v612 = vld [vmem:[%s606 + $0x28] sm:$0xff]
      %s613 = sadd.s32 %s22, 2
      %p614 = scmp.lt.s32.totalorder %s613, 0
      %s615 = ssub.s32 0, %s613
      %s616 = scalar_select %p614, %s615, %s613
      %s617 = sdiv.u32.pop %s616, 3
      %s618 = srem.u32.pop %s616, 3
      %s619 = ssub.s32 0, %s618
      %s620 = scalar_select %p614, %s619, %s618
      %s621 = scalar_lea.vmem %s2, 16
      %v622 = vld [vmem:[%s621] sm:$0xf]
      %v623 = vld [vmem:[%s621 + $0x4] sm:$0xf]
      %v624 = vld [vmem:[%s621 + $0x8] sm:$0xf]
      %v625 = vld [vmem:[%s621 + $0xc] sm:$0xf]
      %s626 = smul.u32 %s620, 6
      %s627 = smul.addr %s626, 8
      %s628 = scalar_lea.vmem [#allocation2], %s627
      %v629 = vld [vmem:[%s628] sm:$0xff]
      %v630 = vld [vmem:[%s628 + $0x8] sm:$0xff]
      %v631 = vld [vmem:[%s628 + $0x10] sm:$0xff]
      %v632 = vld [vmem:[%s628 + $0x18] sm:$0xff]
      %v633 = vld [vmem:[%s628 + $0x20] sm:$0xff]
      %v634 = vld [vmem:[%s628 + $0x28] sm:$0xff]
      %v639 = vunpack.c.l.b16 %v622
      %v640 = vunpack.c.l.b16 %v623
      %v641 = vunpack.c.l.b16 %v624
      %v642 = vunpack.c.l.b16 %v625
      %v643 = vpack.c.b16 %v640, %v639
      %v644 = vpack.c.b16 %v642, %v641
      %vm645 = vcmask 785408
      %v647 = vsel %vm645, %v643, 0
      %v650 = vsel %vm645, %v644, 0
      %652 = vmatprep.subr.bf16.mxu0 0
      %653 = vmatpush1.bf16.msra.mxu0 %v629
      %654 = vmatprep.subr.bf16.mxu0 0
      %655 = vmatpush1.bf16.msra.mxu0 %v630
      %656 = vmatprep.subr.bf16.mxu0 0
      %657 = vmatpush1.bf16.msra.mxu0 %v631
      %658 = vmatprep.subr.bf16.mxu0 0
      %659 = vmatpush1.bf16.msra.mxu0 %v632
      %660 = vmatprep.subr.bf16.mxu0 0
      %661 = vmatpush1.bf16.msra.mxu0 %v633
      %662 = vmatprep.subr.bf16.mxu0 0
      %663 = vmatpush1.bf16.msra.mxu0 %v634
      %664 = vmatprep.subr.bf16.mxu0 0
      %665 = vmatpush1.bf16.msra.mxu0 0
      %666 = vmatprep.subr.bf16.mxu0 0
      %667 = vmatpush1.bf16.msra.mxu0 0
      %668 = vmatprep.subr.bf16.mxu0 0
      %669 = vmatpush1.bf16.msra.mxu0 0
      %670 = vmatprep.subr.bf16.mxu0 0
      %671 = vmatpush1.bf16.msra.mxu0 0
      %672 = vmatprep.subr.bf16.mxu0 0
      %673 = vmatpush1.bf16.msra.mxu0 0
      %674 = vmatprep.subr.bf16.mxu0 0
      %675 = vmatpush1.bf16.msra.mxu0 0
      %676 = vmatprep.subr.bf16.mxu0 0
      %677 = vmatpush1.bf16.msra.mxu0 0
      %678 = vmatprep.subr.bf16.mxu0 0
      %679 = vmatpush1.bf16.msra.mxu0 0
      %680 = vmatprep.subr.bf16.mxu0 0
      %681 = vmatpush1.bf16.msra.mxu0 0
      %682 = vmatprep.subr.bf16.mxu0 0
      %683 = vmatpush1.bf16.msra.mxu0 0
      %684 = vmatprep.mubr.bf16.mxu0 0
      %685 = vmatmul.mubr.bf16.gmra.mrb[0].mxu0 %v647
      %v686 = vpop.f32.mrb[0].mxu0
      %v687 = vadd.f32 0.0, %v686
      %v688 = vpop.f32.mrb[0].mxu0
      %v689 = vpop.f32.mrb[0].mxu0
      %v690 = vadd.f32 0.0, %v689
      %v691 = vpop.f32.mrb[0].mxu0
      %692 = vmatprep.mubr.bf16.mxu0 0
      %693 = vmatmul.mubr.bf16.gmra.mrb[0].mxu0 %v650
      %v694 = vpop.f32.mrb[0].mxu0
      %v695 = vadd.f32 0.0, %v694
      %v696 = vpop.f32.mrb[0].mxu0
      %v697 = vpop.f32.mrb[0].mxu0
      %v698 = vadd.f32 0.0, %v697
      %v699 = vpop.f32.mrb[0].mxu0
      %700 = vdwg.mxu0
      %v705 = vunpack.c.l.b16 %v600
      %v706 = vunpack.c.l.b16 %v601
      %v707 = vunpack.c.l.b16 %v602
      %v708 = vunpack.c.l.b16 %v603
      %v709 = vpack.c.b16 %v706, %v705
      %v710 = vpack.c.b16 %v708, %v707
      %v712 = vsel %vm645, %v709, 0
      %v715 = vsel %vm645, %v710, 0
      %717 = vmatprep.subr.bf16.mxu0 0
      %718 = vmatpush1.bf16.msra.mxu0 %v607
      %719 = vmatprep.subr.bf16.mxu0 0
      %720 = vmatpush1.bf16.msra.mxu0 %v608
      %721 = vmatprep.subr.bf16.mxu0 0
      %722 = vmatpush1.bf16.msra.mxu0 %v609
      %723 = vmatprep.subr.bf16.mxu0 0
      %724 = vmatpush1.bf16.msra.mxu0 %v610
      %725 = vmatprep.subr.bf16.mxu0 0
      %726 = vmatpush1.bf16.msra.mxu0 %v611
      %727 = vmatprep.subr.bf16.mxu0 0
      %728 = vmatpush1.bf16.msra.mxu0 %v612
      %729 = vmatprep.subr.bf16.mxu0 0
      %730 = vmatpush1.bf16.msra.mxu0 0
      %731 = vmatprep.subr.bf16.mxu0 0
      %732 = vmatpush1.bf16.msra.mxu0 0
      %733 = vmatprep.subr.bf16.mxu0 0
      %734 = vmatpush1.bf16.msra.mxu0 0
      %735 = vmatprep.subr.bf16.mxu0 0
      %736 = vmatpush1.bf16.msra.mxu0 0
      %737 = vmatprep.subr.bf16.mxu0 0
      %738 = vmatpush1.bf16.msra.mxu0 0
      %739 = vmatprep.subr.bf16.mxu0 0
      %740 = vmatpush1.bf16.msra.mxu0 0
      %741 = vmatprep.subr.bf16.mxu0 0
      %742 = vmatpush1.bf16.msra.mxu0 0
      %743 = vmatprep.subr.bf16.mxu0 0
      %744 = vmatpush1.bf16.msra.mxu0 0
      %745 = vmatprep.subr.bf16.mxu0 0
      %746 = vmatpush1.bf16.msra.mxu0 0
      %747 = vmatprep.subr.bf16.mxu0 0
      %748 = vmatpush1.bf16.msra.mxu0 0
      %749 = vmatprep.mubr.bf16.mxu0 0
      %750 = vmatmul.mubr.bf16.gmra.mrb[0].mxu0 %v712
      %v751 = vpop.f32.mrb[0].mxu0
      %v752 = vadd.f32 %v687, %v751
      %v753 = vpop.f32.mrb[0].mxu0
      %v754 = vpop.f32.mrb[0].mxu0
      %v755 = vadd.f32 %v690, %v754
      %v756 = vpop.f32.mrb[0].mxu0
      %757 = vmatprep.mubr.bf16.mxu0 0
      %758 = vmatmul.mubr.bf16.gmra.mrb[0].mxu0 %v715
      %v759 = vpop.f32.mrb[0].mxu0
      %v760 = vadd.f32 %v695, %v759
      %v761 = vpop.f32.mrb[0].mxu0
      %v762 = vpop.f32.mrb[0].mxu0
      %v763 = vadd.f32 %v698, %v762
      %v764 = vpop.f32.mrb[0].mxu0
      %765 = vdwg.mxu0
      %s766 = sadd.s32 %s22, 3
      %p767 = scmp.lt.s32.totalorder %s766, 0
      %s768 = ssub.s32 0, %s766
      %s769 = scalar_select %p767, %s768, %s766
      %s770 = sdiv.u32.pop %s769, 3
      %s771 = srem.u32.pop %s769, 3
      %s772 = ssub.s32 0, %s771
      %s773 = scalar_select %p767, %s772, %s771
      %s774 = scalar_lea.vmem %s2, 32
      %v775 = vld [vmem:[%s774] sm:$0xf]
      %v776 = vld [vmem:[%s774 + $0x4] sm:$0xf]
      %v777 = vld [vmem:[%s774 + $0x8] sm:$0xf]
      %v778 = vld [vmem:[%s774 + $0xc] sm:$0xf]
      %s779 = smul.u32 %s773, 6
      %s780 = smul.addr %s779, 8
      %s781 = scalar_lea.vmem [#allocation2], %s780
      %v782 = vld [vmem:[%s781] sm:$0xff]
      %v783 = vld [vmem:[%s781 + $0x8] sm:$0xff]
      %v784 = vld [vmem:[%s781 + $0x10] sm:$0xff]
      %v785 = vld [vmem:[%s781 + $0x18] sm:$0xff]
      %v786 = vld [vmem:[%s781 + $0x20] sm:$0xff]
      %v787 = vld [vmem:[%s781 + $0x28] sm:$0xff]
      %v792 = vunpack.c.l.b16 %v775
      %v793 = vunpack.c.l.b16 %v776
      %v794 = vunpack.c.l.b16 %v777
      %v795 = vunpack.c.l.b16 %v778
      %v796 = vpack.c.b16 %v793, %v792
      %v797 = vpack.c.b16 %v795, %v794
      %v799 = vsel %vm645, %v796, 0
      %v802 = vsel %vm645, %v797, 0
      %804 = vmatprep.subr.bf16.mxu0 0
      %805 = vmatpush1.bf16.msra.mxu0 %v782
      %806 = vmatprep.subr.bf16.mxu0 0
      %807 = vmatpush1.bf16.msra.mxu0 %v783
      %808 = vmatprep.subr.bf16.mxu0 0
      %809 = vmatpush1.bf16.msra.mxu0 %v784
      %810 = vmatprep.subr.bf16.mxu0 0
      %811 = vmatpush1.bf16.msra.mxu0 %v785
      %812 = vmatprep.subr.bf16.mxu0 0
      %813 = vmatpush1.bf16.msra.mxu0 %v786
      %814 = vmatprep.subr.bf16.mxu0 0
      %815 = vmatpush1.bf16.msra.mxu0 %v787
      %816 = vmatprep.subr.bf16.mxu0 0
      %817 = vmatpush1.bf16.msra.mxu0 0
      %818 = vmatprep.subr.bf16.mxu0 0
      %819 = vmatpush1.bf16.msra.mxu0 0
      %820 = vmatprep.subr.bf16.mxu0 0
      %821 = vmatpush1.bf16.msra.mxu0 0
      %822 = vmatprep.subr.bf16.mxu0 0
      %823 = vmatpush1.bf16.msra.mxu0 0
      %824 = vmatprep.subr.bf16.mxu0 0
      %825 = vmatpush1.bf16.msra.mxu0 0
      %826 = vmatprep.subr.bf16.mxu0 0
      %827 = vmatpush1.bf16.msra.mxu0 0
      %828 = vmatprep.subr.bf16.mxu0 0
      %829 = vmatpush1.bf16.msra.mxu0 0
      %830 = vmatprep.subr.bf16.mxu0 0
      %831 = vmatpush1.bf16.msra.mxu0 0
      %832 = vmatprep.subr.bf16.mxu0 0
      %833 = vmatpush1.bf16.msra.mxu0 0
      %834 = vmatprep.subr.bf16.mxu0 0
      %835 = vmatpush1.bf16.msra.mxu0 0
      %836 = vmatprep.mubr.bf16.mxu0 0
      %837 = vmatmul.mubr.bf16.gmra.mrb[0].mxu0 %v799
      %v838 = vpop.f32.mrb[0].mxu0
      %v839 = vadd.f32 0.0, %v838
      %v840 = vpop.f32.mrb[0].mxu0
      %v841 = vpop.f32.mrb[0].mxu0
      %v842 = vadd.f32 0.0, %v841
      %v843 = vpop.f32.mrb[0].mxu0
      %844 = vmatprep.mubr.bf16.mxu0 0
      %845 = vmatmul.mubr.bf16.gmra.mrb[0].mxu0 %v802
      %v846 = vpop.f32.mrb[0].mxu0
      %v847 = vadd.f32 0.0, %v846
      %v848 = vpop.f32.mrb[0].mxu0
      %v849 = vpop.f32.mrb[0].mxu0
      %v850 = vadd.f32 0.0, %v849
      %v851 = vpop.f32.mrb[0].mxu0
      %852 = vdwg.mxu0
      %v853 = vadd.f32 %v752, %v839
      %v854 = vadd.f32 %v755, %v842
      %v855 = vadd.f32 %v760, %v847
      %v856 = vadd.f32 %v763, %v850
      %v857 = vpack.c.bf16 %v854, %v853
      %v858 = vpack.c.bf16 %v856, %v855
      %v861 = vunpack.c.l.b16 %v857
      %v862 = vunpack.c.h.b16 %v857
      %v863 = vunpack.c.l.b16 %v858
      %v864 = vunpack.c.h.b16 %v858
      %v865 = vpack.c.b16 %v861, %v861
      %v866 = vpack.c.b16 %v862, %v862
      %v867 = vpack.c.b16 %v863, %v863
      %v868 = vpack.c.b16 %v864, %v864
      %873 = vst [vmem:[%s314] sm:$0xf] %v865
      %874 = vst [vmem:[%s314 + $0x4] sm:$0xf] %v866
      %875 = vst [vmem:[%s314 + $0x8] sm:$0xf] %v867
      %876 = vst [vmem:[%s314 + $0xc] sm:$0xf] %v868
      %p877 = scmp.gt.s32.totalorder %s22, 0
      // Predicated region
      $region49: #{mixconvblock_forward.4} parent=35 // pred_check
        %p878 = pneg %p877
      $region50: #{mixconvblock_forward.4} parent=35 // pred_check_branch
        %880 = sbr.rel (%p878) target = $region52
      $region51: #{mixconvblock_forward.4} parent=35 // pred_region
        %v881 = vld [vmem:[%s3 + $0x1] sm:$0x1]
        %v883 = vlaneseq
        %v884 = vshrl.u32 %v883, 7
        %v885 = vsub.s32 0, %v884
        %v886 = vrot.slane %v881, %v885
        %v888 = vmul.f32 %v853, %v886
        %v889 = vmul.f32 %v854, %v886
        %v890 = vmul.f32 %v855, %v886
        %v891 = vmul.f32 %v856, %v886
        %v892 = vld [vmem:[%s322] sm:$0xff]
        %v893 = vld [vmem:[%s322 + $0x8] sm:$0xff]
        %v894 = vld [vmem:[%s322 + $0x10] sm:$0xff]
        %v895 = vld [vmem:[%s322 + $0x18] sm:$0xff]
        %896 = vadd.xlane.f32.xlu0 %v888
        %v897 = vpop.xlane.xlu0 %896
        %898 = vadd.xlane.f32.xlu0 %v889
        %v899 = vpop.xlane.xlu0 %898
        %900 = vadd.xlane.f32.xlu0 %v890
        %v901 = vpop.xlane.xlu0 %900
        %902 = vadd.xlane.f32.xlu0 %v891
        %v903 = vpop.xlane.xlu0 %902
        %v904 = vmul.f32 %v888, %v853
        %v905 = vmul.f32 %v889, %v854
        %v906 = vmul.f32 %v890, %v855
        %v907 = vmul.f32 %v891, %v856
        %908 = vadd.xlane.f32.xlu0 %v904
        %v909 = vpop.xlane.xlu0 %908
        %910 = vadd.xlane.f32.xlu0 %v905
        %v911 = vpop.xlane.xlu0 %910
        %912 = vadd.xlane.f32.xlu0 %v906
        %v913 = vpop.xlane.xlu0 %912
        %914 = vadd.xlane.f32.xlu0 %v907
        %v915 = vpop.xlane.xlu0 %914
        %vm916 = vcmask 7168
        %v917 = vsel %vm916, %v897, %v909
        %v918 = vsel %vm916, %v899, %v911
        %v919 = vsel %vm916, %v901, %v913
        %v920 = vsel %vm916, %v903, %v915
        %v921 = vadd.f32 %v892, %v917
        %v922 = vadd.f32 %v893, %v918
        %v923 = vadd.f32 %v894, %v919
        %v924 = vadd.f32 %v895, %v920
        %vm925 = vcmask 15360
        %926 = vst.msk [vmem:[%s322] sm:$0xff] %vm925, %v921
        %927 = vst.msk [vmem:[%s322 + $0x8] sm:$0xff] %vm925, %v922
        %928 = vst.msk [vmem:[%s322 + $0x10] sm:$0xff] %vm925, %v923
        %929 = vst.msk [vmem:[%s322 + $0x18] sm:$0xff] %vm925, %v924
      $region52: #{mixconvblock_forward.4} parent=35 // pred_fallthru
        _
      %s930 = ssub.s32 %s22, 1
      %p931 = scmp.gt.s32.totalorder %s930, 0
      %s932 = scalar_select %p931, %s930, 0
      %p933 = scmp.lt.s32.totalorder %s21, 1
      %s934 = scalar_select %p933, %s21, 1
      %p935 = scmp.lt.s32.totalorder %s932, 7
      %s936 = scalar_select %p935, %s932, 7
      %s937 = smul.addr %s936, 4
      %s938 = smul.addr %s934, 32
      %s939 = sadd.s32 %s937, %s938
      %s940 = smul.addr %s939, 4
      %s941 = scalar_lea.vmem %s4, %s940
      %p942 = scmp.lt.s32.totalorder %s21, 1
      %s943 = scalar_select %p942, %s21, 1
      %s944 = smul.addr %s943, 4
      %s945 = smul.addr %s944, 8
      %s946 = scalar_lea.vmem %s5, %s945
      // Predicated region
      $region53: #{mixconvblock_forward.4} parent=35 // pred_check
        %p947 = pneg %p155
      $region54: #{mixconvblock_forward.4} parent=35 // pred_check_branch
        %949 = sbr.rel (%p947) target = $region56
      $region55: #{mixconvblock_forward.4} parent=35 // pred_region
        %s950 = ssub.s32 %s22, 1
        %p951 = scmp.gt.s32.totalorder %s950, 0
        %s952 = scalar_select %p951, %s950, 0
      $region56: #{mixconvblock_forward.4} parent=35 // pred_fallthru
        _
      // Predicated region
      $region57: #{mixconvblock_forward.4} parent=35 // pred_check
        %p953 = pneg %p181
      $region58: #{mixconvblock_forward.4} parent=35 // pred_check_branch
        %955 = sbr.rel (%p953) target = $region60
      $region59: #{mixconvblock_forward.4} parent=35 // pred_region
        _
      $region60: #{mixconvblock_forward.4} parent=35 // pred_fallthru
        _
    $region36: #{mixconvblock_forward.4} parent=5 // pred_fallthru
      _
    %p956 = scmp.le.s32.totalorder 2, %s12
    // Predicated region
    $region61: #{mixconvblock_forward.4} parent=5 // pred_check
      %p957 = pneg %p956
    $region62: #{mixconvblock_forward.4} parent=5 // pred_check_branch
      %959 = sbr.rel (%p957) target = $region64
    $region63: #{mixconvblock_forward.4} parent=5 // pred_region
      %s960 = ssub.s32 %s12, 2
      // Predicated region
      $region65: #{mixconvblock_forward.4} parent=63 // pred_check
        %p961 = pneg %p161
      $region66: #{mixconvblock_forward.4} parent=63 // pred_check_branch
        %963 = sbr.rel (%p961) target = $region68
      $region67: #{mixconvblock_forward.4} parent=63 // pred_region
        %s964 = ssub.s32 %s24, 1
        %p965 = scmp.gt.s32.totalorder %s964, 0
        %s966 = scalar_select %p965, %s964, 0
        %p967 = scmp.lt.s32.totalorder %s23, 1
        %s968 = scalar_select %p967, %s23, 1
        %p969 = scmp.lt.s32.totalorder %s966, 7
        %s970 = scalar_select %p969, %s966, 7
        %s971 = smul.addr %s970, 4
        %s972 = smul.addr %s968, 32
        %s973 = sadd.s32 %s971, %s972
        %s974 = smul.addr %s973, 4
        %s975 = scalar_lea.vmem %s4, %s974
      $region68: #{mixconvblock_forward.4} parent=63 // pred_fallthru
        _
      // Predicated region
      $region69: #{mixconvblock_forward.4} parent=63 // pred_check
        %p976 = pneg %p187
      $region70: #{mixconvblock_forward.4} parent=63 // pred_check_branch
        %978 = sbr.rel (%p976) target = $region72
      $region71: #{mixconvblock_forward.4} parent=63 // pred_region
        %p979 = scmp.lt.s32.totalorder %s23, 1
        %s980 = scalar_select %p979, %s23, 1
        %s981 = smul.addr %s980, 4
        %s982 = smul.addr %s981, 8
        %s983 = scalar_lea.vmem %s5, %s982
      $region72: #{mixconvblock_forward.4} parent=63 // pred_fallthru
        _
    $region64: #{mixconvblock_forward.4} parent=5 // pred_fallthru
      _
  $region6: #{mixconvblock_forward.4} parent=0 // loop_footer
    %s16 = sadd.s32 1, %s12
  $region7: #{mixconvblock_forward.4} parent=0 // loop_footer_branch
    %11 = sbr.rel target = $region3
  $region8: #{mixconvblock_forward.4} parent=0 // loop_exit
    _

</llo_original>
